<compile_context>
chip_gen: v6e
topology: v6e:2x2x1
jax: 0.10.0
libtpu: 0.0.40
codegen_flags: <defaults>
</compile_context>

<pallas_src>
import functools

import jax
import jax.numpy as jnp
from jax.experimental import pallas as pl
from jax.experimental.pallas import tpu as pltpu


# ----------------------------------------------------------------------------
# Pallas kernels
# ----------------------------------------------------------------------------
def conv_relu_stats_kernel(x_ref, w_ref, b_ref, m_ref, y_ref, ssum_ref, ssq_ref,
                           *, ksize, row_stride):
    """Fused conv (sum of shifted matmuls) + bias + ReLU + BN-stat accumulation.

    Grid: one step per image (reduction axis: the stats accumulate).
      x_ref:    [1, Cin, H*W + tail]  bf16  (per-image flattened, zero tail pad)
      w_ref:    [K*K, OC, Cin]        bf16
      b_ref:    [OC, 1]               f32
      m_ref:    [1, H*W]              f32   validity mask of conv outputs
      y_ref:    [1, OC, H*W]          f32   pre-BN activation (ReLU applied)
      ssum_ref: [OC, 1]               f32   accumulated sum over valid outputs
      ssq_ref:  [OC, 1]               f32   accumulated sum of squares
    """
    i = pl.program_id(0)

    @pl.when(i == 0)
    def _init():
        ssum_ref[...] = jnp.zeros_like(ssum_ref)
        ssq_ref[...] = jnp.zeros_like(ssq_ref)

    _, oc, hw = y_ref.shape
    acc = jnp.zeros((oc, hw), jnp.float32)
    for kh in range(ksize):
        for kw in range(ksize):
            off = kh * row_stride + kw                       # static offset
            slab = x_ref[0, :, pl.ds(off, hw)]               # [Cin, HW] bf16
            wt = w_ref[kh * ksize + kw]                      # [OC, Cin] bf16
            acc = acc + jnp.dot(wt, slab,
                                preferred_element_type=jnp.float32)
    acc = jnp.maximum(acc + b_ref[...], 0.0)                 # bias + ReLU (f32)
    y_ref[0] = acc

    masked = acc * m_ref[...]                                # zero-out invalid cols
    ssum_ref[...] += jnp.sum(masked, axis=1, keepdims=True)
    ssq_ref[...] += jnp.sum(masked * acc, axis=1, keepdims=True)


def bn_rowpool_kernel(y_ref, scale_ref, shift_ref, o_ref):
    """Apply folded BatchNorm affine and the vertical half of MaxPool2d(2,2).

    Grid: one step per image (independent -> "parallel").
      y_ref:     [1, OC, H, W]  f32
      scale_ref: [1, OC, 1, 1]  f32   gamma * rsqrt(var + eps)   (pre-folded)
      shift_ref: [1, OC, 1, 1]  f32   beta - mean * scale        (pre-folded)
      o_ref:     [1, OC, PH, W] f32   (rows pooled 2:1; columns pooled by caller)
    """
    ph = o_ref.shape[2]
    sc = scale_ref[...]
    sh = shift_ref[...]
    r0 = y_ref[:, :, pl.ds(0, ph, stride=2), :] * sc + sh    # sublane-strided reads
    r1 = y_ref[:, :, pl.ds(1, ph, stride=2), :] * sc + sh
    o_ref[...] = jnp.maximum(r0, r1)


def ann_kernel(*refs, num_layers):
    """Whole MLP head fused in one kernel: (Linear [+ ReLU]) x num_layers."""
    x_ref = refs[0]
    o_ref = refs[-1]
    h = x_ref[...]                                           # [N, F] bf16
    for i in range(num_layers):
        w_ref = refs[1 + 2 * i]
        b_ref = refs[2 + 2 * i]
        z = jnp.dot(h, w_ref[...],
                    preferred_element_type=jnp.float32) + b_ref[...]
        if i < num_layers - 1:
            h = jnp.maximum(z, 0.0).astype(jnp.bfloat16)
        else:
            o_ref[...] = z


# ----------------------------------------------------------------------------
# Wrappers
# ----------------------------------------------------------------------------
_VMEM_LIMIT = 32 * 1024 * 1024   # safe scoped-VMEM budget on v5e / v6e / v7x


def conv_stage(x_nchw, w, b, gamma, beta, ksize):
    """One Conv2d -> ReLU -> BatchNorm2d -> MaxPool2d(2,2) stage. NCHW in/out."""
    n, cin, h, wd = x_nchw.shape
    kk, oc, _ = w.shape
    oh, ow = h - ksize + 1, wd - ksize + 1
    ph, pw = oh // 2, ow // 2
    hw = h * wd
    tail = (ksize - 1) * wd + (ksize - 1)
    n_valid = n * oh * ow

    # Per-image flattened activation + tail pad (bf16 for the MXU).
    xf = jnp.pad(x_nchw.reshape(n, cin, hw).astype(jnp.bfloat16),
                 ((0, 0), (0, 0), (0, tail)))
    # Validity mask of the full-width conv grid (same pattern for every image).
    mask = ((jnp.arange(h) < oh)[:, None] & (jnp.arange(wd) < ow)[None, :])
    mask = mask.astype(jnp.float32).reshape(1, hw)

    y, ssum, ssq = pl.pallas_call(
        functools.partial(conv_relu_stats_kernel, ksize=ksize, row_stride=wd),
        grid=(n,),
        in_specs=[
            pl.BlockSpec((1, cin, hw + tail), lambda i: (i, 0, 0)),
            pl.BlockSpec((kk, oc, cin), lambda i: (0, 0, 0)),
            pl.BlockSpec((oc, 1), lambda i: (0, 0)),
            pl.BlockSpec((1, hw), lambda i: (0, 0)),
        ],
        out_specs=(
            pl.BlockSpec((1, oc, hw), lambda i: (i, 0, 0)),
            pl.BlockSpec((oc, 1), lambda i: (0, 0)),
            pl.BlockSpec((oc, 1), lambda i: (0, 0)),
        ),
        out_shape=(
            jax.ShapeDtypeStruct((n, oc, hw), jnp.float32),
            jax.ShapeDtypeStruct((oc, 1), jnp.float32),
            jax.ShapeDtypeStruct((oc, 1), jnp.float32),
        ),
        compiler_params=pltpu.CompilerParams(
            dimension_semantics=("arbitrary",),      # stats accumulate across images
            vmem_limit_bytes=_VMEM_LIMIT),
    )(xf, w, b, mask)

    # Fold BN (training-mode batch stats) to a single per-channel scale/shift.
    # Tiny [OC]-sized math; done once here instead of per image in the kernel.
    inv = 1.0 / n_valid
    mean = ssum * inv                                     # [OC, 1]
    var = jnp.maximum(ssq * inv - mean * mean, 0.0)
    scale = gamma * jax.lax.rsqrt(var + 1e-5)
    shift = beta - mean * scale

    y4 = y.reshape(n, oc, h, wd)                          # free reshape (contiguous)
    s4 = lambda a: a.reshape(1, oc, 1, 1)

    rp = pl.pallas_call(
        bn_rowpool_kernel,
        grid=(n,),
        in_specs=[
            pl.BlockSpec((1, oc, h, wd), lambda i: (i, 0, 0, 0)),
            pl.BlockSpec((1, oc, 1, 1), lambda i: (0, 0, 0, 0)),
            pl.BlockSpec((1, oc, 1, 1), lambda i: (0, 0, 0, 0)),
        ],
        out_specs=pl.BlockSpec((1, oc, ph, wd), lambda i: (i, 0, 0, 0)),
        out_shape=jax.ShapeDtypeStruct((n, oc, ph, wd), jnp.float32),
        compiler_params=pltpu.CompilerParams(
            dimension_semantics=("parallel",),
            vmem_limit_bytes=_VMEM_LIMIT),
    )(y4, s4(scale), s4(shift))

    # TODO(synk): the horizontal 2:1 max selection stays in XLA; fusing it would
    # need a lane-strided load or a minor-dim transpose of odd-sized tiles.
    pooled = jnp.maximum(rp[..., 0:2 * pw:2], rp[..., 1:2 * pw:2])
    return pooled                                    # [N, OC, PH, PW]


def ann_forward(flat, ann_params):
    n = flat.shape[0]
    num_layers = len(ann_params)
    args = [flat.astype(jnp.bfloat16)]
    for (w, b) in ann_params:
        args += [w, b]
    in_specs = [pl.BlockSpec(memory_space=pltpu.MemorySpace.VMEM)
                for _ in range(len(args))]
    out_dim = ann_params[-1][0].shape[1]
    return pl.pallas_call(
        functools.partial(ann_kernel, num_layers=num_layers),
        out_shape=jax.ShapeDtypeStruct((n, out_dim), jnp.float32),
        in_specs=in_specs,
        out_specs=pl.BlockSpec(memory_space=pltpu.MemorySpace.VMEM),
        compiler_params=pltpu.CompilerParams(vmem_limit_bytes=_VMEM_LIMIT),
    )(*args)


def baseline_cnn_forward(x_nchw, params, kernel_size=3):
    x = x_nchw.astype(jnp.float32)                   # NCHW throughout
    n = x.shape[0]
    for (w, b, gamma, beta) in params["conv"]:
        x = conv_stage(x, w, b, gamma, beta, kernel_size)
    flat = x.reshape(n, -1)                          # NCHW flatten (matches torch)
    return ann_forward(flat, params["ann"])


# ----------------------------------------------------------------------------
# Parameters and pure-JAX reference
# ----------------------------------------------------------------------------
def init_params(key, in_channels, cnn_features, kernel_size, ann_in, ann_layers):
    params = {"conv": [], "ann": []}
    feats = [in_channels] + list(cnn_features)
    for i in range(len(feats) - 1):
        cin, cout = feats[i], feats[i + 1]
        key, k1, k2 = jax.random.split(key, 3)
        # Conv weight stored as [K*K, OC, Cin] (tap-major), tap index = kh*K+kw.
        w = (jax.random.normal(k1, (kernel_size * kernel_size, cout, cin),
                               jnp.float32) * 0.1).astype(jnp.bfloat16)
        b = jax.random.normal(k2, (cout, 1), jnp.float32) * 0.1
        gamma = jnp.ones((cout, 1), jnp.float32)     # BatchNorm2d default init
        beta = jnp.zeros((cout, 1), jnp.float32)
        params["conv"].append((w, b, gamma, beta))
    dims = [ann_in] + list(ann_layers)
    for i in range(len(dims) - 1):
        key, k1, k2 = jax.random.split(key, 3)
        w = (jax.random.normal(k1, (dims[i], dims[i + 1]), jnp.float32)
             * 0.1).astype(jnp.bfloat16)
        b = jax.random.normal(k2, (1, dims[i + 1]), jnp.float32) * 0.1
        params["ann"].append((w, b))
    return params


def reference_forward(x_nchw, params, ksize):
    x = x_nchw.astype(jnp.float32)
    n = x.shape[0]
    for (w, b, gamma, beta) in params["conv"]:
        kk, oc, cin = w.shape
        h, wd = x.shape[2], x.shape[3]
        oh, ow = h - ksize + 1, wd - ksize + 1
        xb = x.astype(jnp.bfloat16)
        y = jnp.zeros((n, oc, oh, ow), jnp.float32)
        for kh in range(ksize):
            for kw in range(ksize):
                tap = xb[:, :, kh:kh + oh, kw:kw + ow]
                wt = w[kh * ksize + kw]
                y = y + jnp.einsum('nchw,oc->nohw', tap, wt,
                                   preferred_element_type=jnp.float32)
        y = jnp.maximum(y + b.reshape(1, oc, 1, 1), 0.0)
        mean = jnp.mean(y, axis=(0, 2, 3), keepdims=True)
        var = jnp.mean((y - mean) ** 2, axis=(0, 2, 3), keepdims=True)
        y = ((y - mean) * jax.lax.rsqrt(var + 1e-5) * gamma.reshape(1, oc, 1, 1)
             + beta.reshape(1, oc, 1, 1))
        ph, pw = oh // 2, ow // 2
        yc = y[:, :, :2 * ph, :2 * pw]
        x = jnp.maximum(
            jnp.maximum(yc[:, :, 0::2, 0::2], yc[:, :, 0::2, 1::2]),
            jnp.maximum(yc[:, :, 1::2, 0::2], yc[:, :, 1::2, 1::2]))
    flat = x.reshape(n, -1)
    num = len(params["ann"])
    for i, (w, bb) in enumerate(params["ann"]):
        flat = jnp.dot(flat.astype(jnp.bfloat16), w,
                       preferred_element_type=jnp.float32) + bb
        if i < num - 1:
            flat = jnp.maximum(flat, 0.0)
    return flat


if __name__ == "__main__":
    # Small config consistent with BaselineCNN(input_shape=(4,16,16),
    # cnn_features=[8,16], cnn_kernel_sizes=3, ann_layers=[32,10]).
    batch, in_c, hw = 2, 4, 16
    cnn_features = [8, 16]
    ann_layers = [32, 10]
    kernel_size = 3

    # spatial: 16 -conv-> 14 -pool-> 7 -conv-> 5 -pool-> 2  => flatten = 16*2*2
    flat_size = cnn_features[-1] * 2 * 2

    key = jax.random.PRNGKey(0)
    key, kx = jax.random.split(key)
    x = jax.random.normal(kx, (batch, in_c, hw, hw), jnp.float32)  # NCHW input

    params = init_params(key, in_c, cnn_features, kernel_size, flat_size,
                         ann_layers)

    fwd = jax.jit(functools.partial(baseline_cnn_forward,
                                    kernel_size=kernel_size))
    out = jax.block_until_ready(fwd(x, params))
    ref = jax.block_until_ready(reference_forward(x, params, kernel_size))

    assert out.shape == (batch, ann_layers[-1]), out.shape
    assert bool(jnp.all(jnp.isfinite(out)))
    assert jnp.allclose(out, ref, atol=1e-2, rtol=1e-2), \
        float(jnp.max(jnp.abs(out - ref)))

    print("KERNEL_OK")
</pallas_src>

<mosaic_0001>
module attributes {stable_mosaic.version = 11 : i64} {
  func.func @conv_relu_stats_kernel(%arg0: i32, %arg1: memref<1x4x290xbf16, #tpu.memory_space<vmem>>, %arg2: memref<9x8x4xbf16, #tpu.memory_space<vmem>>, %arg3: memref<8x1xf32, #tpu.memory_space<vmem>>, %arg4: memref<1x256xf32, #tpu.memory_space<vmem>>, %arg5: memref<1x8x256xf32, #tpu.memory_space<vmem>>, %arg6: memref<8x1xf32, #tpu.memory_space<vmem>>, %arg7: memref<8x1xf32, #tpu.memory_space<vmem>>) attributes {dimension_semantics = [#tpu.dimension_semantics<arbitrary>], iteration_bounds = array<i64: 2>, scalar_prefetch = 0 : i64, scratch_operands = 0 : i64, tpu.core_type = #tpu.core_type<tc>, window_params = [{transform_indices = @transform_0, window_bounds = array<i64: 1, 4, 290>}, {pipeline_mode = #tpu.pipeline_mode<synchronous>, transform_indices = @transform_1, window_bounds = array<i64: 9, 8, 4>}, {pipeline_mode = #tpu.pipeline_mode<synchronous>, transform_indices = @transform_2, window_bounds = array<i64: 8, 1>}, {pipeline_mode = #tpu.pipeline_mode<synchronous>, transform_indices = @transform_3, window_bounds = array<i64: 1, 256>}, {transform_indices = @transform_4, window_bounds = array<i64: 1, 8, 256>}, {pipeline_mode = #tpu.pipeline_mode<synchronous>, transform_indices = @transform_5, window_bounds = array<i64: 8, 1>}, {pipeline_mode = #tpu.pipeline_mode<synchronous>, transform_indices = @transform_6, window_bounds = array<i64: 8, 1>}]} {
    %c0_i32 = arith.constant 0 : i32
    %0 = arith.cmpi eq, %arg0, %c0_i32 : i32
    %1 = arith.extui %0 : i1 to i32
    %c0_i32_0 = arith.constant 0 : i32
    %2 = arith.cmpi ne, %1, %c0_i32_0 : i32
    scf.if %2 {
      %cst_67 = arith.constant 0.000000e+00 : f32
      %80 = vector.broadcast %cst_67 : f32 to vector<8x1xf32>
      %c0_68 = arith.constant 0 : index
      %c0_69 = arith.constant 0 : index
      %81 = vector.load %arg6[%c0_68, %c0_69] : memref<8x1xf32, #tpu.memory_space<vmem>>, vector<8x1xf32>
      tpu.vector_store %arg6[%c0_68, %c0_69], %80 {strides = array<i32>} : memref<8x1xf32, #tpu.memory_space<vmem>>, vector<8x1xf32>,
      %cst_70 = arith.constant 0.000000e+00 : f32
      %82 = vector.broadcast %cst_70 : f32 to vector<8x1xf32>
      %c0_71 = arith.constant 0 : index
      %c0_72 = arith.constant 0 : index
      %83 = vector.load %arg7[%c0_71, %c0_72] : memref<8x1xf32, #tpu.memory_space<vmem>>, vector<8x1xf32>
      tpu.vector_store %arg7[%c0_71, %c0_72], %82 {strides = array<i32>} : memref<8x1xf32, #tpu.memory_space<vmem>>, vector<8x1xf32>,
    } else {
    }
    %cst = arith.constant 0.000000e+00 : f32
    %3 = vector.broadcast %cst : f32 to vector<8x256xf32>
    %c0 = arith.constant 0 : index
    %c0_1 = arith.constant 0 : index
    %c0_2 = arith.constant 0 : index
    %4 = vector.load %arg1[%c0, %c0_1, %c0_2] : memref<1x4x290xbf16, #tpu.memory_space<vmem>>, vector<1x4x256xbf16>
    %5 = vector.shape_cast %4 : vector<1x4x256xbf16> to vector<4x256xbf16>
    %c0_3 = arith.constant 0 : index
    %c0_4 = arith.constant 0 : index
    %c0_5 = arith.constant 0 : index
    %6 = vector.load %arg2[%c0_3, %c0_4, %c0_5] : memref<9x8x4xbf16, #tpu.memory_space<vmem>>, vector<1x8x4xbf16>
    %7 = vector.shape_cast %6 : vector<1x8x4xbf16> to vector<8x4xbf16>
    %cst_6 = arith.constant dense<0.000000e+00> : vector<8x256xf32>
    %8 = tpu.matmul %7, %5, %cst_6 {dimension_numbers = #tpu.dot_dimension_numbers<[1], [0], [0], [1], [0, 0, 1, 1], [], []>} : vector<8x4xbf16>, vector<4x256xbf16>, vector<8x256xf32> -> vector<8x256xf32>
    %9 = arith.addf %3, %8 : vector<8x256xf32>
    %c0_7 = arith.constant 0 : index
    %c0_8 = arith.constant 0 : index
    %c1 = arith.constant 1 : index
    %10 = vector.load %arg1[%c0_7, %c0_8, %c1] : memref<1x4x290xbf16, #tpu.memory_space<vmem>>, vector<1x4x256xbf16>
    %11 = vector.shape_cast %10 : vector<1x4x256xbf16> to vector<4x256xbf16>
    %c1_9 = arith.constant 1 : index
    %c0_10 = arith.constant 0 : index
    %c0_11 = arith.constant 0 : index
    %12 = vector.load %arg2[%c1_9, %c0_10, %c0_11] : memref<9x8x4xbf16, #tpu.memory_space<vmem>>, vector<1x8x4xbf16>
    %13 = vector.shape_cast %12 : vector<1x8x4xbf16> to vector<8x4xbf16>
    %cst_12 = arith.constant dense<0.000000e+00> : vector<8x256xf32>
    %14 = tpu.matmul %13, %11, %cst_12 {dimension_numbers = #tpu.dot_dimension_numbers<[1], [0], [0], [1], [0, 0, 1, 1], [], []>} : vector<8x4xbf16>, vector<4x256xbf16>, vector<8x256xf32> -> vector<8x256xf32>
    %15 = arith.addf %9, %14 : vector<8x256xf32>
    %c0_13 = arith.constant 0 : index
    %c0_14 = arith.constant 0 : index
    %c2 = arith.constant 2 : index
    %16 = vector.load %arg1[%c0_13, %c0_14, %c2] : memref<1x4x290xbf16, #tpu.memory_space<vmem>>, vector<1x4x256xbf16>
    %17 = vector.shape_cast %16 : vector<1x4x256xbf16> to vector<4x256xbf16>
    %c2_15 = arith.constant 2 : index
    %c0_16 = arith.constant 0 : index
    %c0_17 = arith.constant 0 : index
    %18 = vector.load %arg2[%c2_15, %c0_16, %c0_17] : memref<9x8x4xbf16, #tpu.memory_space<vmem>>, vector<1x8x4xbf16>
    %19 = vector.shape_cast %18 : vector<1x8x4xbf16> to vector<8x4xbf16>
    %cst_18 = arith.constant dense<0.000000e+00> : vector<8x256xf32>
    %20 = tpu.matmul %19, %17, %cst_18 {dimension_numbers = #tpu.dot_dimension_numbers<[1], [0], [0], [1], [0, 0, 1, 1], [], []>} : vector<8x4xbf16>, vector<4x256xbf16>, vector<8x256xf32> -> vector<8x256xf32>
    %21 = arith.addf %15, %20 : vector<8x256xf32>
    %c0_19 = arith.constant 0 : index
    %c0_20 = arith.constant 0 : index
    %c16 = arith.constant 16 : index
    %22 = vector.load %arg1[%c0_19, %c0_20, %c16] : memref<1x4x290xbf16, #tpu.memory_space<vmem>>, vector<1x4x256xbf16>
    %23 = vector.shape_cast %22 : vector<1x4x256xbf16> to vector<4x256xbf16>
    %c3 = arith.constant 3 : index
    %c0_21 = arith.constant 0 : index
    %c0_22 = arith.constant 0 : index
    %24 = vector.load %arg2[%c3, %c0_21, %c0_22] : memref<9x8x4xbf16, #tpu.memory_space<vmem>>, vector<1x8x4xbf16>
    %25 = vector.shape_cast %24 : vector<1x8x4xbf16> to vector<8x4xbf16>
    %cst_23 = arith.constant dense<0.000000e+00> : vector<8x256xf32>
    %26 = tpu.matmul %25, %23, %cst_23 {dimension_numbers = #tpu.dot_dimension_numbers<[1], [0], [0], [1], [0, 0, 1, 1], [], []>} : vector<8x4xbf16>, vector<4x256xbf16>, vector<8x256xf32> -> vector<8x256xf32>
    %27 = arith.addf %21, %26 : vector<8x256xf32>
    %c0_24 = arith.constant 0 : index
    %c0_25 = arith.constant 0 : index
    %c17 = arith.constant 17 : index
    %28 = vector.load %arg1[%c0_24, %c0_25, %c17] : memref<1x4x290xbf16, #tpu.memory_space<vmem>>, vector<1x4x256xbf16>
    %29 = vector.shape_cast %28 : vector<1x4x256xbf16> to vector<4x256xbf16>
    %c4 = arith.constant 4 : index
    %c0_26 = arith.constant 0 : index
    %c0_27 = arith.constant 0 : index
    %30 = vector.load %arg2[%c4, %c0_26, %c0_27] : memref<9x8x4xbf16, #tpu.memory_space<vmem>>, vector<1x8x4xbf16>
    %31 = vector.shape_cast %30 : vector<1x8x4xbf16> to vector<8x4xbf16>
    %cst_28 = arith.constant dense<0.000000e+00> : vector<8x256xf32>
    %32 = tpu.matmul %31, %29, %cst_28 {dimension_numbers = #tpu.dot_dimension_numbers<[1], [0], [0], [1], [0, 0, 1, 1], [], []>} : vector<8x4xbf16>, vector<4x256xbf16>, vector<8x256xf32> -> vector<8x256xf32>
    %33 = arith.addf %27, %32 : vector<8x256xf32>
    %c0_29 = arith.constant 0 : index
    %c0_30 = arith.constant 0 : index
    %c18 = arith.constant 18 : index
    %34 = vector.load %arg1[%c0_29, %c0_30, %c18] : memref<1x4x290xbf16, #tpu.memory_space<vmem>>, vector<1x4x256xbf16>
    %35 = vector.shape_cast %34 : vector<1x4x256xbf16> to vector<4x256xbf16>
    %c5 = arith.constant 5 : index
    %c0_31 = arith.constant 0 : index
    %c0_32 = arith.constant 0 : index
    %36 = vector.load %arg2[%c5, %c0_31, %c0_32] : memref<9x8x4xbf16, #tpu.memory_space<vmem>>, vector<1x8x4xbf16>
    %37 = vector.shape_cast %36 : vector<1x8x4xbf16> to vector<8x4xbf16>
    %cst_33 = arith.constant dense<0.000000e+00> : vector<8x256xf32>
    %38 = tpu.matmul %37, %35, %cst_33 {dimension_numbers = #tpu.dot_dimension_numbers<[1], [0], [0], [1], [0, 0, 1, 1], [], []>} : vector<8x4xbf16>, vector<4x256xbf16>, vector<8x256xf32> -> vector<8x256xf32>
    %39 = arith.addf %33, %38 : vector<8x256xf32>
    %c0_34 = arith.constant 0 : index
    %c0_35 = arith.constant 0 : index
    %c32 = arith.constant 32 : index
    %40 = vector.load %arg1[%c0_34, %c0_35, %c32] : memref<1x4x290xbf16, #tpu.memory_space<vmem>>, vector<1x4x256xbf16>
    %41 = vector.shape_cast %40 : vector<1x4x256xbf16> to vector<4x256xbf16>
    %c6 = arith.constant 6 : index
    %c0_36 = arith.constant 0 : index
    %c0_37 = arith.constant 0 : index
    %42 = vector.load %arg2[%c6, %c0_36, %c0_37] : memref<9x8x4xbf16, #tpu.memory_space<vmem>>, vector<1x8x4xbf16>
    %43 = vector.shape_cast %42 : vector<1x8x4xbf16> to vector<8x4xbf16>
    %cst_38 = arith.constant dense<0.000000e+00> : vector<8x256xf32>
    %44 = tpu.matmul %43, %41, %cst_38 {dimension_numbers = #tpu.dot_dimension_numbers<[1], [0], [0], [1], [0, 0, 1, 1], [], []>} : vector<8x4xbf16>, vector<4x256xbf16>, vector<8x256xf32> -> vector<8x256xf32>
    %45 = arith.addf %39, %44 : vector<8x256xf32>
    %c0_39 = arith.constant 0 : index
    %c0_40 = arith.constant 0 : index
    %c33 = arith.constant 33 : index
    %46 = vector.load %arg1[%c0_39, %c0_40, %c33] : memref<1x4x290xbf16, #tpu.memory_space<vmem>>, vector<1x4x256xbf16>
    %47 = vector.shape_cast %46 : vector<1x4x256xbf16> to vector<4x256xbf16>
    %c7 = arith.constant 7 : index
    %c0_41 = arith.constant 0 : index
    %c0_42 = arith.constant 0 : index
    %48 = vector.load %arg2[%c7, %c0_41, %c0_42] : memref<9x8x4xbf16, #tpu.memory_space<vmem>>, vector<1x8x4xbf16>
    %49 = vector.shape_cast %48 : vector<1x8x4xbf16> to vector<8x4xbf16>
    %cst_43 = arith.constant dense<0.000000e+00> : vector<8x256xf32>
    %50 = tpu.matmul %49, %47, %cst_43 {dimension_numbers = #tpu.dot_dimension_numbers<[1], [0], [0], [1], [0, 0, 1, 1], [], []>} : vector<8x4xbf16>, vector<4x256xbf16>, vector<8x256xf32> -> vector<8x256xf32>
    %51 = arith.addf %45, %50 : vector<8x256xf32>
    %c0_44 = arith.constant 0 : index
    %c0_45 = arith.constant 0 : index
    %c34 = arith.constant 34 : index
    %52 = vector.load %arg1[%c0_44, %c0_45, %c34] : memref<1x4x290xbf16, #tpu.memory_space<vmem>>, vector<1x4x256xbf16>
    %53 = vector.shape_cast %52 : vector<1x4x256xbf16> to vector<4x256xbf16>
    %c8 = arith.constant 8 : index
    %c0_46 = arith.constant 0 : index
    %c0_47 = arith.constant 0 : index
    %54 = vector.load %arg2[%c8, %c0_46, %c0_47] : memref<9x8x4xbf16, #tpu.memory_space<vmem>>, vector<1x8x4xbf16>
    %55 = vector.shape_cast %54 : vector<1x8x4xbf16> to vector<8x4xbf16>
    %cst_48 = arith.constant dense<0.000000e+00> : vector<8x256xf32>
    %56 = tpu.matmul %55, %53, %cst_48 {dimension_numbers = #tpu.dot_dimension_numbers<[1], [0], [0], [1], [0, 0, 1, 1], [], []>} : vector<8x4xbf16>, vector<4x256xbf16>, vector<8x256xf32> -> vector<8x256xf32>
    %57 = arith.addf %51, %56 : vector<8x256xf32>
    %c0_49 = arith.constant 0 : index
    %c0_50 = arith.constant 0 : index
    %58 = vector.load %arg3[%c0_49, %c0_50] : memref<8x1xf32, #tpu.memory_space<vmem>>, vector<8x1xf32>
    %59 = vector.broadcast %58 : vector<8x1xf32> to vector<8x256xf32>
    %60 = arith.addf %57, %59 : vector<8x256xf32>
    %cst_51 = arith.constant 0.000000e+00 : f32
    %61 = vector.broadcast %cst_51 : f32 to vector<8x256xf32>
    %62 = arith.maximumf %60, %61 : vector<8x256xf32>
    %c0_52 = arith.constant 0 : index
    %c0_53 = arith.constant 0 : index
    %c0_54 = arith.constant 0 : index
    %63 = vector.load %arg5[%c0_52, %c0_53, %c0_54] : memref<1x8x256xf32, #tpu.memory_space<vmem>>, vector<1x8x256xf32>
    %64 = vector.shape_cast %63 : vector<1x8x256xf32> to vector<8x256xf32>
    %65 = vector.shape_cast %62 : vector<8x256xf32> to vector<1x8x256xf32>
    tpu.vector_store %arg5[%c0_52, %c0_53, %c0_54], %65 {strides = array<i32>} : memref<1x8x256xf32, #tpu.memory_space<vmem>>, vector<1x8x256xf32>,
    %c0_55 = arith.constant 0 : index
    %c0_56 = arith.constant 0 : index
    %66 = vector.load %arg4[%c0_55, %c0_56] : memref<1x256xf32, #tpu.memory_space<vmem>>, vector<1x256xf32>
    %67 = vector.broadcast %66 : vector<1x256xf32> to vector<8x256xf32>
    %68 = arith.mulf %62, %67 : vector<8x256xf32>
    %c0_57 = arith.constant 0 : index
    %c0_58 = arith.constant 0 : index
    %69 = vector.load %arg6[%c0_57, %c0_58] : memref<8x1xf32, #tpu.memory_space<vmem>>, vector<8x1xf32>
    %cst_59 = arith.constant dense<0.000000e+00> : vector<8xf32>
    %70 = vector.multi_reduction <add>, %68, %cst_59 [1] : vector<8x256xf32> to vector<8xf32>
    %71 = vector.shape_cast %70 : vector<8xf32> to vector<8x1xf32>
    %72 = arith.addf %69, %71 : vector<8x1xf32>
    %c0_60 = arith.constant 0 : index
    %c0_61 = arith.constant 0 : index
    %73 = vector.load %arg6[%c0_60, %c0_61] : memref<8x1xf32, #tpu.memory_space<vmem>>, vector<8x1xf32>
    tpu.vector_store %arg6[%c0_60, %c0_61], %72 {strides = array<i32>} : memref<8x1xf32, #tpu.memory_space<vmem>>, vector<8x1xf32>,
    %c0_62 = arith.constant 0 : index
    %c0_63 = arith.constant 0 : index
    %74 = vector.load %arg7[%c0_62, %c0_63] : memref<8x1xf32, #tpu.memory_space<vmem>>, vector<8x1xf32>
    %75 = arith.mulf %68, %62 : vector<8x256xf32>
    %cst_64 = arith.constant dense<0.000000e+00> : vector<8xf32>
    %76 = vector.multi_reduction <add>, %75, %cst_64 [1] : vector<8x256xf32> to vector<8xf32>
    %77 = vector.shape_cast %76 : vector<8xf32> to vector<8x1xf32>
    %78 = arith.addf %74, %77 : vector<8x1xf32>
    %c0_65 = arith.constant 0 : index
    %c0_66 = arith.constant 0 : index
    %79 = vector.load %arg7[%c0_65, %c0_66] : memref<8x1xf32, #tpu.memory_space<vmem>>, vector<8x1xf32>
    tpu.vector_store %arg7[%c0_65, %c0_66], %78 {strides = array<i32>} : memref<8x1xf32, #tpu.memory_space<vmem>>, vector<8x1xf32>,
    return
  }
  func.func @transform_0(%arg0: i32) -> (i32, i32, i32) {
    %c0_i32 = arith.constant 0 : i32
    %c0_i32_0 = arith.constant 0 : i32
    %c0_i32_1 = arith.constant 0 : i32
    return %arg0, %c0_i32, %c0_i32_0 : i32, i32, i32
  }
  func.func @transform_1(%arg0: i32) -> (i32, i32, i32) {
    %c0_i32 = arith.constant 0 : i32
    %c0_i32_0 = arith.constant 0 : i32
    %c0_i32_1 = arith.constant 0 : i32
    %c0_i32_2 = arith.constant 0 : i32
    return %c0_i32, %c0_i32_0, %c0_i32_1 : i32, i32, i32
  }
  func.func @transform_2(%arg0: i32) -> (i32, i32) {
    %c0_i32 = arith.constant 0 : i32
    %c0_i32_0 = arith.constant 0 : i32
    %c0_i32_1 = arith.constant 0 : i32
    return %c0_i32, %c0_i32_0 : i32, i32
  }
  func.func @transform_3(%arg0: i32) -> (i32, i32) {
    %c0_i32 = arith.constant 0 : i32
    %c0_i32_0 = arith.constant 0 : i32
    %c0_i32_1 = arith.constant 0 : i32
    return %c0_i32, %c0_i32_0 : i32, i32
  }
  func.func @transform_4(%arg0: i32) -> (i32, i32, i32) {
    %c0_i32 = arith.constant 0 : i32
    %c0_i32_0 = arith.constant 0 : i32
    %c0_i32_1 = arith.constant 0 : i32
    return %arg0, %c0_i32, %c0_i32_0 : i32, i32, i32
  }
  func.func @transform_5(%arg0: i32) -> (i32, i32) {
    %c0_i32 = arith.constant 0 : i32
    %c0_i32_0 = arith.constant 0 : i32
    %c0_i32_1 = arith.constant 0 : i32
    return %c0_i32, %c0_i32_0 : i32, i32
  }
  func.func @transform_6(%arg0: i32) -> (i32, i32) {
    %c0_i32 = arith.constant 0 : i32
    %c0_i32_0 = arith.constant 0 : i32
    %c0_i32_1 = arith.constant 0 : i32
    return %c0_i32, %c0_i32_0 : i32, i32
  }
}

module attributes {stable_mosaic.version = 11 : i64} {
  func.func @bn_rowpool_kernel(%arg0: i32, %arg1: memref<1x8x16x16xf32, #tpu.memory_space<vmem>>, %arg2: memref<1x8x1x1xf32, #tpu.memory_space<vmem>>, %arg3: memref<1x8x1x1xf32, #tpu.memory_space<vmem>>, %arg4: memref<1x8x7x16xf32, #tpu.memory_space<vmem>>) attributes {dimension_semantics = [#tpu.dimension_semantics<parallel>], iteration_bounds = array<i64: 2>, scalar_prefetch = 0 : i64, scratch_operands = 0 : i64, tpu.core_type = #tpu.core_type<tc>, window_params = [{transform_indices = @transform_0, window_bounds = array<i64: 1, 8, 16, 16>}, {pipeline_mode = #tpu.pipeline_mode<synchronous>, transform_indices = @transform_1, window_bounds = array<i64: 1, 8, 1, 1>}, {pipeline_mode = #tpu.pipeline_mode<synchronous>, transform_indices = @transform_2, window_bounds = array<i64: 1, 8, 1, 1>}, {transform_indices = @transform_3, window_bounds = array<i64: 1, 8, 7, 16>}]} {
    %c0 = arith.constant 0 : index
    %c0_0 = arith.constant 0 : index
    %c0_1 = arith.constant 0 : index
    %c0_2 = arith.constant 0 : index
    %0 = vector.load %arg2[%c0, %c0_0, %c0_1, %c0_2] : memref<1x8x1x1xf32, #tpu.memory_space<vmem>>, vector<1x8x1x1xf32>
    %c0_3 = arith.constant 0 : index
    %c0_4 = arith.constant 0 : index
    %c0_5 = arith.constant 0 : index
    %c0_6 = arith.constant 0 : index
    %1 = vector.load %arg3[%c0_3, %c0_4, %c0_5, %c0_6] : memref<1x8x1x1xf32, #tpu.memory_space<vmem>>, vector<1x8x1x1xf32>
    %c0_7 = arith.constant 0 : index
    %c0_8 = arith.constant 0 : index
    %c0_9 = arith.constant 0 : index
    %c0_10 = arith.constant 0 : index
    %2 = tpu.strided_load %arg1[%c0_7, %c0_8, %c0_9, %c0_10] {strides = array<i32: 1, 1, 2, 1>} : memref<1x8x16x16xf32, #tpu.memory_space<vmem>>, vector<1x8x7x16xf32>
    %3 = vector.broadcast %0 : vector<1x8x1x1xf32> to vector<1x8x7x16xf32>
    %4 = arith.mulf %2, %3 : vector<1x8x7x16xf32>
    %5 = vector.broadcast %1 : vector<1x8x1x1xf32> to vector<1x8x7x16xf32>
    %6 = arith.addf %4, %5 : vector<1x8x7x16xf32>
    %c0_11 = arith.constant 0 : index
    %c0_12 = arith.constant 0 : index
    %c1 = arith.constant 1 : index
    %c0_13 = arith.constant 0 : index
    %7 = tpu.strided_load %arg1[%c0_11, %c0_12, %c1, %c0_13] {strides = array<i32: 1, 1, 2, 1>} : memref<1x8x16x16xf32, #tpu.memory_space<vmem>>, vector<1x8x7x16xf32>
    %8 = vector.broadcast %0 : vector<1x8x1x1xf32> to vector<1x8x7x16xf32>
    %9 = arith.mulf %7, %8 : vector<1x8x7x16xf32>
    %10 = vector.broadcast %1 : vector<1x8x1x1xf32> to vector<1x8x7x16xf32>
    %11 = arith.addf %9, %10 : vector<1x8x7x16xf32>
    %12 = arith.maximumf %6, %11 : vector<1x8x7x16xf32>
    %c0_14 = arith.constant 0 : index
    %c0_15 = arith.constant 0 : index
    %c0_16 = arith.constant 0 : index
    %c0_17 = arith.constant 0 : index
    %13 = vector.load %arg4[%c0_14, %c0_15, %c0_16, %c0_17] : memref<1x8x7x16xf32, #tpu.memory_space<vmem>>, vector<1x8x7x16xf32>
    tpu.vector_store %arg4[%c0_14, %c0_15, %c0_16, %c0_17], %12 {strides = array<i32>} : memref<1x8x7x16xf32, #tpu.memory_space<vmem>>, vector<1x8x7x16xf32>,
    return
  }
  func.func @transform_0(%arg0: i32) -> (i32, i32, i32, i32) {
    %c0_i32 = arith.constant 0 : i32
    %c0_i32_0 = arith.constant 0 : i32
    %c0_i32_1 = arith.constant 0 : i32
    %c0_i32_2 = arith.constant 0 : i32
    return %arg0, %c0_i32, %c0_i32_0, %c0_i32_1 : i32, i32, i32, i32
  }
  func.func @transform_1(%arg0: i32) -> (i32, i32, i32, i32) {
    %c0_i32 = arith.constant 0 : i32
    %c0_i32_0 = arith.constant 0 : i32
    %c0_i32_1 = arith.constant 0 : i32
    %c0_i32_2 = arith.constant 0 : i32
    %c0_i32_3 = arith.constant 0 : i32
    return %c0_i32, %c0_i32_0, %c0_i32_1, %c0_i32_2 : i32, i32, i32, i32
  }
  func.func @transform_2(%arg0: i32) -> (i32, i32, i32, i32) {
    %c0_i32 = arith.constant 0 : i32
    %c0_i32_0 = arith.constant 0 : i32
    %c0_i32_1 = arith.constant 0 : i32
    %c0_i32_2 = arith.constant 0 : i32
    %c0_i32_3 = arith.constant 0 : i32
    return %c0_i32, %c0_i32_0, %c0_i32_1, %c0_i32_2 : i32, i32, i32, i32
  }
  func.func @transform_3(%arg0: i32) -> (i32, i32, i32, i32) {
    %c0_i32 = arith.constant 0 : i32
    %c0_i32_0 = arith.constant 0 : i32
    %c0_i32_1 = arith.constant 0 : i32
    %c0_i32_2 = arith.constant 0 : i32
    return %arg0, %c0_i32, %c0_i32_0, %c0_i32_1 : i32, i32, i32, i32
  }
}

module attributes {stable_mosaic.version = 11 : i64} {
  func.func @conv_relu_stats_kernel(%arg0: i32, %arg1: memref<1x8x65xbf16, #tpu.memory_space<vmem>>, %arg2: memref<9x16x8xbf16, #tpu.memory_space<vmem>>, %arg3: memref<16x1xf32, #tpu.memory_space<vmem>>, %arg4: memref<1x49xf32, #tpu.memory_space<vmem>>, %arg5: memref<1x16x49xf32, #tpu.memory_space<vmem>>, %arg6: memref<16x1xf32, #tpu.memory_space<vmem>>, %arg7: memref<16x1xf32, #tpu.memory_space<vmem>>) attributes {dimension_semantics = [#tpu.dimension_semantics<arbitrary>], iteration_bounds = array<i64: 2>, scalar_prefetch = 0 : i64, scratch_operands = 0 : i64, tpu.core_type = #tpu.core_type<tc>, window_params = [{transform_indices = @transform_0, window_bounds = array<i64: 1, 8, 65>}, {pipeline_mode = #tpu.pipeline_mode<synchronous>, transform_indices = @transform_1, window_bounds = array<i64: 9, 16, 8>}, {pipeline_mode = #tpu.pipeline_mode<synchronous>, transform_indices = @transform_2, window_bounds = array<i64: 16, 1>}, {pipeline_mode = #tpu.pipeline_mode<synchronous>, transform_indices = @transform_3, window_bounds = array<i64: 1, 49>}, {transform_indices = @transform_4, window_bounds = array<i64: 1, 16, 49>}, {pipeline_mode = #tpu.pipeline_mode<synchronous>, transform_indices = @transform_5, window_bounds = array<i64: 16, 1>}, {pipeline_mode = #tpu.pipeline_mode<synchronous>, transform_indices = @transform_6, window_bounds = array<i64: 16, 1>}]} {
    %c0_i32 = arith.constant 0 : i32
    %0 = arith.cmpi eq, %arg0, %c0_i32 : i32
    %1 = arith.extui %0 : i1 to i32
    %c0_i32_0 = arith.constant 0 : i32
    %2 = arith.cmpi ne, %1, %c0_i32_0 : i32
    scf.if %2 {
      %cst_69 = arith.constant 0.000000e+00 : f32
      %80 = vector.broadcast %cst_69 : f32 to vector<16x1xf32>
      %c0_70 = arith.constant 0 : index
      %c0_71 = arith.constant 0 : index
      %81 = vector.load %arg6[%c0_70, %c0_71] : memref<16x1xf32, #tpu.memory_space<vmem>>, vector<16x1xf32>
      tpu.vector_store %arg6[%c0_70, %c0_71], %80 {strides = array<i32>} : memref<16x1xf32, #tpu.memory_space<vmem>>, vector<16x1xf32>,
      %cst_72 = arith.constant 0.000000e+00 : f32
      %82 = vector.broadcast %cst_72 : f32 to vector<16x1xf32>
      %c0_73 = arith.constant 0 : index
      %c0_74 = arith.constant 0 : index
      %83 = vector.load %arg7[%c0_73, %c0_74] : memref<16x1xf32, #tpu.memory_space<vmem>>, vector<16x1xf32>
      tpu.vector_store %arg7[%c0_73, %c0_74], %82 {strides = array<i32>} : memref<16x1xf32, #tpu.memory_space<vmem>>, vector<16x1xf32>,
    } else {
    }
    %cst = arith.constant 0.000000e+00 : f32
    %3 = vector.broadcast %cst : f32 to vector<16x49xf32>
    %c0 = arith.constant 0 : index
    %c0_1 = arith.constant 0 : index
    %c0_2 = arith.constant 0 : index
    %4 = vector.load %arg1[%c0, %c0_1, %c0_2] : memref<1x8x65xbf16, #tpu.memory_space<vmem>>, vector<1x8x49xbf16>
    %5 = vector.shape_cast %4 : vector<1x8x49xbf16> to vector<8x49xbf16>
    %c0_3 = arith.constant 0 : index
    %c0_4 = arith.constant 0 : index
    %c0_5 = arith.constant 0 : index
    %6 = vector.load %arg2[%c0_3, %c0_4, %c0_5] : memref<9x16x8xbf16, #tpu.memory_space<vmem>>, vector<1x16x8xbf16>
    %7 = vector.shape_cast %6 : vector<1x16x8xbf16> to vector<16x8xbf16>
    %cst_6 = arith.constant dense<0.000000e+00> : vector<16x49xf32>
    %8 = tpu.matmul %7, %5, %cst_6 {dimension_numbers = #tpu.dot_dimension_numbers<[1], [0], [0], [1], [0, 0, 1, 1], [], []>} : vector<16x8xbf16>, vector<8x49xbf16>, vector<16x49xf32> -> vector<16x49xf32>
    %9 = arith.addf %3, %8 : vector<16x49xf32>
    %c0_7 = arith.constant 0 : index
    %c0_8 = arith.constant 0 : index
    %c1 = arith.constant 1 : index
    %10 = vector.load %arg1[%c0_7, %c0_8, %c1] : memref<1x8x65xbf16, #tpu.memory_space<vmem>>, vector<1x8x49xbf16>
    %11 = vector.shape_cast %10 : vector<1x8x49xbf16> to vector<8x49xbf16>
    %c1_9 = arith.constant 1 : index
    %c0_10 = arith.constant 0 : index
    %c0_11 = arith.constant 0 : index
    %12 = vector.load %arg2[%c1_9, %c0_10, %c0_11] : memref<9x16x8xbf16, #tpu.memory_space<vmem>>, vector<1x16x8xbf16>
    %13 = vector.shape_cast %12 : vector<1x16x8xbf16> to vector<16x8xbf16>
    %cst_12 = arith.constant dense<0.000000e+00> : vector<16x49xf32>
    %14 = tpu.matmul %13, %11, %cst_12 {dimension_numbers = #tpu.dot_dimension_numbers<[1], [0], [0], [1], [0, 0, 1, 1], [], []>} : vector<16x8xbf16>, vector<8x49xbf16>, vector<16x49xf32> -> vector<16x49xf32>
    %15 = arith.addf %9, %14 : vector<16x49xf32>
    %c0_13 = arith.constant 0 : index
    %c0_14 = arith.constant 0 : index
    %c2 = arith.constant 2 : index
    %16 = vector.load %arg1[%c0_13, %c0_14, %c2] : memref<1x8x65xbf16, #tpu.memory_space<vmem>>, vector<1x8x49xbf16>
    %17 = vector.shape_cast %16 : vector<1x8x49xbf16> to vector<8x49xbf16>
    %c2_15 = arith.constant 2 : index
    %c0_16 = arith.constant 0 : index
    %c0_17 = arith.constant 0 : index
    %18 = vector.load %arg2[%c2_15, %c0_16, %c0_17] : memref<9x16x8xbf16, #tpu.memory_space<vmem>>, vector<1x16x8xbf16>
    %19 = vector.shape_cast %18 : vector<1x16x8xbf16> to vector<16x8xbf16>
    %cst_18 = arith.constant dense<0.000000e+00> : vector<16x49xf32>
    %20 = tpu.matmul %19, %17, %cst_18 {dimension_numbers = #tpu.dot_dimension_numbers<[1], [0], [0], [1], [0, 0, 1, 1], [], []>} : vector<16x8xbf16>, vector<8x49xbf16>, vector<16x49xf32> -> vector<16x49xf32>
    %21 = arith.addf %15, %20 : vector<16x49xf32>
    %c0_19 = arith.constant 0 : index
    %c0_20 = arith.constant 0 : index
    %c7 = arith.constant 7 : index
    %22 = vector.load %arg1[%c0_19, %c0_20, %c7] : memref<1x8x65xbf16, #tpu.memory_space<vmem>>, vector<1x8x49xbf16>
    %23 = vector.shape_cast %22 : vector<1x8x49xbf16> to vector<8x49xbf16>
    %c3 = arith.constant 3 : index
    %c0_21 = arith.constant 0 : index
    %c0_22 = arith.constant 0 : index
    %24 = vector.load %arg2[%c3, %c0_21, %c0_22] : memref<9x16x8xbf16, #tpu.memory_space<vmem>>, vector<1x16x8xbf16>
    %25 = vector.shape_cast %24 : vector<1x16x8xbf16> to vector<16x8xbf16>
    %cst_23 = arith.constant dense<0.000000e+00> : vector<16x49xf32>
    %26 = tpu.matmul %25, %23, %cst_23 {dimension_numbers = #tpu.dot_dimension_numbers<[1], [0], [0], [1], [0, 0, 1, 1], [], []>} : vector<16x8xbf16>, vector<8x49xbf16>, vector<16x49xf32> -> vector<16x49xf32>
    %27 = arith.addf %21, %26 : vector<16x49xf32>
    %c0_24 = arith.constant 0 : index
    %c0_25 = arith.constant 0 : index
    %c8 = arith.constant 8 : index
    %28 = vector.load %arg1[%c0_24, %c0_25, %c8] : memref<1x8x65xbf16, #tpu.memory_space<vmem>>, vector<1x8x49xbf16>
    %29 = vector.shape_cast %28 : vector<1x8x49xbf16> to vector<8x49xbf16>
    %c4 = arith.constant 4 : index
    %c0_26 = arith.constant 0 : index
    %c0_27 = arith.constant 0 : index
    %30 = vector.load %arg2[%c4, %c0_26, %c0_27] : memref<9x16x8xbf16, #tpu.memory_space<vmem>>, vector<1x16x8xbf16>
    %31 = vector.shape_cast %30 : vector<1x16x8xbf16> to vector<16x8xbf16>
    %cst_28 = arith.constant dense<0.000000e+00> : vector<16x49xf32>
    %32 = tpu.matmul %31, %29, %cst_28 {dimension_numbers = #tpu.dot_dimension_numbers<[1], [0], [0], [1], [0, 0, 1, 1], [], []>} : vector<16x8xbf16>, vector<8x49xbf16>, vector<16x49xf32> -> vector<16x49xf32>
    %33 = arith.addf %27, %32 : vector<16x49xf32>
    %c0_29 = arith.constant 0 : index
    %c0_30 = arith.constant 0 : index
    %c9 = arith.constant 9 : index
    %34 = vector.load %arg1[%c0_29, %c0_30, %c9] : memref<1x8x65xbf16, #tpu.memory_space<vmem>>, vector<1x8x49xbf16>
    %35 = vector.shape_cast %34 : vector<1x8x49xbf16> to vector<8x49xbf16>
    %c5 = arith.constant 5 : index
    %c0_31 = arith.constant 0 : index
    %c0_32 = arith.constant 0 : index
    %36 = vector.load %arg2[%c5, %c0_31, %c0_32] : memref<9x16x8xbf16, #tpu.memory_space<vmem>>, vector<1x16x8xbf16>
    %37 = vector.shape_cast %36 : vector<1x16x8xbf16> to vector<16x8xbf16>
    %cst_33 = arith.constant dense<0.000000e+00> : vector<16x49xf32>
    %38 = tpu.matmul %37, %35, %cst_33 {dimension_numbers = #tpu.dot_dimension_numbers<[1], [0], [0], [1], [0, 0, 1, 1], [], []>} : vector<16x8xbf16>, vector<8x49xbf16>, vector<16x49xf32> -> vector<16x49xf32>
    %39 = arith.addf %33, %38 : vector<16x49xf32>
    %c0_34 = arith.constant 0 : index
    %c0_35 = arith.constant 0 : index
    %c14 = arith.constant 14 : index
    %40 = vector.load %arg1[%c0_34, %c0_35, %c14] : memref<1x8x65xbf16, #tpu.memory_space<vmem>>, vector<1x8x49xbf16>
    %41 = vector.shape_cast %40 : vector<1x8x49xbf16> to vector<8x49xbf16>
    %c6 = arith.constant 6 : index
    %c0_36 = arith.constant 0 : index
    %c0_37 = arith.constant 0 : index
    %42 = vector.load %arg2[%c6, %c0_36, %c0_37] : memref<9x16x8xbf16, #tpu.memory_space<vmem>>, vector<1x16x8xbf16>
    %43 = vector.shape_cast %42 : vector<1x16x8xbf16> to vector<16x8xbf16>
    %cst_38 = arith.constant dense<0.000000e+00> : vector<16x49xf32>
    %44 = tpu.matmul %43, %41, %cst_38 {dimension_numbers = #tpu.dot_dimension_numbers<[1], [0], [0], [1], [0, 0, 1, 1], [], []>} : vector<16x8xbf16>, vector<8x49xbf16>, vector<16x49xf32> -> vector<16x49xf32>
    %45 = arith.addf %39, %44 : vector<16x49xf32>
    %c0_39 = arith.constant 0 : index
    %c0_40 = arith.constant 0 : index
    %c15 = arith.constant 15 : index
    %46 = vector.load %arg1[%c0_39, %c0_40, %c15] : memref<1x8x65xbf16, #tpu.memory_space<vmem>>, vector<1x8x49xbf16>
    %47 = vector.shape_cast %46 : vector<1x8x49xbf16> to vector<8x49xbf16>
    %c7_41 = arith.constant 7 : index
    %c0_42 = arith.constant 0 : index
    %c0_43 = arith.constant 0 : index
    %48 = vector.load %arg2[%c7_41, %c0_42, %c0_43] : memref<9x16x8xbf16, #tpu.memory_space<vmem>>, vector<1x16x8xbf16>
    %49 = vector.shape_cast %48 : vector<1x16x8xbf16> to vector<16x8xbf16>
    %cst_44 = arith.constant dense<0.000000e+00> : vector<16x49xf32>
    %50 = tpu.matmul %49, %47, %cst_44 {dimension_numbers = #tpu.dot_dimension_numbers<[1], [0], [0], [1], [0, 0, 1, 1], [], []>} : vector<16x8xbf16>, vector<8x49xbf16>, vector<16x49xf32> -> vector<16x49xf32>
    %51 = arith.addf %45, %50 : vector<16x49xf32>
    %c0_45 = arith.constant 0 : index
    %c0_46 = arith.constant 0 : index
    %c16 = arith.constant 16 : index
    %52 = vector.load %arg1[%c0_45, %c0_46, %c16] : memref<1x8x65xbf16, #tpu.memory_space<vmem>>, vector<1x8x49xbf16>
    %53 = vector.shape_cast %52 : vector<1x8x49xbf16> to vector<8x49xbf16>
    %c8_47 = arith.constant 8 : index
    %c0_48 = arith.constant 0 : index
    %c0_49 = arith.constant 0 : index
    %54 = vector.load %arg2[%c8_47, %c0_48, %c0_49] : memref<9x16x8xbf16, #tpu.memory_space<vmem>>, vector<1x16x8xbf16>
    %55 = vector.shape_cast %54 : vector<1x16x8xbf16> to vector<16x8xbf16>
    %cst_50 = arith.constant dense<0.000000e+00> : vector<16x49xf32>
    %56 = tpu.matmul %55, %53, %cst_50 {dimension_numbers = #tpu.dot_dimension_numbers<[1], [0], [0], [1], [0, 0, 1, 1], [], []>} : vector<16x8xbf16>, vector<8x49xbf16>, vector<16x49xf32> -> vector<16x49xf32>
    %57 = arith.addf %51, %56 : vector<16x49xf32>
    %c0_51 = arith.constant 0 : index
    %c0_52 = arith.constant 0 : index
    %58 = vector.load %arg3[%c0_51, %c0_52] : memref<16x1xf32, #tpu.memory_space<vmem>>, vector<16x1xf32>
    %59 = vector.broadcast %58 : vector<16x1xf32> to vector<16x49xf32>
    %60 = arith.addf %57, %59 : vector<16x49xf32>
    %cst_53 = arith.constant 0.000000e+00 : f32
    %61 = vector.broadcast %cst_53 : f32 to vector<16x49xf32>
    %62 = arith.maximumf %60, %61 : vector<16x49xf32>
    %c0_54 = arith.constant 0 : index
    %c0_55 = arith.constant 0 : index
    %c0_56 = arith.constant 0 : index
    %63 = vector.load %arg5[%c0_54, %c0_55, %c0_56] : memref<1x16x49xf32, #tpu.memory_space<vmem>>, vector<1x16x49xf32>
    %64 = vector.shape_cast %63 : vector<1x16x49xf32> to vector<16x49xf32>
    %65 = vector.shape_cast %62 : vector<16x49xf32> to vector<1x16x49xf32>
    tpu.vector_store %arg5[%c0_54, %c0_55, %c0_56], %65 {strides = array<i32>} : memref<1x16x49xf32, #tpu.memory_space<vmem>>, vector<1x16x49xf32>,
    %c0_57 = arith.constant 0 : index
    %c0_58 = arith.constant 0 : index
    %66 = vector.load %arg4[%c0_57, %c0_58] : memref<1x49xf32, #tpu.memory_space<vmem>>, vector<1x49xf32>
    %67 = vector.broadcast %66 : vector<1x49xf32> to vector<16x49xf32>
    %68 = arith.mulf %62, %67 : vector<16x49xf32>
    %c0_59 = arith.constant 0 : index
    %c0_60 = arith.constant 0 : index
    %69 = vector.load %arg6[%c0_59, %c0_60] : memref<16x1xf32, #tpu.memory_space<vmem>>, vector<16x1xf32>
    %cst_61 = arith.constant dense<0.000000e+00> : vector<16xf32>
    %70 = vector.multi_reduction <add>, %68, %cst_61 [1] : vector<16x49xf32> to vector<16xf32>
    %71 = vector.shape_cast %70 : vector<16xf32> to vector<16x1xf32>
    %72 = arith.addf %69, %71 : vector<16x1xf32>
    %c0_62 = arith.constant 0 : index
    %c0_63 = arith.constant 0 : index
    %73 = vector.load %arg6[%c0_62, %c0_63] : memref<16x1xf32, #tpu.memory_space<vmem>>, vector<16x1xf32>
    tpu.vector_store %arg6[%c0_62, %c0_63], %72 {strides = array<i32>} : memref<16x1xf32, #tpu.memory_space<vmem>>, vector<16x1xf32>,
    %c0_64 = arith.constant 0 : index
    %c0_65 = arith.constant 0 : index
    %74 = vector.load %arg7[%c0_64, %c0_65] : memref<16x1xf32, #tpu.memory_space<vmem>>, vector<16x1xf32>
    %75 = arith.mulf %68, %62 : vector<16x49xf32>
    %cst_66 = arith.constant dense<0.000000e+00> : vector<16xf32>
    %76 = vector.multi_reduction <add>, %75, %cst_66 [1] : vector<16x49xf32> to vector<16xf32>
    %77 = vector.shape_cast %76 : vector<16xf32> to vector<16x1xf32>
    %78 = arith.addf %74, %77 : vector<16x1xf32>
    %c0_67 = arith.constant 0 : index
    %c0_68 = arith.constant 0 : index
    %79 = vector.load %arg7[%c0_67, %c0_68] : memref<16x1xf32, #tpu.memory_space<vmem>>, vector<16x1xf32>
    tpu.vector_store %arg7[%c0_67, %c0_68], %78 {strides = array<i32>} : memref<16x1xf32, #tpu.memory_space<vmem>>, vector<16x1xf32>,
    return
  }
  func.func @transform_0(%arg0: i32) -> (i32, i32, i32) {
    %c0_i32 = arith.constant 0 : i32
    %c0_i32_0 = arith.constant 0 : i32
    %c0_i32_1 = arith.constant 0 : i32
    return %arg0, %c0_i32, %c0_i32_0 : i32, i32, i32
  }
  func.func @transform_1(%arg0: i32) -> (i32, i32, i32) {
    %c0_i32 = arith.constant 0 : i32
    %c0_i32_0 = arith.constant 0 : i32
    %c0_i32_1 = arith.constant 0 : i32
    %c0_i32_2 = arith.constant 0 : i32
    return %c0_i32, %c0_i32_0, %c0_i32_1 : i32, i32, i32
  }
  func.func @transform_2(%arg0: i32) -> (i32, i32) {
    %c0_i32 = arith.constant 0 : i32
    %c0_i32_0 = arith.constant 0 : i32
    %c0_i32_1 = arith.constant 0 : i32
    return %c0_i32, %c0_i32_0 : i32, i32
  }
  func.func @transform_3(%arg0: i32) -> (i32, i32) {
    %c0_i32 = arith.constant 0 : i32
    %c0_i32_0 = arith.constant 0 : i32
    %c0_i32_1 = arith.constant 0 : i32
    return %c0_i32, %c0_i32_0 : i32, i32
  }
  func.func @transform_4(%arg0: i32) -> (i32, i32, i32) {
    %c0_i32 = arith.constant 0 : i32
    %c0_i32_0 = arith.constant 0 : i32
    %c0_i32_1 = arith.constant 0 : i32
    return %arg0, %c0_i32, %c0_i32_0 : i32, i32, i32
  }
  func.func @transform_5(%arg0: i32) -> (i32, i32) {
    %c0_i32 = arith.constant 0 : i32
    %c0_i32_0 = arith.constant 0 : i32
    %c0_i32_1 = arith.constant 0 : i32
    return %c0_i32, %c0_i32_0 : i32, i32
  }
  func.func @transform_6(%arg0: i32) -> (i32, i32) {
    %c0_i32 = arith.constant 0 : i32
    %c0_i32_0 = arith.constant 0 : i32
    %c0_i32_1 = arith.constant 0 : i32
    return %c0_i32, %c0_i32_0 : i32, i32
  }
}

module attributes {stable_mosaic.version = 11 : i64} {
  func.func @bn_rowpool_kernel(%arg0: i32, %arg1: memref<1x16x7x7xf32, #tpu.memory_space<vmem>>, %arg2: memref<1x16x1x1xf32, #tpu.memory_space<vmem>>, %arg3: memref<1x16x1x1xf32, #tpu.memory_space<vmem>>, %arg4: memref<1x16x2x7xf32, #tpu.memory_space<vmem>>) attributes {dimension_semantics = [#tpu.dimension_semantics<parallel>], iteration_bounds = array<i64: 2>, scalar_prefetch = 0 : i64, scratch_operands = 0 : i64, tpu.core_type = #tpu.core_type<tc>, window_params = [{transform_indices = @transform_0, window_bounds = array<i64: 1, 16, 7, 7>}, {pipeline_mode = #tpu.pipeline_mode<synchronous>, transform_indices = @transform_1, window_bounds = array<i64: 1, 16, 1, 1>}, {pipeline_mode = #tpu.pipeline_mode<synchronous>, transform_indices = @transform_2, window_bounds = array<i64: 1, 16, 1, 1>}, {transform_indices = @transform_3, window_bounds = array<i64: 1, 16, 2, 7>}]} {
    %c0 = arith.constant 0 : index
    %c0_0 = arith.constant 0 : index
    %c0_1 = arith.constant 0 : index
    %c0_2 = arith.constant 0 : index
    %0 = vector.load %arg2[%c0, %c0_0, %c0_1, %c0_2] : memref<1x16x1x1xf32, #tpu.memory_space<vmem>>, vector<1x16x1x1xf32>
    %c0_3 = arith.constant 0 : index
    %c0_4 = arith.constant 0 : index
    %c0_5 = arith.constant 0 : index
    %c0_6 = arith.constant 0 : index
    %1 = vector.load %arg3[%c0_3, %c0_4, %c0_5, %c0_6] : memref<1x16x1x1xf32, #tpu.memory_space<vmem>>, vector<1x16x1x1xf32>
    %c0_7 = arith.constant 0 : index
    %c0_8 = arith.constant 0 : index
    %c0_9 = arith.constant 0 : index
    %c0_10 = arith.constant 0 : index
    %2 = tpu.strided_load %arg1[%c0_7, %c0_8, %c0_9, %c0_10] {strides = array<i32: 1, 1, 2, 1>} : memref<1x16x7x7xf32, #tpu.memory_space<vmem>>, vector<1x16x2x7xf32>
    %3 = vector.broadcast %0 : vector<1x16x1x1xf32> to vector<1x16x2x7xf32>
    %4 = arith.mulf %2, %3 : vector<1x16x2x7xf32>
    %5 = vector.broadcast %1 : vector<1x16x1x1xf32> to vector<1x16x2x7xf32>
    %6 = arith.addf %4, %5 : vector<1x16x2x7xf32>
    %c0_11 = arith.constant 0 : index
    %c0_12 = arith.constant 0 : index
    %c1 = arith.constant 1 : index
    %c0_13 = arith.constant 0 : index
    %7 = tpu.strided_load %arg1[%c0_11, %c0_12, %c1, %c0_13] {strides = array<i32: 1, 1, 2, 1>} : memref<1x16x7x7xf32, #tpu.memory_space<vmem>>, vector<1x16x2x7xf32>
    %8 = vector.broadcast %0 : vector<1x16x1x1xf32> to vector<1x16x2x7xf32>
    %9 = arith.mulf %7, %8 : vector<1x16x2x7xf32>
    %10 = vector.broadcast %1 : vector<1x16x1x1xf32> to vector<1x16x2x7xf32>
    %11 = arith.addf %9, %10 : vector<1x16x2x7xf32>
    %12 = arith.maximumf %6, %11 : vector<1x16x2x7xf32>
    %c0_14 = arith.constant 0 : index
    %c0_15 = arith.constant 0 : index
    %c0_16 = arith.constant 0 : index
    %c0_17 = arith.constant 0 : index
    %13 = vector.load %arg4[%c0_14, %c0_15, %c0_16, %c0_17] : memref<1x16x2x7xf32, #tpu.memory_space<vmem>>, vector<1x16x2x7xf32>
    tpu.vector_store %arg4[%c0_14, %c0_15, %c0_16, %c0_17], %12 {strides = array<i32>} : memref<1x16x2x7xf32, #tpu.memory_space<vmem>>, vector<1x16x2x7xf32>,
    return
  }
  func.func @transform_0(%arg0: i32) -> (i32, i32, i32, i32) {
    %c0_i32 = arith.constant 0 : i32
    %c0_i32_0 = arith.constant 0 : i32
    %c0_i32_1 = arith.constant 0 : i32
    %c0_i32_2 = arith.constant 0 : i32
    return %arg0, %c0_i32, %c0_i32_0, %c0_i32_1 : i32, i32, i32, i32
  }
  func.func @transform_1(%arg0: i32) -> (i32, i32, i32, i32) {
    %c0_i32 = arith.constant 0 : i32
    %c0_i32_0 = arith.constant 0 : i32
    %c0_i32_1 = arith.constant 0 : i32
    %c0_i32_2 = arith.constant 0 : i32
    %c0_i32_3 = arith.constant 0 : i32
    return %c0_i32, %c0_i32_0, %c0_i32_1, %c0_i32_2 : i32, i32, i32, i32
  }
  func.func @transform_2(%arg0: i32) -> (i32, i32, i32, i32) {
    %c0_i32 = arith.constant 0 : i32
    %c0_i32_0 = arith.constant 0 : i32
    %c0_i32_1 = arith.constant 0 : i32
    %c0_i32_2 = arith.constant 0 : i32
    %c0_i32_3 = arith.constant 0 : i32
    return %c0_i32, %c0_i32_0, %c0_i32_1, %c0_i32_2 : i32, i32, i32, i32
  }
  func.func @transform_3(%arg0: i32) -> (i32, i32, i32, i32) {
    %c0_i32 = arith.constant 0 : i32
    %c0_i32_0 = arith.constant 0 : i32
    %c0_i32_1 = arith.constant 0 : i32
    %c0_i32_2 = arith.constant 0 : i32
    return %arg0, %c0_i32, %c0_i32_0, %c0_i32_1 : i32, i32, i32, i32
  }
}

module attributes {stable_mosaic.version = 11 : i64} {
  func.func @ann_kernel(%arg0: memref<2x64xbf16, #tpu.memory_space<vmem>>, %arg1: memref<64x32xbf16, #tpu.memory_space<vmem>>, %arg2: memref<1x32xf32, #tpu.memory_space<vmem>>, %arg3: memref<32x10xbf16, #tpu.memory_space<vmem>>, %arg4: memref<1x10xf32, #tpu.memory_space<vmem>>, %arg5: memref<2x10xf32, #tpu.memory_space<vmem>>) attributes {dimension_semantics = [], scalar_prefetch = 0 : i64, scratch_operands = 0 : i64, tpu.core_type = #tpu.core_type<tc>} {
    %c0 = arith.constant 0 : index
    %c0_0 = arith.constant 0 : index
    %0 = vector.load %arg0[%c0, %c0_0] : memref<2x64xbf16, #tpu.memory_space<vmem>>, vector<2x64xbf16>
    %c0_1 = arith.constant 0 : index
    %c0_2 = arith.constant 0 : index
    %1 = vector.load %arg1[%c0_1, %c0_2] : memref<64x32xbf16, #tpu.memory_space<vmem>>, vector<64x32xbf16>
    %cst = arith.constant dense<0.000000e+00> : vector<2x32xf32>
    %2 = tpu.matmul %0, %1, %cst {dimension_numbers = #tpu.dot_dimension_numbers<[1], [0], [0], [1], [0, 0, 1, 1], [], []>} : vector<2x64xbf16>, vector<64x32xbf16>, vector<2x32xf32> -> vector<2x32xf32>
    %c0_3 = arith.constant 0 : index
    %c0_4 = arith.constant 0 : index
    %3 = vector.load %arg2[%c0_3, %c0_4] : memref<1x32xf32, #tpu.memory_space<vmem>>, vector<1x32xf32>
    %4 = vector.broadcast %3 : vector<1x32xf32> to vector<2x32xf32>
    %5 = arith.addf %2, %4 : vector<2x32xf32>
    %cst_5 = arith.constant 0.000000e+00 : f32
    %6 = vector.broadcast %cst_5 : f32 to vector<2x32xf32>
    %7 = arith.maximumf %5, %6 : vector<2x32xf32>
    %8 = arith.truncf %7 : vector<2x32xf32> to vector<2x32xbf16>
    %c0_6 = arith.constant 0 : index
    %c0_7 = arith.constant 0 : index
    %9 = vector.load %arg3[%c0_6, %c0_7] : memref<32x10xbf16, #tpu.memory_space<vmem>>, vector<32x10xbf16>
    %cst_8 = arith.constant dense<0.000000e+00> : vector<2x10xf32>
    %10 = tpu.matmul %8, %9, %cst_8 {dimension_numbers = #tpu.dot_dimension_numbers<[1], [0], [0], [1], [0, 0, 1, 1], [], []>} : vector<2x32xbf16>, vector<32x10xbf16>, vector<2x10xf32> -> vector<2x10xf32>
    %c0_9 = arith.constant 0 : index
    %c0_10 = arith.constant 0 : index
    %11 = vector.load %arg4[%c0_9, %c0_10] : memref<1x10xf32, #tpu.memory_space<vmem>>, vector<1x10xf32>
    %12 = vector.broadcast %11 : vector<1x10xf32> to vector<2x10xf32>
    %13 = arith.addf %10, %12 : vector<2x10xf32>
    %c0_11 = arith.constant 0 : index
    %c0_12 = arith.constant 0 : index
    %14 = vector.load %arg5[%c0_11, %c0_12] : memref<2x10xf32, #tpu.memory_space<vmem>>, vector<2x10xf32>
    tpu.vector_store %arg5[%c0_11, %c0_12], %13 {strides = array<i32>} : memref<2x10xf32, #tpu.memory_space<vmem>>, vector<2x10xf32>,
    return
  }
}

</mosaic_0001>

<llo_original>
// kernel: baseline_cnn_forward.6
$region0: #{baseline_cnn_forward.6}
  #allocation0 [shape = 'u32[]', space=smem, size = 0x4, offset = 0x4, fixed_abs, tag = 'smem constant byte address 0x4 - core index']
  #allocation1 [shape = 'u32[144,128]{1,0:T(1,128)}', space=vmem, size = 0x12000, scoped, tag = 'internal scratch']
  %s0 = inlined_call_operand.vmem [shape: f32[2,8,16,16], index: 0, kind: input, shape index: {}]
  %s1 = inlined_call_operand.vmem [shape: f32[1,8,1,1], index: 1, kind: input, shape index: {}]
  %s2 = inlined_call_operand.vmem [shape: f32[1,8,1,1], index: 2, kind: input, shape index: {}]
  %s3 = inlined_call_operand.vmem [shape: f32[2,8,7,16], index: 3, kind: output, shape index: {}]
  %s4 = sld [smem:[#allocation0]]
  $region45: #{baseline_cnn_forward.6} parent=0
    _
  %s6 = ssub.s32 1, %s4
  %s7 = scalar_select 0, %s6, %s4
  loop: start=0, step=1, limit=4
  $region2: #{baseline_cnn_forward.6} parent=0 // loop_pre_header
    _
  $region3: #{baseline_cnn_forward.6} parent=0 // loop_header
    %s9 = sphi 0, %s13
    %p10 = scmp.ge.s32.totalorder %s9, 4
    %s19 = sphi 0, %s21
    %s22 = sphi 0, %s19
    %s23 = sphi 0, %s22
    %s39 = sphi 0, %s23
    %s43 = sphi 0, %s43
    %s45 = sphi 0, %s43
    %s46 = sphi 0, %s45
    %s60 = sphi 0, %s46
    %s64 = sphi 0, %s64
    %s66 = sphi 0, %s64
    %s67 = sphi 0, %s66
    %s81 = sphi 0, %s67
    %s87 = sphi 0, %s89
    %s90 = sphi 0, %s87
    %s91 = sphi 0, %s90
    %s107 = sphi 0, %s91
  $region4: #{baseline_cnn_forward.6} parent=0 // loop_header_branch
    %12 = sbr.rel (%p10) target = $region8
  $region5: #{baseline_cnn_forward.6} parent=0 // loop_body
    %s14 = ssub.s32 %s9, 1
    %s15 = ssub.s32 %s9, 2
    %s16 = sadd.s32 %s9, 1
    %s17 = ssub.s32 %s9, %s16
    %p18 = scmp.eq.s32.totalorder %s17, 0
    %s20 = sadd.s32 %s19, 1
    %s21 = scalar_select %p18, %s19, %s20
    %p24 = pneg %p18
    %p25 = scmp.eq.s32.totalorder %s9, 1
    %p26 = por %p24, %p25
    %p27 = scmp.ne.s32.totalorder %s19, %s22
    %p28 = scmp.eq.s32.totalorder %s9, 0
    %p29 = por %p27, %p28
    %p30 = scmp.ne.s32.totalorder %s19, %s22
    %p31 = scmp.eq.s32.totalorder %s14, 1
    %p32 = por %p30, %p31
    %p33 = scmp.ne.s32.totalorder %s22, %s23
    %p34 = scmp.eq.s32.totalorder %s14, 0
    %p35 = por %p33, %p34
    %p36 = scmp.ne.s32.totalorder %s22, %s23
    %p37 = scmp.eq.s32.totalorder %s15, 1
    %p38 = por %p36, %p37
    %p40 = scmp.ne.s32.totalorder %s23, %s39
    %p41 = scmp.eq.s32.totalorder %s15, 0
    %p42 = por %p40, %p41
    %s44 = sadd.s32 %s43, 1
    %p47 = scmp.eq.s32.totalorder %s9, 1
    %p48 = scmp.ne.s32.totalorder %s43, %s45
    %p49 = scmp.eq.s32.totalorder %s9, 0
    %p50 = por %p48, %p49
    %p51 = scmp.ne.s32.totalorder %s43, %s45
    %p52 = scmp.eq.s32.totalorder %s14, 1
    %p53 = por %p51, %p52
    %p54 = scmp.ne.s32.totalorder %s45, %s46
    %p55 = scmp.eq.s32.totalorder %s14, 0
    %p56 = por %p54, %p55
    %p57 = scmp.ne.s32.totalorder %s45, %s46
    %p58 = scmp.eq.s32.totalorder %s15, 1
    %p59 = por %p57, %p58
    %p61 = scmp.ne.s32.totalorder %s46, %s60
    %p62 = scmp.eq.s32.totalorder %s15, 0
    %p63 = por %p61, %p62
    %s65 = sadd.s32 %s64, 1
    %p68 = scmp.eq.s32.totalorder %s9, 1
    %p69 = scmp.ne.s32.totalorder %s64, %s66
    %p70 = scmp.eq.s32.totalorder %s9, 0
    %p71 = por %p69, %p70
    %p72 = scmp.ne.s32.totalorder %s64, %s66
    %p73 = scmp.eq.s32.totalorder %s14, 1
    %p74 = por %p72, %p73
    %p75 = scmp.ne.s32.totalorder %s66, %s67
    %p76 = scmp.eq.s32.totalorder %s14, 0
    %p77 = por %p75, %p76
    %p78 = scmp.ne.s32.totalorder %s66, %s67
    %p79 = scmp.eq.s32.totalorder %s15, 1
    %p80 = por %p78, %p79
    %p82 = scmp.ne.s32.totalorder %s67, %s81
    %p83 = scmp.eq.s32.totalorder %s15, 0
    %p84 = por %p82, %p83
    %s85 = ssub.s32 %s9, %s16
    %p86 = scmp.eq.s32.totalorder %s85, 0
    %s88 = sadd.s32 %s87, 1
    %s89 = scalar_select %p86, %s87, %s88
    %p92 = pneg %p86
    %p93 = scmp.eq.s32.totalorder %s9, 1
    %p94 = por %p92, %p93
    %p95 = scmp.ne.s32.totalorder %s87, %s90
    %p96 = scmp.eq.s32.totalorder %s9, 0
    %p97 = por %p95, %p96
    %p98 = scmp.ne.s32.totalorder %s87, %s90
    %p99 = scmp.eq.s32.totalorder %s14, 1
    %p100 = por %p98, %p99
    %p101 = scmp.ne.s32.totalorder %s90, %s91
    %p102 = scmp.eq.s32.totalorder %s14, 0
    %p103 = por %p101, %p102
    %p104 = scmp.ne.s32.totalorder %s90, %s91
    %p105 = scmp.eq.s32.totalorder %s15, 1
    %p106 = por %p104, %p105
    %p108 = scmp.ne.s32.totalorder %s91, %s107
    %p109 = scmp.eq.s32.totalorder %s15, 0
    %p110 = por %p108, %p109
    %p111 = scmp.le.s32.totalorder 1, %s9
    %p112 = scmp.lt.s32.totalorder %s9, 3
    %p113 = pnand %p111, %p112
    %p114 = pneg %p113
    // Predicated region
    $region9: #{baseline_cnn_forward.6} parent=5 // pred_check
      _
    $region10: #{baseline_cnn_forward.6} parent=5 // pred_check_branch
      %116 = sbr.rel (%p113) target = $region12
    $region11: #{baseline_cnn_forward.6} parent=5 // pred_region
      %s117 = ssub.s32 %s9, 1
      // Predicated region
      $region13: #{baseline_cnn_forward.6} parent=11 // pred_check
        %p118 = pneg %p56
      $region14: #{baseline_cnn_forward.6} parent=11 // pred_check_branch
        %120 = sbr.rel (%p118) target = $region16
      $region15: #{baseline_cnn_forward.6} parent=11 // pred_region
        _
      $region16: #{baseline_cnn_forward.6} parent=11 // pred_fallthru
        _
      // Predicated region
      $region17: #{baseline_cnn_forward.6} parent=11 // pred_check
        %p121 = pneg %p77
      $region18: #{baseline_cnn_forward.6} parent=11 // pred_check_branch
        %123 = sbr.rel (%p121) target = $region20
      $region19: #{baseline_cnn_forward.6} parent=11 // pred_region
        _
      $region20: #{baseline_cnn_forward.6} parent=11 // pred_fallthru
        _
    $region12: #{baseline_cnn_forward.6} parent=5 // pred_fallthru
      _
    %p124 = scmp.lt.s32.totalorder %s9, 2
    // Predicated region
    $region21: #{baseline_cnn_forward.6} parent=5 // pred_check
      %p125 = pneg %p124
    $region22: #{baseline_cnn_forward.6} parent=5 // pred_check_branch
      %127 = sbr.rel (%p125) target = $region24
    $region23: #{baseline_cnn_forward.6} parent=5 // pred_region
      // Predicated region
      $region25: #{baseline_cnn_forward.6} parent=23 // pred_check
        %p128 = pneg %p29
      $region26: #{baseline_cnn_forward.6} parent=23 // pred_check_branch
        %130 = sbr.rel (%p128) target = $region28
      $region27: #{baseline_cnn_forward.6} parent=23 // pred_region
        %p131 = scmp.lt.s32.totalorder %s9, 1
        %s132 = scalar_select %p131, %s9, 1
        %s133 = smul.addr %s132, 16
        %s134 = smul.addr %s133, 8
        %s135 = scalar_lea.vmem %s0, %s134
      $region28: #{baseline_cnn_forward.6} parent=23 // pred_fallthru
        _
    $region24: #{baseline_cnn_forward.6} parent=5 // pred_fallthru
      _
    %p136 = scmp.le.s32.totalorder 1, %s9
    %p137 = scmp.lt.s32.totalorder %s9, 3
    %p138 = pnand %p136, %p137
    %p139 = pneg %p138
    // Predicated region
    $region29: #{baseline_cnn_forward.6} parent=5 // pred_check
      _
    $region30: #{baseline_cnn_forward.6} parent=5 // pred_check_branch
      %141 = sbr.rel (%p138) target = $region32
    $region31: #{baseline_cnn_forward.6} parent=5 // pred_region
      %s142 = ssub.s32 %s9, 1
      %p143 = scmp.lt.s32.totalorder %s14, 1
      %s144 = scalar_select %p143, %s14, 1
      %s145 = smul.addr %s144, 16
      %s146 = smul.addr %s145, 8
      %s147 = scalar_lea.vmem %s0, %s146
      %p148 = pneg %p35
      %p149 = pneg %p32
      %p150 = pneg %p56
      %p151 = pneg %p53
      %p152 = pneg %p77
      %p153 = pneg %p74
      %p154 = pneg %p103
      %p155 = pneg %p100
      %p156 = scmp.lt.s32.totalorder %s14, 1
      %s157 = scalar_select %p156, %s14, 1
      %s158 = smul.addr %s157, 8
      %s159 = smul.addr %s158, 8
      %s160 = scalar_lea.vmem %s3, %s159
      %p161 = scmp.lt.s32.totalorder %s14, 1
      %s162 = scalar_select %p161, %s14, 1
      %s163 = smul.addr %s162, 16
      %s164 = smul.addr %s163, 8
      %s165 = scalar_lea.vmem %s0, %s164
      %p166 = scmp.lt.s32.totalorder %s14, 1
      %s167 = scalar_select %p166, %s14, 1
      %s168 = smul.addr %s167, 8
      %s169 = smul.addr %s168, 8
      %s170 = scalar_lea.vmem %s3, %s169
      %v171 = vld [vmem:[%s1] sm:$0x1]
      %v172 = vld [vmem:[%s1 + $0x1] sm:$0x1]
      %v173 = vld [vmem:[%s1 + $0x2] sm:$0x1]
      %v174 = vld [vmem:[%s1 + $0x3] sm:$0x1]
      %v175 = vld [vmem:[%s1 + $0x4] sm:$0x1]
      %v176 = vld [vmem:[%s1 + $0x5] sm:$0x1]
      %v177 = vld [vmem:[%s1 + $0x6] sm:$0x1]
      %v178 = vld [vmem:[%s1 + $0x7] sm:$0x1]
      %v179 = vld [vmem:[%s2] sm:$0x1]
      %v180 = vld [vmem:[%s2 + $0x1] sm:$0x1]
      %v181 = vld [vmem:[%s2 + $0x2] sm:$0x1]
      %v182 = vld [vmem:[%s2 + $0x3] sm:$0x1]
      %v183 = vld [vmem:[%s2 + $0x4] sm:$0x1]
      %v184 = vld [vmem:[%s2 + $0x5] sm:$0x1]
      %v185 = vld [vmem:[%s2 + $0x6] sm:$0x1]
      %v186 = vld [vmem:[%s2 + $0x7] sm:$0x1]
      %v187 = vld [vmem:[%s165] ss:$2 sm:$0x7f]
      %s188 = scalar_lea.vmem %s165, 16
      %v189 = vld [vmem:[%s188] ss:$2 sm:$0x7f]
      %s190 = scalar_lea.vmem %s165, 32
      %v191 = vld [vmem:[%s190] ss:$2 sm:$0x7f]
      %s192 = scalar_lea.vmem %s165, 48
      %v193 = vld [vmem:[%s192] ss:$2 sm:$0x7f]
      %s194 = scalar_lea.vmem %s165, 64
      %v195 = vld [vmem:[%s194] ss:$2 sm:$0x7f]
      %s196 = scalar_lea.vmem %s165, 80
      %v197 = vld [vmem:[%s196] ss:$2 sm:$0x7f]
      %s198 = scalar_lea.vmem %s165, 96
      %v199 = vld [vmem:[%s198] ss:$2 sm:$0x7f]
      %s200 = scalar_lea.vmem %s165, 112
      %v201 = vld [vmem:[%s200] ss:$2 sm:$0x7f]
      %v210 = vlaneseq
      %v211 = vshrl.u32 %v210, 7
      %v212 = vsub.s32 0, %v211
      %v213 = vrot.slane %v171, %v212
      %v214 = vlaneseq
      %v215 = vshrl.u32 %v214, 7
      %v216 = vsub.s32 0, %v215
      %v217 = vrot.slane %v172, %v216
      %v218 = vlaneseq
      %v219 = vshrl.u32 %v218, 7
      %v220 = vsub.s32 0, %v219
      %v221 = vrot.slane %v173, %v220
      %v222 = vlaneseq
      %v223 = vshrl.u32 %v222, 7
      %v224 = vsub.s32 0, %v223
      %v225 = vrot.slane %v174, %v224
      %v226 = vlaneseq
      %v227 = vshrl.u32 %v226, 7
      %v228 = vsub.s32 0, %v227
      %v229 = vrot.slane %v175, %v228
      %v230 = vlaneseq
      %v231 = vshrl.u32 %v230, 7
      %v232 = vsub.s32 0, %v231
      %v233 = vrot.slane %v176, %v232
      %v234 = vlaneseq
      %v235 = vshrl.u32 %v234, 7
      %v236 = vsub.s32 0, %v235
      %v237 = vrot.slane %v177, %v236
      %v238 = vlaneseq
      %v239 = vshrl.u32 %v238, 7
      %v240 = vsub.s32 0, %v239
      %v241 = vrot.slane %v178, %v240
      %242 = vset.pattern.permute.xlu0 0
      %243 = vperm.xlu0 %242, %v213
      %v244 = vpop.permute.xlu0 %243
      %246 = vset.pattern.permute.xlu0 0
      %247 = vperm.xlu0 %246, %v217
      %v248 = vpop.permute.xlu0 %247
      %250 = vset.pattern.permute.xlu0 0
      %251 = vperm.xlu0 %250, %v221
      %v252 = vpop.permute.xlu0 %251
      %254 = vset.pattern.permute.xlu0 0
      %255 = vperm.xlu0 %254, %v225
      %v256 = vpop.permute.xlu0 %255
      %258 = vset.pattern.permute.xlu0 0
      %259 = vperm.xlu0 %258, %v229
      %v260 = vpop.permute.xlu0 %259
      %262 = vset.pattern.permute.xlu0 0
      %263 = vperm.xlu0 %262, %v233
      %v264 = vpop.permute.xlu0 %263
      %266 = vset.pattern.permute.xlu0 0
      %267 = vperm.xlu0 %266, %v237
      %v268 = vpop.permute.xlu0 %267
      %270 = vset.pattern.permute.xlu0 0
      %271 = vperm.xlu0 %270, %v241
      %v272 = vpop.permute.xlu0 %271
      %v274 = vmul.f32 %v187, %v244
      %v275 = vmul.f32 %v189, %v248
      %v276 = vmul.f32 %v191, %v252
      %v277 = vmul.f32 %v193, %v256
      %v278 = vmul.f32 %v195, %v260
      %v279 = vmul.f32 %v197, %v264
      %v280 = vmul.f32 %v199, %v268
      %v281 = vmul.f32 %v201, %v272
      %v290 = vlaneseq
      %v291 = vshrl.u32 %v290, 7
      %v292 = vsub.s32 0, %v291
      %v293 = vrot.slane %v179, %v292
      %v294 = vlaneseq
      %v295 = vshrl.u32 %v294, 7
      %v296 = vsub.s32 0, %v295
      %v297 = vrot.slane %v180, %v296
      %v298 = vlaneseq
      %v299 = vshrl.u32 %v298, 7
      %v300 = vsub.s32 0, %v299
      %v301 = vrot.slane %v181, %v300
      %v302 = vlaneseq
      %v303 = vshrl.u32 %v302, 7
      %v304 = vsub.s32 0, %v303
      %v305 = vrot.slane %v182, %v304
      %v306 = vlaneseq
      %v307 = vshrl.u32 %v306, 7
      %v308 = vsub.s32 0, %v307
      %v309 = vrot.slane %v183, %v308
      %v310 = vlaneseq
      %v311 = vshrl.u32 %v310, 7
      %v312 = vsub.s32 0, %v311
      %v313 = vrot.slane %v184, %v312
      %v314 = vlaneseq
      %v315 = vshrl.u32 %v314, 7
      %v316 = vsub.s32 0, %v315
      %v317 = vrot.slane %v185, %v316
      %v318 = vlaneseq
      %v319 = vshrl.u32 %v318, 7
      %v320 = vsub.s32 0, %v319
      %v321 = vrot.slane %v186, %v320
      %322 = vset.pattern.permute.xlu0 0
      %323 = vperm.xlu0 %322, %v293
      %v324 = vpop.permute.xlu0 %323
      %326 = vset.pattern.permute.xlu0 0
      %327 = vperm.xlu0 %326, %v297
      %v328 = vpop.permute.xlu0 %327
      %330 = vset.pattern.permute.xlu0 0
      %331 = vperm.xlu0 %330, %v301
      %v332 = vpop.permute.xlu0 %331
      %334 = vset.pattern.permute.xlu0 0
      %335 = vperm.xlu0 %334, %v305
      %v336 = vpop.permute.xlu0 %335
      %338 = vset.pattern.permute.xlu0 0
      %339 = vperm.xlu0 %338, %v309
      %v340 = vpop.permute.xlu0 %339
      %342 = vset.pattern.permute.xlu0 0
      %343 = vperm.xlu0 %342, %v313
      %v344 = vpop.permute.xlu0 %343
      %346 = vset.pattern.permute.xlu0 0
      %347 = vperm.xlu0 %346, %v317
      %v348 = vpop.permute.xlu0 %347
      %350 = vset.pattern.permute.xlu0 0
      %351 = vperm.xlu0 %350, %v321
      %v352 = vpop.permute.xlu0 %351
      %v354 = vadd.f32 %v274, %v324
      %v355 = vadd.f32 %v275, %v328
      %v356 = vadd.f32 %v276, %v332
      %v357 = vadd.f32 %v277, %v336
      %v358 = vadd.f32 %v278, %v340
      %v359 = vadd.f32 %v279, %v344
      %v360 = vadd.f32 %v280, %v348
      %v361 = vadd.f32 %v281, %v352
      %s362 = scalar_lea.vmem %s165, 1
      %v363 = vld [vmem:[%s362] ss:$2 sm:$0x7f]
      %s364 = scalar_lea.vmem %s165, 17
      %v365 = vld [vmem:[%s364] ss:$2 sm:$0x7f]
      %s366 = scalar_lea.vmem %s165, 33
      %v367 = vld [vmem:[%s366] ss:$2 sm:$0x7f]
      %s368 = scalar_lea.vmem %s165, 49
      %v369 = vld [vmem:[%s368] ss:$2 sm:$0x7f]
      %s370 = scalar_lea.vmem %s165, 65
      %v371 = vld [vmem:[%s370] ss:$2 sm:$0x7f]
      %s372 = scalar_lea.vmem %s165, 81
      %v373 = vld [vmem:[%s372] ss:$2 sm:$0x7f]
      %s374 = scalar_lea.vmem %s165, 97
      %v375 = vld [vmem:[%s374] ss:$2 sm:$0x7f]
      %s376 = scalar_lea.vmem %s165, 113
      %v377 = vld [vmem:[%s376] ss:$2 sm:$0x7f]
      %v378 = vmul.f32 %v363, %v244
      %v379 = vmul.f32 %v365, %v248
      %v380 = vmul.f32 %v367, %v252
      %v381 = vmul.f32 %v369, %v256
      %v382 = vmul.f32 %v371, %v260
      %v383 = vmul.f32 %v373, %v264
      %v384 = vmul.f32 %v375, %v268
      %v385 = vmul.f32 %v377, %v272
      %v386 = vadd.f32 %v378, %v324
      %v387 = vadd.f32 %v379, %v328
      %v388 = vadd.f32 %v380, %v332
      %v389 = vadd.f32 %v381, %v336
      %v390 = vadd.f32 %v382, %v340
      %v391 = vadd.f32 %v383, %v344
      %v392 = vadd.f32 %v384, %v348
      %v393 = vadd.f32 %v385, %v352
      %v394 = vmax.f32 %v354, %v386
      %v395 = vmax.f32 %v355, %v387
      %v396 = vmax.f32 %v356, %v388
      %v397 = vmax.f32 %v357, %v389
      %v398 = vmax.f32 %v358, %v390
      %v399 = vmax.f32 %v359, %v391
      %v400 = vmax.f32 %v360, %v392
      %v401 = vmax.f32 %v361, %v393
      %vm402 = vcmask 129024
      %403 = vst.msk [vmem:[%s170] sm:$0x7f] %vm402, %v394
      %404 = vst.msk [vmem:[%s170 + $0x8] sm:$0x7f] %vm402, %v395
      %405 = vst.msk [vmem:[%s170 + $0x10] sm:$0x7f] %vm402, %v396
      %406 = vst.msk [vmem:[%s170 + $0x18] sm:$0x7f] %vm402, %v397
      %407 = vst.msk [vmem:[%s170 + $0x20] sm:$0x7f] %vm402, %v398
      %408 = vst.msk [vmem:[%s170 + $0x28] sm:$0x7f] %vm402, %v399
      %409 = vst.msk [vmem:[%s170 + $0x30] sm:$0x7f] %vm402, %v400
      %410 = vst.msk [vmem:[%s170 + $0x38] sm:$0x7f] %vm402, %v401
      %p411 = scmp.lt.s32.totalorder %s14, 1
      %s412 = scalar_select %p411, %s14, 1
      %s413 = smul.addr %s412, 8
      %s414 = smul.addr %s413, 8
      %s415 = scalar_lea.vmem %s3, %s414
      // Predicated region
      $region33: #{baseline_cnn_forward.6} parent=31 // pred_check
        %p416 = pneg %p100
      $region34: #{baseline_cnn_forward.6} parent=31 // pred_check_branch
        %418 = sbr.rel (%p416) target = $region36
      $region35: #{baseline_cnn_forward.6} parent=31 // pred_region
        _
      $region36: #{baseline_cnn_forward.6} parent=31 // pred_fallthru
        _
    $region32: #{baseline_cnn_forward.6} parent=5 // pred_fallthru
      _
    %p419 = scmp.le.s32.totalorder 2, %s9
    // Predicated region
    $region37: #{baseline_cnn_forward.6} parent=5 // pred_check
      %p420 = pneg %p419
    $region38: #{baseline_cnn_forward.6} parent=5 // pred_check_branch
      %422 = sbr.rel (%p420) target = $region40
    $region39: #{baseline_cnn_forward.6} parent=5 // pred_region
      %s423 = ssub.s32 %s9, 2
      // Predicated region
      $region41: #{baseline_cnn_forward.6} parent=39 // pred_check
        %p424 = pneg %p106
      $region42: #{baseline_cnn_forward.6} parent=39 // pred_check_branch
        %426 = sbr.rel (%p424) target = $region44
      $region43: #{baseline_cnn_forward.6} parent=39 // pred_region
        %p427 = scmp.lt.s32.totalorder %s15, 1
        %s428 = scalar_select %p427, %s15, 1
        %s429 = smul.addr %s428, 8
        %s430 = smul.addr %s429, 8
        %s431 = scalar_lea.vmem %s3, %s430
      $region44: #{baseline_cnn_forward.6} parent=39 // pred_fallthru
        _
    $region40: #{baseline_cnn_forward.6} parent=5 // pred_fallthru
      _
  $region6: #{baseline_cnn_forward.6} parent=0 // loop_footer
    %s13 = sadd.s32 1, %s9
  $region7: #{baseline_cnn_forward.6} parent=0 // loop_footer_branch
    %8 = sbr.rel target = $region3
  $region8: #{baseline_cnn_forward.6} parent=0 // loop_exit
    _

// kernel: baseline_cnn_forward.5
$region0: #{baseline_cnn_forward.5}
  #allocation0 [shape = 'u32[]', space=smem, size = 0x4, offset = 0x4, fixed_abs, tag = 'smem constant byte address 0x4 - core index']
  #allocation1 [shape = 'u32[144,128]{1,0:T(1,128)}', space=vmem, size = 0x12000, scoped, tag = 'internal scratch']
  %s0 = inlined_call_operand.vmem [shape: bf16[2,4,290], index: 0, kind: input, shape index: {}]
  %s1 = inlined_call_operand.vmem [shape: bf16[9,8,4], index: 1, kind: input, shape index: {}]
  %s2 = inlined_call_operand.vmem [shape: f32[8,1], index: 2, kind: input, shape index: {}]
  %s3 = inlined_call_operand.vmem [shape: f32[1,256], index: 3, kind: input, shape index: {}]
  %s4 = inlined_call_operand.vmem [shape: f32[2,8,256], index: 4, kind: output, shape index: {0}]
  %s5 = inlined_call_operand.vmem [shape: f32[8,1], index: 5, kind: output, shape index: {1}]
  %s6 = inlined_call_operand.vmem [shape: f32[8,1], index: 6, kind: output, shape index: {2}]
  %7 = xla_tuple %s4, %s5, %s6
  %s8 = sld [smem:[#allocation0]]
  $region69: #{baseline_cnn_forward.5} parent=0
    _
  %s10 = ssub.s32 1, %s8
  %s11 = scalar_select 0, %s10, %s8
  loop: start=0, step=1, limit=4
  $region2: #{baseline_cnn_forward.5} parent=0 // loop_pre_header
    _
  $region3: #{baseline_cnn_forward.5} parent=0 // loop_header
    %s13 = sphi 0, %s17
    %p14 = scmp.ge.s32.totalorder %s13, 4
    %s23 = sphi 0, %s25
    %s26 = sphi 0, %s23
    %s27 = sphi 0, %s26
    %s43 = sphi 0, %s27
    %s47 = sphi 0, %s47
    %s49 = sphi 0, %s47
    %s50 = sphi 0, %s49
    %s64 = sphi 0, %s50
    %s68 = sphi 0, %s68
    %s70 = sphi 0, %s68
    %s71 = sphi 0, %s70
    %s85 = sphi 0, %s71
    %s89 = sphi 0, %s89
    %s91 = sphi 0, %s89
    %s92 = sphi 0, %s91
    %s106 = sphi 0, %s92
    %s112 = sphi 0, %s114
    %s115 = sphi 0, %s112
    %s116 = sphi 0, %s115
    %s132 = sphi 0, %s116
    %s136 = sphi 0, %s136
    %s138 = sphi 0, %s136
    %s139 = sphi 0, %s138
    %s153 = sphi 0, %s139
    %s157 = sphi 0, %s157
    %s159 = sphi 0, %s157
    %s160 = sphi 0, %s159
    %s174 = sphi 0, %s160
  $region4: #{baseline_cnn_forward.5} parent=0 // loop_header_branch
    %16 = sbr.rel (%p14) target = $region8
  $region5: #{baseline_cnn_forward.5} parent=0 // loop_body
    %s18 = ssub.s32 %s13, 1
    %s19 = ssub.s32 %s13, 2
    %s20 = sadd.s32 %s13, 1
    %s21 = ssub.s32 %s13, %s20
    %p22 = scmp.eq.s32.totalorder %s21, 0
    %s24 = sadd.s32 %s23, 1
    %s25 = scalar_select %p22, %s23, %s24
    %p28 = pneg %p22
    %p29 = scmp.eq.s32.totalorder %s13, 1
    %p30 = por %p28, %p29
    %p31 = scmp.ne.s32.totalorder %s23, %s26
    %p32 = scmp.eq.s32.totalorder %s13, 0
    %p33 = por %p31, %p32
    %p34 = scmp.ne.s32.totalorder %s23, %s26
    %p35 = scmp.eq.s32.totalorder %s18, 1
    %p36 = por %p34, %p35
    %p37 = scmp.ne.s32.totalorder %s26, %s27
    %p38 = scmp.eq.s32.totalorder %s18, 0
    %p39 = por %p37, %p38
    %p40 = scmp.ne.s32.totalorder %s26, %s27
    %p41 = scmp.eq.s32.totalorder %s19, 1
    %p42 = por %p40, %p41
    %p44 = scmp.ne.s32.totalorder %s27, %s43
    %p45 = scmp.eq.s32.totalorder %s19, 0
    %p46 = por %p44, %p45
    %s48 = sadd.s32 %s47, 1
    %p51 = scmp.eq.s32.totalorder %s13, 1
    %p52 = scmp.ne.s32.totalorder %s47, %s49
    %p53 = scmp.eq.s32.totalorder %s13, 0
    %p54 = por %p52, %p53
    %p55 = scmp.ne.s32.totalorder %s47, %s49
    %p56 = scmp.eq.s32.totalorder %s18, 1
    %p57 = por %p55, %p56
    %p58 = scmp.ne.s32.totalorder %s49, %s50
    %p59 = scmp.eq.s32.totalorder %s18, 0
    %p60 = por %p58, %p59
    %p61 = scmp.ne.s32.totalorder %s49, %s50
    %p62 = scmp.eq.s32.totalorder %s19, 1
    %p63 = por %p61, %p62
    %p65 = scmp.ne.s32.totalorder %s50, %s64
    %p66 = scmp.eq.s32.totalorder %s19, 0
    %p67 = por %p65, %p66
    %s69 = sadd.s32 %s68, 1
    %p72 = scmp.eq.s32.totalorder %s13, 1
    %p73 = scmp.ne.s32.totalorder %s68, %s70
    %p74 = scmp.eq.s32.totalorder %s13, 0
    %p75 = por %p73, %p74
    %p76 = scmp.ne.s32.totalorder %s68, %s70
    %p77 = scmp.eq.s32.totalorder %s18, 1
    %p78 = por %p76, %p77
    %p79 = scmp.ne.s32.totalorder %s70, %s71
    %p80 = scmp.eq.s32.totalorder %s18, 0
    %p81 = por %p79, %p80
    %p82 = scmp.ne.s32.totalorder %s70, %s71
    %p83 = scmp.eq.s32.totalorder %s19, 1
    %p84 = por %p82, %p83
    %p86 = scmp.ne.s32.totalorder %s71, %s85
    %p87 = scmp.eq.s32.totalorder %s19, 0
    %p88 = por %p86, %p87
    %s90 = sadd.s32 %s89, 1
    %p93 = scmp.eq.s32.totalorder %s13, 1
    %p94 = scmp.ne.s32.totalorder %s89, %s91
    %p95 = scmp.eq.s32.totalorder %s13, 0
    %p96 = por %p94, %p95
    %p97 = scmp.ne.s32.totalorder %s89, %s91
    %p98 = scmp.eq.s32.totalorder %s18, 1
    %p99 = por %p97, %p98
    %p100 = scmp.ne.s32.totalorder %s91, %s92
    %p101 = scmp.eq.s32.totalorder %s18, 0
    %p102 = por %p100, %p101
    %p103 = scmp.ne.s32.totalorder %s91, %s92
    %p104 = scmp.eq.s32.totalorder %s19, 1
    %p105 = por %p103, %p104
    %p107 = scmp.ne.s32.totalorder %s92, %s106
    %p108 = scmp.eq.s32.totalorder %s19, 0
    %p109 = por %p107, %p108
    %s110 = ssub.s32 %s13, %s20
    %p111 = scmp.eq.s32.totalorder %s110, 0
    %s113 = sadd.s32 %s112, 1
    %s114 = scalar_select %p111, %s112, %s113
    %p117 = pneg %p111
    %p118 = scmp.eq.s32.totalorder %s13, 1
    %p119 = por %p117, %p118
    %p120 = scmp.ne.s32.totalorder %s112, %s115
    %p121 = scmp.eq.s32.totalorder %s13, 0
    %p122 = por %p120, %p121
    %p123 = scmp.ne.s32.totalorder %s112, %s115
    %p124 = scmp.eq.s32.totalorder %s18, 1
    %p125 = por %p123, %p124
    %p126 = scmp.ne.s32.totalorder %s115, %s116
    %p127 = scmp.eq.s32.totalorder %s18, 0
    %p128 = por %p126, %p127
    %p129 = scmp.ne.s32.totalorder %s115, %s116
    %p130 = scmp.eq.s32.totalorder %s19, 1
    %p131 = por %p129, %p130
    %p133 = scmp.ne.s32.totalorder %s116, %s132
    %p134 = scmp.eq.s32.totalorder %s19, 0
    %p135 = por %p133, %p134
    %s137 = sadd.s32 %s136, 1
    %p140 = scmp.eq.s32.totalorder %s13, 1
    %p141 = scmp.ne.s32.totalorder %s136, %s138
    %p142 = scmp.eq.s32.totalorder %s13, 0
    %p143 = por %p141, %p142
    %p144 = scmp.ne.s32.totalorder %s136, %s138
    %p145 = scmp.eq.s32.totalorder %s18, 1
    %p146 = por %p144, %p145
    %p147 = scmp.ne.s32.totalorder %s138, %s139
    %p148 = scmp.eq.s32.totalorder %s18, 0
    %p149 = por %p147, %p148
    %p150 = scmp.ne.s32.totalorder %s138, %s139
    %p151 = scmp.eq.s32.totalorder %s19, 1
    %p152 = por %p150, %p151
    %p154 = scmp.ne.s32.totalorder %s139, %s153
    %p155 = scmp.eq.s32.totalorder %s19, 0
    %p156 = por %p154, %p155
    %s158 = sadd.s32 %s157, 1
    %p161 = scmp.eq.s32.totalorder %s13, 1
    %p162 = scmp.ne.s32.totalorder %s157, %s159
    %p163 = scmp.eq.s32.totalorder %s13, 0
    %p164 = por %p162, %p163
    %p165 = scmp.ne.s32.totalorder %s157, %s159
    %p166 = scmp.eq.s32.totalorder %s18, 1
    %p167 = por %p165, %p166
    %p168 = scmp.ne.s32.totalorder %s159, %s160
    %p169 = scmp.eq.s32.totalorder %s18, 0
    %p170 = por %p168, %p169
    %p171 = scmp.ne.s32.totalorder %s159, %s160
    %p172 = scmp.eq.s32.totalorder %s19, 1
    %p173 = por %p171, %p172
    %p175 = scmp.ne.s32.totalorder %s160, %s174
    %p176 = scmp.eq.s32.totalorder %s19, 0
    %p177 = por %p175, %p176
    %p178 = scmp.le.s32.totalorder 1, %s13
    %p179 = scmp.lt.s32.totalorder %s13, 3
    %p180 = pnand %p178, %p179
    %p181 = pneg %p180
    // Predicated region
    $region9: #{baseline_cnn_forward.5} parent=5 // pred_check
      _
    $region10: #{baseline_cnn_forward.5} parent=5 // pred_check_branch
      %183 = sbr.rel (%p180) target = $region12
    $region11: #{baseline_cnn_forward.5} parent=5 // pred_region
      %s184 = ssub.s32 %s13, 1
      // Predicated region
      $region13: #{baseline_cnn_forward.5} parent=11 // pred_check
        %p185 = pneg %p60
      $region14: #{baseline_cnn_forward.5} parent=11 // pred_check_branch
        %187 = sbr.rel (%p185) target = $region16
      $region15: #{baseline_cnn_forward.5} parent=11 // pred_region
        _
      $region16: #{baseline_cnn_forward.5} parent=11 // pred_fallthru
        _
      // Predicated region
      $region17: #{baseline_cnn_forward.5} parent=11 // pred_check
        %p188 = pneg %p81
      $region18: #{baseline_cnn_forward.5} parent=11 // pred_check_branch
        %190 = sbr.rel (%p188) target = $region20
      $region19: #{baseline_cnn_forward.5} parent=11 // pred_region
        _
      $region20: #{baseline_cnn_forward.5} parent=11 // pred_fallthru
        _
      // Predicated region
      $region21: #{baseline_cnn_forward.5} parent=11 // pred_check
        %p191 = pneg %p102
      $region22: #{baseline_cnn_forward.5} parent=11 // pred_check_branch
        %193 = sbr.rel (%p191) target = $region24
      $region23: #{baseline_cnn_forward.5} parent=11 // pred_region
        _
      $region24: #{baseline_cnn_forward.5} parent=11 // pred_fallthru
        _
    $region12: #{baseline_cnn_forward.5} parent=5 // pred_fallthru
      _
    %p194 = scmp.lt.s32.totalorder %s13, 2
    // Predicated region
    $region25: #{baseline_cnn_forward.5} parent=5 // pred_check
      %p195 = pneg %p194
    $region26: #{baseline_cnn_forward.5} parent=5 // pred_check_branch
      %197 = sbr.rel (%p195) target = $region28
    $region27: #{baseline_cnn_forward.5} parent=5 // pred_region
      // Predicated region
      $region29: #{baseline_cnn_forward.5} parent=27 // pred_check
        %p198 = pneg %p33
      $region30: #{baseline_cnn_forward.5} parent=27 // pred_check_branch
        %200 = sbr.rel (%p198) target = $region32
      $region31: #{baseline_cnn_forward.5} parent=27 // pred_region
        %p201 = scmp.lt.s32.totalorder %s13, 1
        %s202 = scalar_select %p201, %s13, 1
        %s203 = smul.addr %s202, 3
        %s204 = smul.addr %s203, 2
        %s205 = scalar_lea.vmem %s0, %s204
      $region32: #{baseline_cnn_forward.5} parent=27 // pred_fallthru
        _
    $region28: #{baseline_cnn_forward.5} parent=5 // pred_fallthru
      _
    %p206 = scmp.le.s32.totalorder 1, %s13
    %p207 = scmp.lt.s32.totalorder %s13, 3
    %p208 = pnand %p206, %p207
    %p209 = pneg %p208
    // Predicated region
    $region33: #{baseline_cnn_forward.5} parent=5 // pred_check
      _
    $region34: #{baseline_cnn_forward.5} parent=5 // pred_check_branch
      %211 = sbr.rel (%p208) target = $region36
    $region35: #{baseline_cnn_forward.5} parent=5 // pred_region
      %s212 = ssub.s32 %s13, 1
      %p213 = scmp.lt.s32.totalorder %s18, 1
      %s214 = scalar_select %p213, %s18, 1
      %s215 = smul.addr %s214, 3
      %s216 = smul.addr %s215, 2
      %s217 = scalar_lea.vmem %s0, %s216
      %p218 = pneg %p39
      %p219 = pneg %p36
      %p220 = pneg %p60
      %p221 = pneg %p57
      %p222 = pneg %p81
      %p223 = pneg %p78
      %p224 = pneg %p102
      %p225 = pneg %p99
      %p226 = pneg %p128
      %p227 = pneg %p125
      %p228 = scmp.lt.s32.totalorder %s18, 1
      %s229 = scalar_select %p228, %s18, 1
      %s230 = smul.addr %s229, 2
      %s231 = smul.addr %s230, 8
      %s232 = scalar_lea.vmem %s4, %s231
      %p233 = pneg %p149
      %p234 = pneg %p146
      %p235 = pneg %p170
      %p236 = pneg %p167
      %p237 = scmp.lt.s32.totalorder %s18, 1
      %s238 = scalar_select %p237, %s18, 1
      %s239 = smul.addr %s238, 3
      %s240 = smul.addr %s239, 2
      %s241 = scalar_lea.vmem %s0, %s240
      %p242 = scmp.lt.s32.totalorder %s18, 1
      %s243 = scalar_select %p242, %s18, 1
      %s244 = smul.addr %s243, 2
      %s245 = smul.addr %s244, 8
      %s246 = scalar_lea.vmem %s4, %s245
      %p248 = scmp.eq.s32.totalorder %s18, 0
      // Predicated region
      $region37: #{baseline_cnn_forward.5} parent=35 // pred_check
        %p249 = pneg %p248
      $region38: #{baseline_cnn_forward.5} parent=35 // pred_check_branch
        %251 = sbr.rel (%p249) target = $region40
      $region39: #{baseline_cnn_forward.5} parent=35 // pred_region
        %vm252 = vcmask 7168
        %253 = vst.msk [vmem:[%s5] sm:$0xff] %vm252, 0.0
        %254 = vst.msk [vmem:[%s6] sm:$0xff] %vm252, 0.0
      $region40: #{baseline_cnn_forward.5} parent=35 // pred_fallthru
        _
      %v255 = vld [vmem:[%s241] sm:$0xf]
      %v256 = vld [vmem:[%s1] sm:$0xf]
      %v257 = vld [vmem:[%s241] sm:$0x3f]
      %s258 = scalar_lea.vmem %s1, 4
      %v259 = vld [vmem:[%s258] sm:$0xf]
      %v261 = vcombine.high %v257, %v257
      %v263 = vunpack.c.l.s4 1983009808
      %v264 = vunpack.c.0.s8 %v263
      %v265 = vlaneseq
      %v266 = vshrl.u32 %v265, 7
      %v267 = vsub.s32 %v264, %v266
      %v268 = vrot.slane %v257, %v267
      %v270 = vunpack.c.l.s4 1983009808
      %v271 = vunpack.c.0.s8 %v270
      %v272 = vlaneseq
      %v273 = vshrl.u32 %v272, 7
      %v274 = vsub.s32 %v271, %v273
      %v275 = vrot.slane %v261, %v274
      %v276 = vcombine.high %v268, %v268
      %277 = vrot.lane.b32.xlu0 %v268, 127
      %v278 = vpop.permute.xlu0 %277
      %279 = vrot.lane.b32.xlu0 %v276, 127
      %v280 = vpop.permute.xlu0 %279
      %281 = vrot.lane.b32.xlu0 %v275, 127
      %v282 = vpop.permute.xlu0 %281
      %vm283 = vcmask 1039360
      %v284 = vsel %vm283, %v278, %v280
      %v285 = vsel %vm283, %v280, %v282
      %vm286 = vcmask 31744
      %v288 = vsel %vm286, %v259, 0
      %vm290 = vcmask 1041408
      %v292 = vsel %vm290, %v284, 0
      %v295 = vsel %vm290, %v285, 0
      %297 = vmatprep.subr.bf16.mxu0 0
      %298 = vmatpush1.bf16.msra.mxu0 0
      %299 = vmatprep.subr.bf16.mxu0 0
      %300 = vmatpush1.bf16.msra.mxu0 0
      %301 = vmatprep.subr.bf16.mxu0 0
      %302 = vmatpush1.bf16.msra.mxu0 0
      %303 = vmatprep.subr.bf16.mxu0 0
      %304 = vmatpush1.bf16.msra.mxu0 0
      %305 = vmatprep.subr.bf16.mxu0 0
      %306 = vmatpush1.bf16.msra.mxu0 0
      %307 = vmatprep.subr.bf16.mxu0 0
      %308 = vmatpush1.bf16.msra.mxu0 0
      %309 = vmatprep.subr.bf16.mxu0 0
      %310 = vmatpush1.bf16.msra.mxu0 0
      %311 = vmatprep.subr.bf16.mxu0 %v295
      %312 = vmatpush1.bf16.msra.mxu0 %v292
      %313 = vmatprep.subr.bf16.mxu0 0
      %314 = vmatpush2.bf16.msra.mxu0 0
      %315 = vmatprep.subr.bf16.mxu0 0
      %316 = vmatpush2.bf16.msra.mxu0 0
      %317 = vmatprep.subr.bf16.mxu0 0
      %318 = vmatpush2.bf16.msra.mxu0 0
      %319 = vmatprep.subr.bf16.mxu0 0
      %320 = vmatpush2.bf16.msra.mxu0 0
      %321 = vmatprep.subr.bf16.mxu0 0
      %322 = vmatpush2.bf16.msra.mxu0 0
      %323 = vmatprep.subr.bf16.mxu0 0
      %324 = vmatpush2.bf16.msra.mxu0 0
      %325 = vmatprep.subr.bf16.mxu0 0
      %326 = vmatpush2.bf16.msra.mxu0 0
      %327 = vmatprep.subr.bf16.mxu0 0
      %328 = vmatpush2.bf16.msra.mxu0 0
      %329 = vmatprep.mubr.bf16.mxu0 0
      %330 = vmatmul.mubr.bf16.gmra.mxu0 %v288
      %v331 = vpop.f32.mrf.mxu0
      %v332 = vadd.f32 0.0, %v331
      %v333 = vpop.f32.mrf.mxu0
      %v334 = vadd.f32 0.0, %v333
      %v335 = vpop.f32.mrf.mxu0
      %v336 = vpop.f32.mrf.mxu0
      %337 = vdwg.mxu0
      %v340 = vunpack.c.l.s4 1983009808
      %v341 = vunpack.c.0.s8 %v340
      %v342 = vlaneseq
      %v343 = vshrl.u32 %v342, 7
      %v344 = vsub.s32 %v341, %v343
      %v345 = vrot.slane %v255, %v344
      %v346 = vcombine.high %v345, %v345
      %v348 = vsel %vm286, %v256, 0
      %v351 = vsel %vm290, %v345, 0
      %v354 = vsel %vm290, %v346, 0
      %356 = vmatprep.subr.bf16.mxu0 0
      %357 = vmatpush1.bf16.msra.mxu0 0
      %358 = vmatprep.subr.bf16.mxu0 0
      %359 = vmatpush1.bf16.msra.mxu0 0
      %360 = vmatprep.subr.bf16.mxu0 0
      %361 = vmatpush1.bf16.msra.mxu0 0
      %362 = vmatprep.subr.bf16.mxu0 0
      %363 = vmatpush1.bf16.msra.mxu0 0
      %364 = vmatprep.subr.bf16.mxu0 0
      %365 = vmatpush1.bf16.msra.mxu0 0
      %366 = vmatprep.subr.bf16.mxu0 0
      %367 = vmatpush1.bf16.msra.mxu0 0
      %368 = vmatprep.subr.bf16.mxu0 0
      %369 = vmatpush1.bf16.msra.mxu0 0
      %370 = vmatprep.subr.bf16.mxu0 %v354
      %371 = vmatpush1.bf16.msra.mxu0 %v351
      %372 = vmatprep.subr.bf16.mxu0 0
      %373 = vmatpush2.bf16.msra.mxu0 0
      %374 = vmatprep.subr.bf16.mxu0 0
      %375 = vmatpush2.bf16.msra.mxu0 0
      %376 = vmatprep.subr.bf16.mxu0 0
      %377 = vmatpush2.bf16.msra.mxu0 0
      %378 = vmatprep.subr.bf16.mxu0 0
      %379 = vmatpush2.bf16.msra.mxu0 0
      %380 = vmatprep.subr.bf16.mxu0 0
      %381 = vmatpush2.bf16.msra.mxu0 0
      %382 = vmatprep.subr.bf16.mxu0 0
      %383 = vmatpush2.bf16.msra.mxu0 0
      %384 = vmatprep.subr.bf16.mxu0 0
      %385 = vmatpush2.bf16.msra.mxu0 0
      %386 = vmatprep.subr.bf16.mxu0 0
      %387 = vmatpush2.bf16.msra.mxu0 0
      %388 = vmatprep.mubr.bf16.mxu0 0
      %389 = vmatmul.mubr.bf16.gmra.mxu0 %v348
      %v390 = vpop.f32.mrf.mxu0
      %v391 = vadd.f32 %v332, %v390
      %v392 = vpop.f32.mrf.mxu0
      %v393 = vadd.f32 %v334, %v392
      %v394 = vpop.f32.mrf.mxu0
      %v395 = vpop.f32.mrf.mxu0
      %396 = vdwg.mxu0
      %v397 = vld [vmem:[%s241] sm:$0x3f]
      %s398 = scalar_lea.vmem %s1, 8
      %v399 = vld [vmem:[%s398] sm:$0xf]
      %v401 = vcombine.high %v397, %v397
      %v403 = vunpack.c.l.s4 1983009808
      %v404 = vunpack.c.0.s8 %v403
      %v405 = vlaneseq
      %v406 = vshrl.u32 %v405, 7
      %v407 = vsub.s32 %v404, %v406
      %v408 = vrot.slane %v397, %v407
      %v410 = vunpack.c.l.s4 1983009808
      %v411 = vunpack.c.0.s8 %v410
      %v412 = vlaneseq
      %v413 = vshrl.u32 %v412, 7
      %v414 = vsub.s32 %v411, %v413
      %v415 = vrot.slane %v401, %v414
      %v416 = vcombine.high %v408, %v408
      %417 = vrot.lane.b32.xlu0 %v408, 126
      %v418 = vpop.permute.xlu0 %417
      %419 = vrot.lane.b32.xlu0 %v416, 126
      %v420 = vpop.permute.xlu0 %419
      %421 = vrot.lane.b32.xlu0 %v415, 126
      %v422 = vpop.permute.xlu0 %421
      %vm423 = vcmask 1031168
      %v424 = vsel %vm423, %v418, %v420
      %v425 = vsel %vm423, %v420, %v422
      %v427 = vsel %vm286, %v399, 0
      %v430 = vsel %vm290, %v424, 0
      %v433 = vsel %vm290, %v425, 0
      %435 = vmatprep.subr.bf16.mxu0 0
      %436 = vmatpush1.bf16.msra.mxu0 0
      %437 = vmatprep.subr.bf16.mxu0 0
      %438 = vmatpush1.bf16.msra.mxu0 0
      %439 = vmatprep.subr.bf16.mxu0 0
      %440 = vmatpush1.bf16.msra.mxu0 0
      %441 = vmatprep.subr.bf16.mxu0 0
      %442 = vmatpush1.bf16.msra.mxu0 0
      %443 = vmatprep.subr.bf16.mxu0 0
      %444 = vmatpush1.bf16.msra.mxu0 0
      %445 = vmatprep.subr.bf16.mxu0 0
      %446 = vmatpush1.bf16.msra.mxu0 0
      %447 = vmatprep.subr.bf16.mxu0 0
      %448 = vmatpush1.bf16.msra.mxu0 0
      %449 = vmatprep.subr.bf16.mxu0 %v433
      %450 = vmatpush1.bf16.msra.mxu0 %v430
      %451 = vmatprep.subr.bf16.mxu0 0
      %452 = vmatpush2.bf16.msra.mxu0 0
      %453 = vmatprep.subr.bf16.mxu0 0
      %454 = vmatpush2.bf16.msra.mxu0 0
      %455 = vmatprep.subr.bf16.mxu0 0
      %456 = vmatpush2.bf16.msra.mxu0 0
      %457 = vmatprep.subr.bf16.mxu0 0
      %458 = vmatpush2.bf16.msra.mxu0 0
      %459 = vmatprep.subr.bf16.mxu0 0
      %460 = vmatpush2.bf16.msra.mxu0 0
      %461 = vmatprep.subr.bf16.mxu0 0
      %462 = vmatpush2.bf16.msra.mxu0 0
      %463 = vmatprep.subr.bf16.mxu0 0
      %464 = vmatpush2.bf16.msra.mxu0 0
      %465 = vmatprep.subr.bf16.mxu0 0
      %466 = vmatpush2.bf16.msra.mxu0 0
      %467 = vmatprep.mubr.bf16.mxu0 0
      %468 = vmatmul.mubr.bf16.gmra.mxu0 %v427
      %v469 = vpop.f32.mrf.mxu0
      %v470 = vadd.f32 0.0, %v469
      %v471 = vpop.f32.mrf.mxu0
      %v472 = vadd.f32 0.0, %v471
      %v473 = vpop.f32.mrf.mxu0
      %v474 = vpop.f32.mrf.mxu0
      %475 = vdwg.mxu0
      %v476 = vadd.f32 %v391, %v470
      %v477 = vadd.f32 %v393, %v472
      %v478 = vld [vmem:[%s241] sm:$0x3f]
      %s479 = scalar_lea.vmem %s1, 12
      %v480 = vld [vmem:[%s479] sm:$0xf]
      %v482 = vcombine.high %v478, %v478
      %v484 = vunpack.c.l.s4 1983009808
      %v485 = vunpack.c.0.s8 %v484
      %v486 = vlaneseq
      %v487 = vshrl.u32 %v486, 7
      %v488 = vsub.s32 %v485, %v487
      %v489 = vrot.slane %v478, %v488
      %v491 = vunpack.c.l.s4 1983009808
      %v492 = vunpack.c.0.s8 %v491
      %v493 = vlaneseq
      %v494 = vshrl.u32 %v493, 7
      %v495 = vsub.s32 %v492, %v494
      %v496 = vrot.slane %v482, %v495
      %v497 = vcombine.high %v489, %v489
      %498 = vrot.lane.b32.xlu0 %v489, 112
      %v499 = vpop.permute.xlu0 %498
      %500 = vrot.lane.b32.xlu0 %v497, 112
      %v501 = vpop.permute.xlu0 %500
      %502 = vrot.lane.b32.xlu0 %v496, 112
      %v503 = vpop.permute.xlu0 %502
      %vm504 = vcmask 916480
      %v505 = vsel %vm504, %v499, %v501
      %v506 = vsel %vm504, %v501, %v503
      %v508 = vsel %vm286, %v480, 0
      %v511 = vsel %vm290, %v505, 0
      %v514 = vsel %vm290, %v506, 0
      %516 = vmatprep.subr.bf16.mxu0 0
      %517 = vmatpush1.bf16.msra.mxu0 0
      %518 = vmatprep.subr.bf16.mxu0 0
      %519 = vmatpush1.bf16.msra.mxu0 0
      %520 = vmatprep.subr.bf16.mxu0 0
      %521 = vmatpush1.bf16.msra.mxu0 0
      %522 = vmatprep.subr.bf16.mxu0 0
      %523 = vmatpush1.bf16.msra.mxu0 0
      %524 = vmatprep.subr.bf16.mxu0 0
      %525 = vmatpush1.bf16.msra.mxu0 0
      %526 = vmatprep.subr.bf16.mxu0 0
      %527 = vmatpush1.bf16.msra.mxu0 0
      %528 = vmatprep.subr.bf16.mxu0 0
      %529 = vmatpush1.bf16.msra.mxu0 0
      %530 = vmatprep.subr.bf16.mxu0 %v514
      %531 = vmatpush1.bf16.msra.mxu0 %v511
      %532 = vmatprep.subr.bf16.mxu0 0
      %533 = vmatpush2.bf16.msra.mxu0 0
      %534 = vmatprep.subr.bf16.mxu0 0
      %535 = vmatpush2.bf16.msra.mxu0 0
      %536 = vmatprep.subr.bf16.mxu0 0
      %537 = vmatpush2.bf16.msra.mxu0 0
      %538 = vmatprep.subr.bf16.mxu0 0
      %539 = vmatpush2.bf16.msra.mxu0 0
      %540 = vmatprep.subr.bf16.mxu0 0
      %541 = vmatpush2.bf16.msra.mxu0 0
      %542 = vmatprep.subr.bf16.mxu0 0
      %543 = vmatpush2.bf16.msra.mxu0 0
      %544 = vmatprep.subr.bf16.mxu0 0
      %545 = vmatpush2.bf16.msra.mxu0 0
      %546 = vmatprep.subr.bf16.mxu0 0
      %547 = vmatpush2.bf16.msra.mxu0 0
      %548 = vmatprep.mubr.bf16.mxu0 0
      %549 = vmatmul.mubr.bf16.gmra.mxu0 %v508
      %v550 = vpop.f32.mrf.mxu0
      %v551 = vadd.f32 0.0, %v550
      %v552 = vpop.f32.mrf.mxu0
      %v553 = vadd.f32 0.0, %v552
      %v554 = vpop.f32.mrf.mxu0
      %v555 = vpop.f32.mrf.mxu0
      %556 = vdwg.mxu0
      %v557 = vadd.f32 %v476, %v551
      %v558 = vadd.f32 %v477, %v553
      %v559 = vld [vmem:[%s241] sm:$0x3f]
      %s560 = scalar_lea.vmem %s1, 16
      %v561 = vld [vmem:[%s560] sm:$0xf]
      %v563 = vcombine.high %v559, %v559
      %v565 = vunpack.c.l.s4 1983009808
      %v566 = vunpack.c.0.s8 %v565
      %v567 = vlaneseq
      %v568 = vshrl.u32 %v567, 7
      %v569 = vsub.s32 %v566, %v568
      %v570 = vrot.slane %v559, %v569
      %v572 = vunpack.c.l.s4 1983009808
      %v573 = vunpack.c.0.s8 %v572
      %v574 = vlaneseq
      %v575 = vshrl.u32 %v574, 7
      %v576 = vsub.s32 %v573, %v575
      %v577 = vrot.slane %v563, %v576
      %v578 = vcombine.high %v570, %v570
      %579 = vrot.lane.b32.xlu0 %v570, 111
      %v580 = vpop.permute.xlu0 %579
      %581 = vrot.lane.b32.xlu0 %v578, 111
      %v582 = vpop.permute.xlu0 %581
      %583 = vrot.lane.b32.xlu0 %v577, 111
      %v584 = vpop.permute.xlu0 %583
      %vm585 = vcmask 908288
      %v586 = vsel %vm585, %v580, %v582
      %v587 = vsel %vm585, %v582, %v584
      %v589 = vsel %vm286, %v561, 0
      %v592 = vsel %vm290, %v586, 0
      %v595 = vsel %vm290, %v587, 0
      %597 = vmatprep.subr.bf16.mxu0 0
      %598 = vmatpush1.bf16.msra.mxu0 0
      %599 = vmatprep.subr.bf16.mxu0 0
      %600 = vmatpush1.bf16.msra.mxu0 0
      %601 = vmatprep.subr.bf16.mxu0 0
      %602 = vmatpush1.bf16.msra.mxu0 0
      %603 = vmatprep.subr.bf16.mxu0 0
      %604 = vmatpush1.bf16.msra.mxu0 0
      %605 = vmatprep.subr.bf16.mxu0 0
      %606 = vmatpush1.bf16.msra.mxu0 0
      %607 = vmatprep.subr.bf16.mxu0 0
      %608 = vmatpush1.bf16.msra.mxu0 0
      %609 = vmatprep.subr.bf16.mxu0 0
      %610 = vmatpush1.bf16.msra.mxu0 0
      %611 = vmatprep.subr.bf16.mxu0 %v595
      %612 = vmatpush1.bf16.msra.mxu0 %v592
      %613 = vmatprep.subr.bf16.mxu0 0
      %614 = vmatpush2.bf16.msra.mxu0 0
      %615 = vmatprep.subr.bf16.mxu0 0
      %616 = vmatpush2.bf16.msra.mxu0 0
      %617 = vmatprep.subr.bf16.mxu0 0
      %618 = vmatpush2.bf16.msra.mxu0 0
      %619 = vmatprep.subr.bf16.mxu0 0
      %620 = vmatpush2.bf16.msra.mxu0 0
      %621 = vmatprep.subr.bf16.mxu0 0
      %622 = vmatpush2.bf16.msra.mxu0 0
      %623 = vmatprep.subr.bf16.mxu0 0
      %624 = vmatpush2.bf16.msra.mxu0 0
      %625 = vmatprep.subr.bf16.mxu0 0
      %626 = vmatpush2.bf16.msra.mxu0 0
      %627 = vmatprep.subr.bf16.mxu0 0
      %628 = vmatpush2.bf16.msra.mxu0 0
      %629 = vmatprep.mubr.bf16.mxu0 0
      %630 = vmatmul.mubr.bf16.gmra.mxu0 %v589
      %v631 = vpop.f32.mrf.mxu0
      %v632 = vadd.f32 0.0, %v631
      %v633 = vpop.f32.mrf.mxu0
      %v634 = vadd.f32 0.0, %v633
      %v635 = vpop.f32.mrf.mxu0
      %v636 = vpop.f32.mrf.mxu0
      %637 = vdwg.mxu0
      %v638 = vadd.f32 %v557, %v632
      %v639 = vadd.f32 %v558, %v634
      %v640 = vld [vmem:[%s241] sm:$0x3f]
      %s641 = scalar_lea.vmem %s1, 20
      %v642 = vld [vmem:[%s641] sm:$0xf]
      %v644 = vcombine.high %v640, %v640
      %v646 = vunpack.c.l.s4 1983009808
      %v647 = vunpack.c.0.s8 %v646
      %v648 = vlaneseq
      %v649 = vshrl.u32 %v648, 7
      %v650 = vsub.s32 %v647, %v649
      %v651 = vrot.slane %v640, %v650
      %v653 = vunpack.c.l.s4 1983009808
      %v654 = vunpack.c.0.s8 %v653
      %v655 = vlaneseq
      %v656 = vshrl.u32 %v655, 7
      %v657 = vsub.s32 %v654, %v656
      %v658 = vrot.slane %v644, %v657
      %v659 = vcombine.high %v651, %v651
      %660 = vrot.lane.b32.xlu0 %v651, 110
      %v661 = vpop.permute.xlu0 %660
      %662 = vrot.lane.b32.xlu0 %v659, 110
      %v663 = vpop.permute.xlu0 %662
      %664 = vrot.lane.b32.xlu0 %v658, 110
      %v665 = vpop.permute.xlu0 %664
      %vm666 = vcmask 900096
      %v667 = vsel %vm666, %v661, %v663
      %v668 = vsel %vm666, %v663, %v665
      %v670 = vsel %vm286, %v642, 0
      %v673 = vsel %vm290, %v667, 0
      %v676 = vsel %vm290, %v668, 0
      %678 = vmatprep.subr.bf16.mxu0 0
      %679 = vmatpush1.bf16.msra.mxu0 0
      %680 = vmatprep.subr.bf16.mxu0 0
      %681 = vmatpush1.bf16.msra.mxu0 0
      %682 = vmatprep.subr.bf16.mxu0 0
      %683 = vmatpush1.bf16.msra.mxu0 0
      %684 = vmatprep.subr.bf16.mxu0 0
      %685 = vmatpush1.bf16.msra.mxu0 0
      %686 = vmatprep.subr.bf16.mxu0 0
      %687 = vmatpush1.bf16.msra.mxu0 0
      %688 = vmatprep.subr.bf16.mxu0 0
      %689 = vmatpush1.bf16.msra.mxu0 0
      %690 = vmatprep.subr.bf16.mxu0 0
      %691 = vmatpush1.bf16.msra.mxu0 0
      %692 = vmatprep.subr.bf16.mxu0 %v676
      %693 = vmatpush1.bf16.msra.mxu0 %v673
      %694 = vmatprep.subr.bf16.mxu0 0
      %695 = vmatpush2.bf16.msra.mxu0 0
      %696 = vmatprep.subr.bf16.mxu0 0
      %697 = vmatpush2.bf16.msra.mxu0 0
      %698 = vmatprep.subr.bf16.mxu0 0
      %699 = vmatpush2.bf16.msra.mxu0 0
      %700 = vmatprep.subr.bf16.mxu0 0
      %701 = vmatpush2.bf16.msra.mxu0 0
      %702 = vmatprep.subr.bf16.mxu0 0
      %703 = vmatpush2.bf16.msra.mxu0 0
      %704 = vmatprep.subr.bf16.mxu0 0
      %705 = vmatpush2.bf16.msra.mxu0 0
      %706 = vmatprep.subr.bf16.mxu0 0
      %707 = vmatpush2.bf16.msra.mxu0 0
      %708 = vmatprep.subr.bf16.mxu0 0
      %709 = vmatpush2.bf16.msra.mxu0 0
      %710 = vmatprep.mubr.bf16.mxu0 0
      %711 = vmatmul.mubr.bf16.gmra.mxu0 %v670
      %v712 = vpop.f32.mrf.mxu0
      %v713 = vadd.f32 0.0, %v712
      %v714 = vpop.f32.mrf.mxu0
      %v715 = vadd.f32 0.0, %v714
      %v716 = vpop.f32.mrf.mxu0
      %v717 = vpop.f32.mrf.mxu0
      %718 = vdwg.mxu0
      %v719 = vadd.f32 %v638, %v713
      %v720 = vadd.f32 %v639, %v715
      %v721 = vld [vmem:[%s241] sm:$0x3f]
      %s722 = scalar_lea.vmem %s1, 24
      %v723 = vld [vmem:[%s722] sm:$0xf]
      %v725 = vcombine.high %v721, %v721
      %v727 = vunpack.c.l.s4 1983009808
      %v728 = vunpack.c.0.s8 %v727
      %v729 = vlaneseq
      %v730 = vshrl.u32 %v729, 7
      %v731 = vsub.s32 %v728, %v730
      %v732 = vrot.slane %v721, %v731
      %v734 = vunpack.c.l.s4 1983009808
      %v735 = vunpack.c.0.s8 %v734
      %v736 = vlaneseq
      %v737 = vshrl.u32 %v736, 7
      %v738 = vsub.s32 %v735, %v737
      %v739 = vrot.slane %v725, %v738
      %v740 = vcombine.high %v732, %v732
      %741 = vrot.lane.b32.xlu0 %v732, 96
      %v742 = vpop.permute.xlu0 %741
      %743 = vrot.lane.b32.xlu0 %v740, 96
      %v744 = vpop.permute.xlu0 %743
      %745 = vrot.lane.b32.xlu0 %v739, 96
      %v746 = vpop.permute.xlu0 %745
      %vm747 = vcmask 785408
      %v748 = vsel %vm747, %v742, %v744
      %v749 = vsel %vm747, %v744, %v746
      %v751 = vsel %vm286, %v723, 0
      %v754 = vsel %vm290, %v748, 0
      %v757 = vsel %vm290, %v749, 0
      %759 = vmatprep.subr.bf16.mxu0 0
      %760 = vmatpush1.bf16.msra.mxu0 0
      %761 = vmatprep.subr.bf16.mxu0 0
      %762 = vmatpush1.bf16.msra.mxu0 0
      %763 = vmatprep.subr.bf16.mxu0 0
      %764 = vmatpush1.bf16.msra.mxu0 0
      %765 = vmatprep.subr.bf16.mxu0 0
      %766 = vmatpush1.bf16.msra.mxu0 0
      %767 = vmatprep.subr.bf16.mxu0 0
      %768 = vmatpush1.bf16.msra.mxu0 0
      %769 = vmatprep.subr.bf16.mxu0 0
      %770 = vmatpush1.bf16.msra.mxu0 0
      %771 = vmatprep.subr.bf16.mxu0 0
      %772 = vmatpush1.bf16.msra.mxu0 0
      %773 = vmatprep.subr.bf16.mxu0 %v757
      %774 = vmatpush1.bf16.msra.mxu0 %v754
      %775 = vmatprep.subr.bf16.mxu0 0
      %776 = vmatpush2.bf16.msra.mxu0 0
      %777 = vmatprep.subr.bf16.mxu0 0
      %778 = vmatpush2.bf16.msra.mxu0 0
      %779 = vmatprep.subr.bf16.mxu0 0
      %780 = vmatpush2.bf16.msra.mxu0 0
      %781 = vmatprep.subr.bf16.mxu0 0
      %782 = vmatpush2.bf16.msra.mxu0 0
      %783 = vmatprep.subr.bf16.mxu0 0
      %784 = vmatpush2.bf16.msra.mxu0 0
      %785 = vmatprep.subr.bf16.mxu0 0
      %786 = vmatpush2.bf16.msra.mxu0 0
      %787 = vmatprep.subr.bf16.mxu0 0
      %788 = vmatpush2.bf16.msra.mxu0 0
      %789 = vmatprep.subr.bf16.mxu0 0
      %790 = vmatpush2.bf16.msra.mxu0 0
      %791 = vmatprep.mubr.bf16.mxu0 0
      %792 = vmatmul.mubr.bf16.gmra.mxu0 %v751
      %v793 = vpop.f32.mrf.mxu0
      %v794 = vadd.f32 0.0, %v793
      %v795 = vpop.f32.mrf.mxu0
      %v796 = vadd.f32 0.0, %v795
      %v797 = vpop.f32.mrf.mxu0
      %v798 = vpop.f32.mrf.mxu0
      %799 = vdwg.mxu0
      %v800 = vadd.f32 %v719, %v794
      %v801 = vadd.f32 %v720, %v796
      %v802 = vld [vmem:[%s241] sm:$0x3f]
      %s803 = scalar_lea.vmem %s1, 28
      %v804 = vld [vmem:[%s803] sm:$0xf]
      %v806 = vcombine.high %v802, %v802
      %v808 = vunpack.c.l.s4 1983009808
      %v809 = vunpack.c.0.s8 %v808
      %v810 = vlaneseq
      %v811 = vshrl.u32 %v810, 7
      %v812 = vsub.s32 %v809, %v811
      %v813 = vrot.slane %v802, %v812
      %v815 = vunpack.c.l.s4 1983009808
      %v816 = vunpack.c.0.s8 %v815
      %v817 = vlaneseq
      %v818 = vshrl.u32 %v817, 7
      %v819 = vsub.s32 %v816, %v818
      %v820 = vrot.slane %v806, %v819
      %v821 = vcombine.high %v813, %v813
      %822 = vrot.lane.b32.xlu0 %v813, 95
      %v823 = vpop.permute.xlu0 %822
      %824 = vrot.lane.b32.xlu0 %v821, 95
      %v825 = vpop.permute.xlu0 %824
      %826 = vrot.lane.b32.xlu0 %v820, 95
      %v827 = vpop.permute.xlu0 %826
      %vm828 = vcmask 777216
      %v829 = vsel %vm828, %v823, %v825
      %v830 = vsel %vm828, %v825, %v827
      %v832 = vsel %vm286, %v804, 0
      %v835 = vsel %vm290, %v829, 0
      %v838 = vsel %vm290, %v830, 0
      %840 = vmatprep.subr.bf16.mxu0 0
      %841 = vmatpush1.bf16.msra.mxu0 0
      %842 = vmatprep.subr.bf16.mxu0 0
      %843 = vmatpush1.bf16.msra.mxu0 0
      %844 = vmatprep.subr.bf16.mxu0 0
      %845 = vmatpush1.bf16.msra.mxu0 0
      %846 = vmatprep.subr.bf16.mxu0 0
      %847 = vmatpush1.bf16.msra.mxu0 0
      %848 = vmatprep.subr.bf16.mxu0 0
      %849 = vmatpush1.bf16.msra.mxu0 0
      %850 = vmatprep.subr.bf16.mxu0 0
      %851 = vmatpush1.bf16.msra.mxu0 0
      %852 = vmatprep.subr.bf16.mxu0 0
      %853 = vmatpush1.bf16.msra.mxu0 0
      %854 = vmatprep.subr.bf16.mxu0 %v838
      %855 = vmatpush1.bf16.msra.mxu0 %v835
      %856 = vmatprep.subr.bf16.mxu0 0
      %857 = vmatpush2.bf16.msra.mxu0 0
      %858 = vmatprep.subr.bf16.mxu0 0
      %859 = vmatpush2.bf16.msra.mxu0 0
      %860 = vmatprep.subr.bf16.mxu0 0
      %861 = vmatpush2.bf16.msra.mxu0 0
      %862 = vmatprep.subr.bf16.mxu0 0
      %863 = vmatpush2.bf16.msra.mxu0 0
      %864 = vmatprep.subr.bf16.mxu0 0
      %865 = vmatpush2.bf16.msra.mxu0 0
      %866 = vmatprep.subr.bf16.mxu0 0
      %867 = vmatpush2.bf16.msra.mxu0 0
      %868 = vmatprep.subr.bf16.mxu0 0
      %869 = vmatpush2.bf16.msra.mxu0 0
      %870 = vmatprep.subr.bf16.mxu0 0
      %871 = vmatpush2.bf16.msra.mxu0 0
      %872 = vmatprep.mubr.bf16.mxu0 0
      %873 = vmatmul.mubr.bf16.gmra.mxu0 %v832
      %v874 = vpop.f32.mrf.mxu0
      %v875 = vadd.f32 0.0, %v874
      %v876 = vpop.f32.mrf.mxu0
      %v877 = vadd.f32 0.0, %v876
      %v878 = vpop.f32.mrf.mxu0
      %v879 = vpop.f32.mrf.mxu0
      %880 = vdwg.mxu0
      %v881 = vadd.f32 %v800, %v875
      %v882 = vadd.f32 %v801, %v877
      %v883 = vld [vmem:[%s241] sm:$0x3f]
      %s884 = scalar_lea.vmem %s1, 32
      %v885 = vld [vmem:[%s884] sm:$0xf]
      %v887 = vcombine.high %v883, %v883
      %v889 = vunpack.c.l.s4 1983009808
      %v890 = vunpack.c.0.s8 %v889
      %v891 = vlaneseq
      %v892 = vshrl.u32 %v891, 7
      %v893 = vsub.s32 %v890, %v892
      %v894 = vrot.slane %v883, %v893
      %v896 = vunpack.c.l.s4 1983009808
      %v897 = vunpack.c.0.s8 %v896
      %v898 = vlaneseq
      %v899 = vshrl.u32 %v898, 7
      %v900 = vsub.s32 %v897, %v899
      %v901 = vrot.slane %v887, %v900
      %v902 = vcombine.high %v894, %v894
      %903 = vrot.lane.b32.xlu0 %v894, 94
      %v904 = vpop.permute.xlu0 %903
      %905 = vrot.lane.b32.xlu0 %v902, 94
      %v906 = vpop.permute.xlu0 %905
      %907 = vrot.lane.b32.xlu0 %v901, 94
      %v908 = vpop.permute.xlu0 %907
      %vm909 = vcmask 769024
      %v910 = vsel %vm909, %v904, %v906
      %v911 = vsel %vm909, %v906, %v908
      %v913 = vsel %vm286, %v885, 0
      %v916 = vsel %vm290, %v910, 0
      %v919 = vsel %vm290, %v911, 0
      %921 = vmatprep.subr.bf16.mxu0 0
      %922 = vmatpush1.bf16.msra.mxu0 0
      %923 = vmatprep.subr.bf16.mxu0 0
      %924 = vmatpush1.bf16.msra.mxu0 0
      %925 = vmatprep.subr.bf16.mxu0 0
      %926 = vmatpush1.bf16.msra.mxu0 0
      %927 = vmatprep.subr.bf16.mxu0 0
      %928 = vmatpush1.bf16.msra.mxu0 0
      %929 = vmatprep.subr.bf16.mxu0 0
      %930 = vmatpush1.bf16.msra.mxu0 0
      %931 = vmatprep.subr.bf16.mxu0 0
      %932 = vmatpush1.bf16.msra.mxu0 0
      %933 = vmatprep.subr.bf16.mxu0 0
      %934 = vmatpush1.bf16.msra.mxu0 0
      %935 = vmatprep.subr.bf16.mxu0 %v919
      %936 = vmatpush1.bf16.msra.mxu0 %v916
      %937 = vmatprep.subr.bf16.mxu0 0
      %938 = vmatpush2.bf16.msra.mxu0 0
      %939 = vmatprep.subr.bf16.mxu0 0
      %940 = vmatpush2.bf16.msra.mxu0 0
      %941 = vmatprep.subr.bf16.mxu0 0
      %942 = vmatpush2.bf16.msra.mxu0 0
      %943 = vmatprep.subr.bf16.mxu0 0
      %944 = vmatpush2.bf16.msra.mxu0 0
      %945 = vmatprep.subr.bf16.mxu0 0
      %946 = vmatpush2.bf16.msra.mxu0 0
      %947 = vmatprep.subr.bf16.mxu0 0
      %948 = vmatpush2.bf16.msra.mxu0 0
      %949 = vmatprep.subr.bf16.mxu0 0
      %950 = vmatpush2.bf16.msra.mxu0 0
      %951 = vmatprep.subr.bf16.mxu0 0
      %952 = vmatpush2.bf16.msra.mxu0 0
      %953 = vmatprep.mubr.bf16.mxu0 0
      %954 = vmatmul.mubr.bf16.gmra.mxu0 %v913
      %v955 = vpop.f32.mrf.mxu0
      %v956 = vadd.f32 0.0, %v955
      %v957 = vpop.f32.mrf.mxu0
      %v958 = vadd.f32 0.0, %v957
      %v959 = vpop.f32.mrf.mxu0
      %v960 = vpop.f32.mrf.mxu0
      %961 = vdwg.mxu0
      %v962 = vadd.f32 %v881, %v956
      %v963 = vadd.f32 %v882, %v958
      %v964 = vld [vmem:[%s2] sm:$0xff]
      %966 = vset.pattern.permute.xlu0 0
      %967 = vperm.xlu0 %966, %v964
      %v968 = vpop.permute.xlu0 %967
      %v970 = vadd.f32 %v962, %v968
      %v971 = vadd.f32 %v963, %v968
      %v972 = vmax.f32 %v970, 0.0
      %v973 = vmax.f32 %v971, 0.0
      %974 = vst [vmem:[%s246] sm:$0xff] %v972
      %975 = vst [vmem:[%s246 + $0x8] sm:$0xff] %v973
      %v976 = vld [vmem:[%s3] sm:$0x3]
      %v978 = vlaneseq
      %v979 = vshrl.u32 %v978, 7
      %v980 = vsub.s32 0, %v979
      %v981 = vrot.slane %v976, %v980
      %v982 = vlaneseq
      %v983 = vshrl.u32 %v982, 7
      %v984 = vsub.s32 1, %v983
      %v985 = vrot.slane %v976, %v984
      %v988 = vmul.f32 %v972, %v981
      %v989 = vmul.f32 %v973, %v985
      %v990 = vld [vmem:[%s5] sm:$0xff]
      %v991 = vadd.f32 %v988, %v989
      %992 = vadd.xlane.f32.xlu0 %v991
      %v993 = vpop.xlane.xlu0 %992
      %v994 = vadd.f32 %v990, %v993
      %vm995 = vcmask 7168
      %996 = vst.msk [vmem:[%s5] sm:$0xff] %vm995, %v994
      %v997 = vld [vmem:[%s6] sm:$0xff]
      %v998 = vmul.f32 %v988, %v972
      %v999 = vmul.f32 %v989, %v973
      %v1000 = vadd.f32 %v998, %v999
      %1001 = vadd.xlane.f32.xlu0 %v1000
      %v1002 = vpop.xlane.xlu0 %1001
      %v1003 = vadd.f32 %v997, %v1002
      %1004 = vst.msk [vmem:[%s6] sm:$0xff] %vm995, %v1003
      %p1005 = scmp.lt.s32.totalorder %s18, 1
      %s1006 = scalar_select %p1005, %s18, 1
      %s1007 = smul.addr %s1006, 2
      %s1008 = smul.addr %s1007, 8
      %s1009 = scalar_lea.vmem %s4, %s1008
      // Predicated region
      $region41: #{baseline_cnn_forward.5} parent=35 // pred_check
        %p1010 = pneg %p125
      $region42: #{baseline_cnn_forward.5} parent=35 // pred_check_branch
        %1012 = sbr.rel (%p1010) target = $region44
      $region43: #{baseline_cnn_forward.5} parent=35 // pred_region
        _
      $region44: #{baseline_cnn_forward.5} parent=35 // pred_fallthru
        _
      // Predicated region
      $region45: #{baseline_cnn_forward.5} parent=35 // pred_check
        %p1013 = pneg %p146
      $region46: #{baseline_cnn_forward.5} parent=35 // pred_check_branch
        %1015 = sbr.rel (%p1013) target = $region48
      $region47: #{baseline_cnn_forward.5} parent=35 // pred_region
        _
      $region48: #{baseline_cnn_forward.5} parent=35 // pred_fallthru
        _
      // Predicated region
      $region49: #{baseline_cnn_forward.5} parent=35 // pred_check
        %p1016 = pneg %p167
      $region50: #{baseline_cnn_forward.5} parent=35 // pred_check_branch
        %1018 = sbr.rel (%p1016) target = $region52
      $region51: #{baseline_cnn_forward.5} parent=35 // pred_region
        _
      $region52: #{baseline_cnn_forward.5} parent=35 // pred_fallthru
        _
      // Predicated region
      $region53: #{baseline_cnn_forward.5} parent=35 // pred_check
        %p1019 = pneg %p146
      $region54: #{baseline_cnn_forward.5} parent=35 // pred_check_branch
        %1021 = sbr.rel (%p1019) target = $region56
      $region55: #{baseline_cnn_forward.5} parent=35 // pred_region
        _
      $region56: #{baseline_cnn_forward.5} parent=35 // pred_fallthru
        _
      // Predicated region
      $region57: #{baseline_cnn_forward.5} parent=35 // pred_check
        %p1022 = pneg %p167
      $region58: #{baseline_cnn_forward.5} parent=35 // pred_check_branch
        %1024 = sbr.rel (%p1022) target = $region60
      $region59: #{baseline_cnn_forward.5} parent=35 // pred_region
        _
      $region60: #{baseline_cnn_forward.5} parent=35 // pred_fallthru
        _
    $region36: #{baseline_cnn_forward.5} parent=5 // pred_fallthru
      _
    %p1025 = scmp.le.s32.totalorder 2, %s13
    // Predicated region
    $region61: #{baseline_cnn_forward.5} parent=5 // pred_check
      %p1026 = pneg %p1025
    $region62: #{baseline_cnn_forward.5} parent=5 // pred_check_branch
      %1028 = sbr.rel (%p1026) target = $region64
    $region63: #{baseline_cnn_forward.5} parent=5 // pred_region
      %s1029 = ssub.s32 %s13, 2
      // Predicated region
      $region65: #{baseline_cnn_forward.5} parent=63 // pred_check
        %p1030 = pneg %p131
      $region66: #{baseline_cnn_forward.5} parent=63 // pred_check_branch
        %1032 = sbr.rel (%p1030) target = $region68
      $region67: #{baseline_cnn_forward.5} parent=63 // pred_region
        %p1033 = scmp.lt.s32.totalorder %s19, 1
        %s1034 = scalar_select %p1033, %s19, 1
        %s1035 = smul.addr %s1034, 2
        %s1036 = smul.addr %s1035, 8
        %s1037 = scalar_lea.vmem %s4, %s1036
      $region68: #{baseline_cnn_forward.5} parent=63 // pred_fallthru
        _
    $region64: #{baseline_cnn_forward.5} parent=5 // pred_fallthru
      _
  $region6: #{baseline_cnn_forward.5} parent=0 // loop_footer
    %s17 = sadd.s32 1, %s13
  $region7: #{baseline_cnn_forward.5} parent=0 // loop_footer_branch
    %12 = sbr.rel target = $region3
  $region8: #{baseline_cnn_forward.5} parent=0 // loop_exit
    _

// kernel: baseline_cnn_forward.7
$region0: #{baseline_cnn_forward.7}
  #allocation0 [shape = 'u32[]', space=smem, size = 0x4, offset = 0x4, fixed_abs, tag = 'smem constant byte address 0x4 - core index']
  #allocation1 [shape = 'u32[144,128]{1,0:T(1,128)}', space=vmem, size = 0x12000, scoped, tag = 'internal scratch']
  %s0 = inlined_call_operand.vmem [shape: bf16[2,8,65], index: 0, kind: input, shape index: {}]
  %s1 = inlined_call_operand.vmem [shape: bf16[9,16,8], index: 1, kind: input, shape index: {}]
  %s2 = inlined_call_operand.vmem [shape: f32[16,1], index: 2, kind: input, shape index: {}]
  %s3 = inlined_call_operand.vmem [shape: f32[1,49], index: 3, kind: input, shape index: {}]
  %s4 = inlined_call_operand.vmem [shape: f32[2,16,49], index: 4, kind: output, shape index: {0}]
  %s5 = inlined_call_operand.vmem [shape: f32[16,1], index: 5, kind: output, shape index: {1}]
  %s6 = inlined_call_operand.vmem [shape: f32[16,1], index: 6, kind: output, shape index: {2}]
  %7 = xla_tuple %s4, %s5, %s6
  %s8 = sld [smem:[#allocation0]]
  $region69: #{baseline_cnn_forward.7} parent=0
    _
  %s10 = ssub.s32 1, %s8
  %s11 = scalar_select 0, %s10, %s8
  loop: start=0, step=1, limit=4
  $region2: #{baseline_cnn_forward.7} parent=0 // loop_pre_header
    _
  $region3: #{baseline_cnn_forward.7} parent=0 // loop_header
    %s13 = sphi 0, %s17
    %p14 = scmp.ge.s32.totalorder %s13, 4
    %s23 = sphi 0, %s25
    %s26 = sphi 0, %s23
    %s27 = sphi 0, %s26
    %s43 = sphi 0, %s27
    %s47 = sphi 0, %s47
    %s49 = sphi 0, %s47
    %s50 = sphi 0, %s49
    %s64 = sphi 0, %s50
    %s68 = sphi 0, %s68
    %s70 = sphi 0, %s68
    %s71 = sphi 0, %s70
    %s85 = sphi 0, %s71
    %s89 = sphi 0, %s89
    %s91 = sphi 0, %s89
    %s92 = sphi 0, %s91
    %s106 = sphi 0, %s92
    %s112 = sphi 0, %s114
    %s115 = sphi 0, %s112
    %s116 = sphi 0, %s115
    %s132 = sphi 0, %s116
    %s136 = sphi 0, %s136
    %s138 = sphi 0, %s136
    %s139 = sphi 0, %s138
    %s153 = sphi 0, %s139
    %s157 = sphi 0, %s157
    %s159 = sphi 0, %s157
    %s160 = sphi 0, %s159
    %s174 = sphi 0, %s160
  $region4: #{baseline_cnn_forward.7} parent=0 // loop_header_branch
    %16 = sbr.rel (%p14) target = $region8
  $region5: #{baseline_cnn_forward.7} parent=0 // loop_body
    %s18 = ssub.s32 %s13, 1
    %s19 = ssub.s32 %s13, 2
    %s20 = sadd.s32 %s13, 1
    %s21 = ssub.s32 %s13, %s20
    %p22 = scmp.eq.s32.totalorder %s21, 0
    %s24 = sadd.s32 %s23, 1
    %s25 = scalar_select %p22, %s23, %s24
    %p28 = pneg %p22
    %p29 = scmp.eq.s32.totalorder %s13, 1
    %p30 = por %p28, %p29
    %p31 = scmp.ne.s32.totalorder %s23, %s26
    %p32 = scmp.eq.s32.totalorder %s13, 0
    %p33 = por %p31, %p32
    %p34 = scmp.ne.s32.totalorder %s23, %s26
    %p35 = scmp.eq.s32.totalorder %s18, 1
    %p36 = por %p34, %p35
    %p37 = scmp.ne.s32.totalorder %s26, %s27
    %p38 = scmp.eq.s32.totalorder %s18, 0
    %p39 = por %p37, %p38
    %p40 = scmp.ne.s32.totalorder %s26, %s27
    %p41 = scmp.eq.s32.totalorder %s19, 1
    %p42 = por %p40, %p41
    %p44 = scmp.ne.s32.totalorder %s27, %s43
    %p45 = scmp.eq.s32.totalorder %s19, 0
    %p46 = por %p44, %p45
    %s48 = sadd.s32 %s47, 1
    %p51 = scmp.eq.s32.totalorder %s13, 1
    %p52 = scmp.ne.s32.totalorder %s47, %s49
    %p53 = scmp.eq.s32.totalorder %s13, 0
    %p54 = por %p52, %p53
    %p55 = scmp.ne.s32.totalorder %s47, %s49
    %p56 = scmp.eq.s32.totalorder %s18, 1
    %p57 = por %p55, %p56
    %p58 = scmp.ne.s32.totalorder %s49, %s50
    %p59 = scmp.eq.s32.totalorder %s18, 0
    %p60 = por %p58, %p59
    %p61 = scmp.ne.s32.totalorder %s49, %s50
    %p62 = scmp.eq.s32.totalorder %s19, 1
    %p63 = por %p61, %p62
    %p65 = scmp.ne.s32.totalorder %s50, %s64
    %p66 = scmp.eq.s32.totalorder %s19, 0
    %p67 = por %p65, %p66
    %s69 = sadd.s32 %s68, 1
    %p72 = scmp.eq.s32.totalorder %s13, 1
    %p73 = scmp.ne.s32.totalorder %s68, %s70
    %p74 = scmp.eq.s32.totalorder %s13, 0
    %p75 = por %p73, %p74
    %p76 = scmp.ne.s32.totalorder %s68, %s70
    %p77 = scmp.eq.s32.totalorder %s18, 1
    %p78 = por %p76, %p77
    %p79 = scmp.ne.s32.totalorder %s70, %s71
    %p80 = scmp.eq.s32.totalorder %s18, 0
    %p81 = por %p79, %p80
    %p82 = scmp.ne.s32.totalorder %s70, %s71
    %p83 = scmp.eq.s32.totalorder %s19, 1
    %p84 = por %p82, %p83
    %p86 = scmp.ne.s32.totalorder %s71, %s85
    %p87 = scmp.eq.s32.totalorder %s19, 0
    %p88 = por %p86, %p87
    %s90 = sadd.s32 %s89, 1
    %p93 = scmp.eq.s32.totalorder %s13, 1
    %p94 = scmp.ne.s32.totalorder %s89, %s91
    %p95 = scmp.eq.s32.totalorder %s13, 0
    %p96 = por %p94, %p95
    %p97 = scmp.ne.s32.totalorder %s89, %s91
    %p98 = scmp.eq.s32.totalorder %s18, 1
    %p99 = por %p97, %p98
    %p100 = scmp.ne.s32.totalorder %s91, %s92
    %p101 = scmp.eq.s32.totalorder %s18, 0
    %p102 = por %p100, %p101
    %p103 = scmp.ne.s32.totalorder %s91, %s92
    %p104 = scmp.eq.s32.totalorder %s19, 1
    %p105 = por %p103, %p104
    %p107 = scmp.ne.s32.totalorder %s92, %s106
    %p108 = scmp.eq.s32.totalorder %s19, 0
    %p109 = por %p107, %p108
    %s110 = ssub.s32 %s13, %s20
    %p111 = scmp.eq.s32.totalorder %s110, 0
    %s113 = sadd.s32 %s112, 1
    %s114 = scalar_select %p111, %s112, %s113
    %p117 = pneg %p111
    %p118 = scmp.eq.s32.totalorder %s13, 1
    %p119 = por %p117, %p118
    %p120 = scmp.ne.s32.totalorder %s112, %s115
    %p121 = scmp.eq.s32.totalorder %s13, 0
    %p122 = por %p120, %p121
    %p123 = scmp.ne.s32.totalorder %s112, %s115
    %p124 = scmp.eq.s32.totalorder %s18, 1
    %p125 = por %p123, %p124
    %p126 = scmp.ne.s32.totalorder %s115, %s116
    %p127 = scmp.eq.s32.totalorder %s18, 0
    %p128 = por %p126, %p127
    %p129 = scmp.ne.s32.totalorder %s115, %s116
    %p130 = scmp.eq.s32.totalorder %s19, 1
    %p131 = por %p129, %p130
    %p133 = scmp.ne.s32.totalorder %s116, %s132
    %p134 = scmp.eq.s32.totalorder %s19, 0
    %p135 = por %p133, %p134
    %s137 = sadd.s32 %s136, 1
    %p140 = scmp.eq.s32.totalorder %s13, 1
    %p141 = scmp.ne.s32.totalorder %s136, %s138
    %p142 = scmp.eq.s32.totalorder %s13, 0
    %p143 = por %p141, %p142
    %p144 = scmp.ne.s32.totalorder %s136, %s138
    %p145 = scmp.eq.s32.totalorder %s18, 1
    %p146 = por %p144, %p145
    %p147 = scmp.ne.s32.totalorder %s138, %s139
    %p148 = scmp.eq.s32.totalorder %s18, 0
    %p149 = por %p147, %p148
    %p150 = scmp.ne.s32.totalorder %s138, %s139
    %p151 = scmp.eq.s32.totalorder %s19, 1
    %p152 = por %p150, %p151
    %p154 = scmp.ne.s32.totalorder %s139, %s153
    %p155 = scmp.eq.s32.totalorder %s19, 0
    %p156 = por %p154, %p155
    %s158 = sadd.s32 %s157, 1
    %p161 = scmp.eq.s32.totalorder %s13, 1
    %p162 = scmp.ne.s32.totalorder %s157, %s159
    %p163 = scmp.eq.s32.totalorder %s13, 0
    %p164 = por %p162, %p163
    %p165 = scmp.ne.s32.totalorder %s157, %s159
    %p166 = scmp.eq.s32.totalorder %s18, 1
    %p167 = por %p165, %p166
    %p168 = scmp.ne.s32.totalorder %s159, %s160
    %p169 = scmp.eq.s32.totalorder %s18, 0
    %p170 = por %p168, %p169
    %p171 = scmp.ne.s32.totalorder %s159, %s160
    %p172 = scmp.eq.s32.totalorder %s19, 1
    %p173 = por %p171, %p172
    %p175 = scmp.ne.s32.totalorder %s160, %s174
    %p176 = scmp.eq.s32.totalorder %s19, 0
    %p177 = por %p175, %p176
    %p178 = scmp.le.s32.totalorder 1, %s13
    %p179 = scmp.lt.s32.totalorder %s13, 3
    %p180 = pnand %p178, %p179
    %p181 = pneg %p180
    // Predicated region
    $region9: #{baseline_cnn_forward.7} parent=5 // pred_check
      _
    $region10: #{baseline_cnn_forward.7} parent=5 // pred_check_branch
      %183 = sbr.rel (%p180) target = $region12
    $region11: #{baseline_cnn_forward.7} parent=5 // pred_region
      %s184 = ssub.s32 %s13, 1
      // Predicated region
      $region13: #{baseline_cnn_forward.7} parent=11 // pred_check
        %p185 = pneg %p60
      $region14: #{baseline_cnn_forward.7} parent=11 // pred_check_branch
        %187 = sbr.rel (%p185) target = $region16
      $region15: #{baseline_cnn_forward.7} parent=11 // pred_region
        _
      $region16: #{baseline_cnn_forward.7} parent=11 // pred_fallthru
        _
      // Predicated region
      $region17: #{baseline_cnn_forward.7} parent=11 // pred_check
        %p188 = pneg %p81
      $region18: #{baseline_cnn_forward.7} parent=11 // pred_check_branch
        %190 = sbr.rel (%p188) target = $region20
      $region19: #{baseline_cnn_forward.7} parent=11 // pred_region
        _
      $region20: #{baseline_cnn_forward.7} parent=11 // pred_fallthru
        _
      // Predicated region
      $region21: #{baseline_cnn_forward.7} parent=11 // pred_check
        %p191 = pneg %p102
      $region22: #{baseline_cnn_forward.7} parent=11 // pred_check_branch
        %193 = sbr.rel (%p191) target = $region24
      $region23: #{baseline_cnn_forward.7} parent=11 // pred_region
        _
      $region24: #{baseline_cnn_forward.7} parent=11 // pred_fallthru
        _
    $region12: #{baseline_cnn_forward.7} parent=5 // pred_fallthru
      _
    %p194 = scmp.lt.s32.totalorder %s13, 2
    // Predicated region
    $region25: #{baseline_cnn_forward.7} parent=5 // pred_check
      %p195 = pneg %p194
    $region26: #{baseline_cnn_forward.7} parent=5 // pred_check_branch
      %197 = sbr.rel (%p195) target = $region28
    $region27: #{baseline_cnn_forward.7} parent=5 // pred_region
      // Predicated region
      $region29: #{baseline_cnn_forward.7} parent=27 // pred_check
        %p198 = pneg %p33
      $region30: #{baseline_cnn_forward.7} parent=27 // pred_check_branch
        %200 = sbr.rel (%p198) target = $region32
      $region31: #{baseline_cnn_forward.7} parent=27 // pred_region
        %p201 = scmp.lt.s32.totalorder %s13, 1
        %s202 = scalar_select %p201, %s13, 1
        %s203 = smul.addr %s202, 4
        %s204 = scalar_lea.vmem %s0, %s203
      $region32: #{baseline_cnn_forward.7} parent=27 // pred_fallthru
        _
    $region28: #{baseline_cnn_forward.7} parent=5 // pred_fallthru
      _
    %p205 = scmp.le.s32.totalorder 1, %s13
    %p206 = scmp.lt.s32.totalorder %s13, 3
    %p207 = pnand %p205, %p206
    %p208 = pneg %p207
    // Predicated region
    $region33: #{baseline_cnn_forward.7} parent=5 // pred_check
      _
    $region34: #{baseline_cnn_forward.7} parent=5 // pred_check_branch
      %210 = sbr.rel (%p207) target = $region36
    $region35: #{baseline_cnn_forward.7} parent=5 // pred_region
      %s211 = ssub.s32 %s13, 1
      %p212 = scmp.lt.s32.totalorder %s18, 1
      %s213 = scalar_select %p212, %s18, 1
      %s214 = smul.addr %s213, 4
      %s215 = scalar_lea.vmem %s0, %s214
      %p216 = pneg %p39
      %p217 = pneg %p36
      %p218 = pneg %p60
      %p219 = pneg %p57
      %p220 = pneg %p81
      %p221 = pneg %p78
      %p222 = pneg %p102
      %p223 = pneg %p99
      %p224 = pneg %p128
      %p225 = pneg %p125
      %p226 = scmp.lt.s32.totalorder %s18, 1
      %s227 = scalar_select %p226, %s18, 1
      %s228 = smul.addr %s227, 2
      %s229 = smul.addr %s228, 8
      %s230 = scalar_lea.vmem %s4, %s229
      %p231 = pneg %p149
      %p232 = pneg %p146
      %p233 = pneg %p170
      %p234 = pneg %p167
      %p235 = scmp.lt.s32.totalorder %s18, 1
      %s236 = scalar_select %p235, %s18, 1
      %s237 = smul.addr %s236, 4
      %s238 = scalar_lea.vmem %s0, %s237
      %p239 = scmp.lt.s32.totalorder %s18, 1
      %s240 = scalar_select %p239, %s18, 1
      %s241 = smul.addr %s240, 2
      %s242 = smul.addr %s241, 8
      %s243 = scalar_lea.vmem %s4, %s242
      %p245 = scmp.eq.s32.totalorder %s18, 0
      // Predicated region
      $region37: #{baseline_cnn_forward.7} parent=35 // pred_check
        %p246 = pneg %p245
      $region38: #{baseline_cnn_forward.7} parent=35 // pred_check_branch
        %248 = sbr.rel (%p246) target = $region40
      $region39: #{baseline_cnn_forward.7} parent=35 // pred_region
        %vm249 = vcmask 7168
        %250 = vst.msk [vmem:[%s5] sm:$0xff] %vm249, 0.0
        %251 = vst.msk [vmem:[%s5 + $0x8] sm:$0xff] %vm249, 0.0
        %252 = vst.msk [vmem:[%s6] sm:$0xff] %vm249, 0.0
        %253 = vst.msk [vmem:[%s6 + $0x8] sm:$0xff] %vm249, 0.0
      $region40: #{baseline_cnn_forward.7} parent=35 // pred_fallthru
        _
      %v254 = vld [vmem:[%s238] sm:$0xf]
      %v255 = vld [vmem:[%s1] sm:$0xf]
      %v256 = vld [vmem:[%s1 + $0x4] sm:$0xf]
      %s257 = scalar_lea.vmem %s1, 8
      %v258 = vld [vmem:[%s257] sm:$0xf]
      %v259 = vld [vmem:[%s257 + $0x4] sm:$0xf]
      %v262 = vunpack.c.l.b16 %v258
      %v263 = vunpack.c.l.b16 %v259
      %v264 = vpack.c.b16 %v263, %v262
      %v266 = vunpack.c.l.b16 %v254
      %v267 = vpack.c.b16 %v266, %v266
      %268 = vrot.lane.b32.xlu0 %v267, 127
      %v269 = vpop.permute.xlu0 %268
      %vm270 = vcmask 64512
      %v272 = vsel %vm270, %v264, 0
      %vm274 = vcmask 1043456
      %v276 = vsel %vm274, %v269, 0
      %278 = vmatprep.subr.bf16.mxu0 0
      %279 = vmatpush1.bf16.msra.mxu0 0
      %280 = vmatprep.subr.bf16.mxu0 0
      %281 = vmatpush1.bf16.msra.mxu0 0
      %282 = vmatprep.subr.bf16.mxu0 0
      %283 = vmatpush1.bf16.msra.mxu0 0
      %284 = vmatprep.subr.bf16.mxu0 0
      %285 = vmatpush1.bf16.msra.mxu0 0
      %286 = vmatprep.subr.bf16.mxu0 0
      %287 = vmatpush1.bf16.msra.mxu0 0
      %288 = vmatprep.subr.bf16.mxu0 0
      %289 = vmatpush1.bf16.msra.mxu0 0
      %290 = vmatprep.subr.bf16.mxu0 0
      %291 = vmatpush1.bf16.msra.mxu0 0
      %292 = vmatprep.subr.bf16.mxu0 0
      %293 = vmatpush1.bf16.msra.mxu0 %v276
      %294 = vmatprep.subr.bf16.mxu0 0
      %295 = vmatpush2.bf16.msra.mxu0 0
      %296 = vmatprep.subr.bf16.mxu0 0
      %297 = vmatpush2.bf16.msra.mxu0 0
      %298 = vmatprep.subr.bf16.mxu0 0
      %299 = vmatpush2.bf16.msra.mxu0 0
      %300 = vmatprep.subr.bf16.mxu0 0
      %301 = vmatpush2.bf16.msra.mxu0 0
      %302 = vmatprep.subr.bf16.mxu0 0
      %303 = vmatpush2.bf16.msra.mxu0 0
      %304 = vmatprep.subr.bf16.mxu0 0
      %305 = vmatpush2.bf16.msra.mxu0 0
      %306 = vmatprep.subr.bf16.mxu0 0
      %307 = vmatpush2.bf16.msra.mxu0 0
      %308 = vmatprep.subr.bf16.mxu0 0
      %309 = vmatpush2.bf16.msra.mxu0 0
      %310 = vmatprep.mubr.bf16.mxu0 0
      %311 = vmatmul.mubr.bf16.gmra.mxu0 %v272
      %v312 = vpop.f32.mrf.mxu0
      %v313 = vadd.f32 0.0, %v312
      %v314 = vpop.f32.mrf.mxu0
      %v315 = vpop.f32.mrf.mxu0
      %v316 = vadd.f32 0.0, %v315
      %v317 = vpop.f32.mrf.mxu0
      %318 = vdwg.mxu0
      %v321 = vunpack.c.l.b16 %v255
      %v322 = vunpack.c.l.b16 %v256
      %v323 = vpack.c.b16 %v322, %v321
      %v325 = vsel %vm270, %v323, 0
      %v328 = vsel %vm274, %v254, 0
      %330 = vmatprep.subr.bf16.mxu0 0
      %331 = vmatpush1.bf16.msra.mxu0 0
      %332 = vmatprep.subr.bf16.mxu0 0
      %333 = vmatpush1.bf16.msra.mxu0 0
      %334 = vmatprep.subr.bf16.mxu0 0
      %335 = vmatpush1.bf16.msra.mxu0 0
      %336 = vmatprep.subr.bf16.mxu0 0
      %337 = vmatpush1.bf16.msra.mxu0 0
      %338 = vmatprep.subr.bf16.mxu0 0
      %339 = vmatpush1.bf16.msra.mxu0 0
      %340 = vmatprep.subr.bf16.mxu0 0
      %341 = vmatpush1.bf16.msra.mxu0 0
      %342 = vmatprep.subr.bf16.mxu0 0
      %343 = vmatpush1.bf16.msra.mxu0 0
      %344 = vmatprep.subr.bf16.mxu0 0
      %345 = vmatpush1.bf16.msra.mxu0 %v328
      %346 = vmatprep.subr.bf16.mxu0 0
      %347 = vmatpush2.bf16.msra.mxu0 0
      %348 = vmatprep.subr.bf16.mxu0 0
      %349 = vmatpush2.bf16.msra.mxu0 0
      %350 = vmatprep.subr.bf16.mxu0 0
      %351 = vmatpush2.bf16.msra.mxu0 0
      %352 = vmatprep.subr.bf16.mxu0 0
      %353 = vmatpush2.bf16.msra.mxu0 0
      %354 = vmatprep.subr.bf16.mxu0 0
      %355 = vmatpush2.bf16.msra.mxu0 0
      %356 = vmatprep.subr.bf16.mxu0 0
      %357 = vmatpush2.bf16.msra.mxu0 0
      %358 = vmatprep.subr.bf16.mxu0 0
      %359 = vmatpush2.bf16.msra.mxu0 0
      %360 = vmatprep.subr.bf16.mxu0 0
      %361 = vmatpush2.bf16.msra.mxu0 0
      %362 = vmatprep.mubr.bf16.mxu0 0
      %363 = vmatmul.mubr.bf16.gmra.mxu0 %v325
      %v364 = vpop.f32.mrf.mxu0
      %v365 = vadd.f32 %v313, %v364
      %v366 = vpop.f32.mrf.mxu0
      %v367 = vpop.f32.mrf.mxu0
      %v368 = vadd.f32 %v316, %v367
      %v369 = vpop.f32.mrf.mxu0
      %370 = vdwg.mxu0
      %s371 = scalar_lea.vmem %s1, 16
      %v372 = vld [vmem:[%s371] sm:$0xf]
      %v373 = vld [vmem:[%s371 + $0x4] sm:$0xf]
      %v376 = vunpack.c.l.b16 %v372
      %v377 = vunpack.c.l.b16 %v373
      %v378 = vpack.c.b16 %v377, %v376
      %379 = vrot.lane.b32.xlu0 %v267, 126
      %v380 = vpop.permute.xlu0 %379
      %v382 = vsel %vm270, %v378, 0
      %v385 = vsel %vm274, %v380, 0
      %387 = vmatprep.subr.bf16.mxu0 0
      %388 = vmatpush1.bf16.msra.mxu0 0
      %389 = vmatprep.subr.bf16.mxu0 0
      %390 = vmatpush1.bf16.msra.mxu0 0
      %391 = vmatprep.subr.bf16.mxu0 0
      %392 = vmatpush1.bf16.msra.mxu0 0
      %393 = vmatprep.subr.bf16.mxu0 0
      %394 = vmatpush1.bf16.msra.mxu0 0
      %395 = vmatprep.subr.bf16.mxu0 0
      %396 = vmatpush1.bf16.msra.mxu0 0
      %397 = vmatprep.subr.bf16.mxu0 0
      %398 = vmatpush1.bf16.msra.mxu0 0
      %399 = vmatprep.subr.bf16.mxu0 0
      %400 = vmatpush1.bf16.msra.mxu0 0
      %401 = vmatprep.subr.bf16.mxu0 0
      %402 = vmatpush1.bf16.msra.mxu0 %v385
      %403 = vmatprep.subr.bf16.mxu0 0
      %404 = vmatpush2.bf16.msra.mxu0 0
      %405 = vmatprep.subr.bf16.mxu0 0
      %406 = vmatpush2.bf16.msra.mxu0 0
      %407 = vmatprep.subr.bf16.mxu0 0
      %408 = vmatpush2.bf16.msra.mxu0 0
      %409 = vmatprep.subr.bf16.mxu0 0
      %410 = vmatpush2.bf16.msra.mxu0 0
      %411 = vmatprep.subr.bf16.mxu0 0
      %412 = vmatpush2.bf16.msra.mxu0 0
      %413 = vmatprep.subr.bf16.mxu0 0
      %414 = vmatpush2.bf16.msra.mxu0 0
      %415 = vmatprep.subr.bf16.mxu0 0
      %416 = vmatpush2.bf16.msra.mxu0 0
      %417 = vmatprep.subr.bf16.mxu0 0
      %418 = vmatpush2.bf16.msra.mxu0 0
      %419 = vmatprep.mubr.bf16.mxu0 0
      %420 = vmatmul.mubr.bf16.gmra.mxu0 %v382
      %v421 = vpop.f32.mrf.mxu0
      %v422 = vadd.f32 0.0, %v421
      %v423 = vpop.f32.mrf.mxu0
      %v424 = vpop.f32.mrf.mxu0
      %v425 = vadd.f32 0.0, %v424
      %v426 = vpop.f32.mrf.mxu0
      %427 = vdwg.mxu0
      %v428 = vadd.f32 %v365, %v422
      %v429 = vadd.f32 %v368, %v425
      %s430 = scalar_lea.vmem %s1, 24
      %v431 = vld [vmem:[%s430] sm:$0xf]
      %v432 = vld [vmem:[%s430 + $0x4] sm:$0xf]
      %v435 = vunpack.c.l.b16 %v431
      %v436 = vunpack.c.l.b16 %v432
      %v437 = vpack.c.b16 %v436, %v435
      %438 = vrot.lane.b32.xlu0 %v267, 121
      %v439 = vpop.permute.xlu0 %438
      %v441 = vsel %vm270, %v437, 0
      %v444 = vsel %vm274, %v439, 0
      %446 = vmatprep.subr.bf16.mxu0 0
      %447 = vmatpush1.bf16.msra.mxu0 0
      %448 = vmatprep.subr.bf16.mxu0 0
      %449 = vmatpush1.bf16.msra.mxu0 0
      %450 = vmatprep.subr.bf16.mxu0 0
      %451 = vmatpush1.bf16.msra.mxu0 0
      %452 = vmatprep.subr.bf16.mxu0 0
      %453 = vmatpush1.bf16.msra.mxu0 0
      %454 = vmatprep.subr.bf16.mxu0 0
      %455 = vmatpush1.bf16.msra.mxu0 0
      %456 = vmatprep.subr.bf16.mxu0 0
      %457 = vmatpush1.bf16.msra.mxu0 0
      %458 = vmatprep.subr.bf16.mxu0 0
      %459 = vmatpush1.bf16.msra.mxu0 0
      %460 = vmatprep.subr.bf16.mxu0 0
      %461 = vmatpush1.bf16.msra.mxu0 %v444
      %462 = vmatprep.subr.bf16.mxu0 0
      %463 = vmatpush2.bf16.msra.mxu0 0
      %464 = vmatprep.subr.bf16.mxu0 0
      %465 = vmatpush2.bf16.msra.mxu0 0
      %466 = vmatprep.subr.bf16.mxu0 0
      %467 = vmatpush2.bf16.msra.mxu0 0
      %468 = vmatprep.subr.bf16.mxu0 0
      %469 = vmatpush2.bf16.msra.mxu0 0
      %470 = vmatprep.subr.bf16.mxu0 0
      %471 = vmatpush2.bf16.msra.mxu0 0
      %472 = vmatprep.subr.bf16.mxu0 0
      %473 = vmatpush2.bf16.msra.mxu0 0
      %474 = vmatprep.subr.bf16.mxu0 0
      %475 = vmatpush2.bf16.msra.mxu0 0
      %476 = vmatprep.subr.bf16.mxu0 0
      %477 = vmatpush2.bf16.msra.mxu0 0
      %478 = vmatprep.mubr.bf16.mxu0 0
      %479 = vmatmul.mubr.bf16.gmra.mxu0 %v441
      %v480 = vpop.f32.mrf.mxu0
      %v481 = vadd.f32 0.0, %v480
      %v482 = vpop.f32.mrf.mxu0
      %v483 = vpop.f32.mrf.mxu0
      %v484 = vadd.f32 0.0, %v483
      %v485 = vpop.f32.mrf.mxu0
      %486 = vdwg.mxu0
      %v487 = vadd.f32 %v428, %v481
      %v488 = vadd.f32 %v429, %v484
      %s489 = scalar_lea.vmem %s1, 32
      %v490 = vld [vmem:[%s489] sm:$0xf]
      %v491 = vld [vmem:[%s489 + $0x4] sm:$0xf]
      %v494 = vunpack.c.l.b16 %v490
      %v495 = vunpack.c.l.b16 %v491
      %v496 = vpack.c.b16 %v495, %v494
      %497 = vrot.lane.b32.xlu0 %v267, 120
      %v498 = vpop.permute.xlu0 %497
      %v500 = vsel %vm270, %v496, 0
      %v503 = vsel %vm274, %v498, 0
      %505 = vmatprep.subr.bf16.mxu0 0
      %506 = vmatpush1.bf16.msra.mxu0 0
      %507 = vmatprep.subr.bf16.mxu0 0
      %508 = vmatpush1.bf16.msra.mxu0 0
      %509 = vmatprep.subr.bf16.mxu0 0
      %510 = vmatpush1.bf16.msra.mxu0 0
      %511 = vmatprep.subr.bf16.mxu0 0
      %512 = vmatpush1.bf16.msra.mxu0 0
      %513 = vmatprep.subr.bf16.mxu0 0
      %514 = vmatpush1.bf16.msra.mxu0 0
      %515 = vmatprep.subr.bf16.mxu0 0
      %516 = vmatpush1.bf16.msra.mxu0 0
      %517 = vmatprep.subr.bf16.mxu0 0
      %518 = vmatpush1.bf16.msra.mxu0 0
      %519 = vmatprep.subr.bf16.mxu0 0
      %520 = vmatpush1.bf16.msra.mxu0 %v503
      %521 = vmatprep.subr.bf16.mxu0 0
      %522 = vmatpush2.bf16.msra.mxu0 0
      %523 = vmatprep.subr.bf16.mxu0 0
      %524 = vmatpush2.bf16.msra.mxu0 0
      %525 = vmatprep.subr.bf16.mxu0 0
      %526 = vmatpush2.bf16.msra.mxu0 0
      %527 = vmatprep.subr.bf16.mxu0 0
      %528 = vmatpush2.bf16.msra.mxu0 0
      %529 = vmatprep.subr.bf16.mxu0 0
      %530 = vmatpush2.bf16.msra.mxu0 0
      %531 = vmatprep.subr.bf16.mxu0 0
      %532 = vmatpush2.bf16.msra.mxu0 0
      %533 = vmatprep.subr.bf16.mxu0 0
      %534 = vmatpush2.bf16.msra.mxu0 0
      %535 = vmatprep.subr.bf16.mxu0 0
      %536 = vmatpush2.bf16.msra.mxu0 0
      %537 = vmatprep.mubr.bf16.mxu0 0
      %538 = vmatmul.mubr.bf16.gmra.mxu0 %v500
      %v539 = vpop.f32.mrf.mxu0
      %v540 = vadd.f32 0.0, %v539
      %v541 = vpop.f32.mrf.mxu0
      %v542 = vpop.f32.mrf.mxu0
      %v543 = vadd.f32 0.0, %v542
      %v544 = vpop.f32.mrf.mxu0
      %545 = vdwg.mxu0
      %v546 = vadd.f32 %v487, %v540
      %v547 = vadd.f32 %v488, %v543
      %s548 = scalar_lea.vmem %s1, 40
      %v549 = vld [vmem:[%s548] sm:$0xf]
      %v550 = vld [vmem:[%s548 + $0x4] sm:$0xf]
      %v553 = vunpack.c.l.b16 %v549
      %v554 = vunpack.c.l.b16 %v550
      %v555 = vpack.c.b16 %v554, %v553
      %556 = vrot.lane.b32.xlu0 %v267, 119
      %v557 = vpop.permute.xlu0 %556
      %v559 = vsel %vm270, %v555, 0
      %v562 = vsel %vm274, %v557, 0
      %564 = vmatprep.subr.bf16.mxu0 0
      %565 = vmatpush1.bf16.msra.mxu0 0
      %566 = vmatprep.subr.bf16.mxu0 0
      %567 = vmatpush1.bf16.msra.mxu0 0
      %568 = vmatprep.subr.bf16.mxu0 0
      %569 = vmatpush1.bf16.msra.mxu0 0
      %570 = vmatprep.subr.bf16.mxu0 0
      %571 = vmatpush1.bf16.msra.mxu0 0
      %572 = vmatprep.subr.bf16.mxu0 0
      %573 = vmatpush1.bf16.msra.mxu0 0
      %574 = vmatprep.subr.bf16.mxu0 0
      %575 = vmatpush1.bf16.msra.mxu0 0
      %576 = vmatprep.subr.bf16.mxu0 0
      %577 = vmatpush1.bf16.msra.mxu0 0
      %578 = vmatprep.subr.bf16.mxu0 0
      %579 = vmatpush1.bf16.msra.mxu0 %v562
      %580 = vmatprep.subr.bf16.mxu0 0
      %581 = vmatpush2.bf16.msra.mxu0 0
      %582 = vmatprep.subr.bf16.mxu0 0
      %583 = vmatpush2.bf16.msra.mxu0 0
      %584 = vmatprep.subr.bf16.mxu0 0
      %585 = vmatpush2.bf16.msra.mxu0 0
      %586 = vmatprep.subr.bf16.mxu0 0
      %587 = vmatpush2.bf16.msra.mxu0 0
      %588 = vmatprep.subr.bf16.mxu0 0
      %589 = vmatpush2.bf16.msra.mxu0 0
      %590 = vmatprep.subr.bf16.mxu0 0
      %591 = vmatpush2.bf16.msra.mxu0 0
      %592 = vmatprep.subr.bf16.mxu0 0
      %593 = vmatpush2.bf16.msra.mxu0 0
      %594 = vmatprep.subr.bf16.mxu0 0
      %595 = vmatpush2.bf16.msra.mxu0 0
      %596 = vmatprep.mubr.bf16.mxu0 0
      %597 = vmatmul.mubr.bf16.gmra.mxu0 %v559
      %v598 = vpop.f32.mrf.mxu0
      %v599 = vadd.f32 0.0, %v598
      %v600 = vpop.f32.mrf.mxu0
      %v601 = vpop.f32.mrf.mxu0
      %v602 = vadd.f32 0.0, %v601
      %v603 = vpop.f32.mrf.mxu0
      %604 = vdwg.mxu0
      %v605 = vadd.f32 %v546, %v599
      %v606 = vadd.f32 %v547, %v602
      %s607 = scalar_lea.vmem %s1, 48
      %v608 = vld [vmem:[%s607] sm:$0xf]
      %v609 = vld [vmem:[%s607 + $0x4] sm:$0xf]
      %v612 = vunpack.c.l.b16 %v608
      %v613 = vunpack.c.l.b16 %v609
      %v614 = vpack.c.b16 %v613, %v612
      %615 = vrot.lane.b32.xlu0 %v267, 114
      %v616 = vpop.permute.xlu0 %615
      %v618 = vsel %vm270, %v614, 0
      %v621 = vsel %vm274, %v616, 0
      %623 = vmatprep.subr.bf16.mxu0 0
      %624 = vmatpush1.bf16.msra.mxu0 0
      %625 = vmatprep.subr.bf16.mxu0 0
      %626 = vmatpush1.bf16.msra.mxu0 0
      %627 = vmatprep.subr.bf16.mxu0 0
      %628 = vmatpush1.bf16.msra.mxu0 0
      %629 = vmatprep.subr.bf16.mxu0 0
      %630 = vmatpush1.bf16.msra.mxu0 0
      %631 = vmatprep.subr.bf16.mxu0 0
      %632 = vmatpush1.bf16.msra.mxu0 0
      %633 = vmatprep.subr.bf16.mxu0 0
      %634 = vmatpush1.bf16.msra.mxu0 0
      %635 = vmatprep.subr.bf16.mxu0 0
      %636 = vmatpush1.bf16.msra.mxu0 0
      %637 = vmatprep.subr.bf16.mxu0 0
      %638 = vmatpush1.bf16.msra.mxu0 %v621
      %639 = vmatprep.subr.bf16.mxu0 0
      %640 = vmatpush2.bf16.msra.mxu0 0
      %641 = vmatprep.subr.bf16.mxu0 0
      %642 = vmatpush2.bf16.msra.mxu0 0
      %643 = vmatprep.subr.bf16.mxu0 0
      %644 = vmatpush2.bf16.msra.mxu0 0
      %645 = vmatprep.subr.bf16.mxu0 0
      %646 = vmatpush2.bf16.msra.mxu0 0
      %647 = vmatprep.subr.bf16.mxu0 0
      %648 = vmatpush2.bf16.msra.mxu0 0
      %649 = vmatprep.subr.bf16.mxu0 0
      %650 = vmatpush2.bf16.msra.mxu0 0
      %651 = vmatprep.subr.bf16.mxu0 0
      %652 = vmatpush2.bf16.msra.mxu0 0
      %653 = vmatprep.subr.bf16.mxu0 0
      %654 = vmatpush2.bf16.msra.mxu0 0
      %655 = vmatprep.mubr.bf16.mxu0 0
      %656 = vmatmul.mubr.bf16.gmra.mxu0 %v618
      %v657 = vpop.f32.mrf.mxu0
      %v658 = vadd.f32 0.0, %v657
      %v659 = vpop.f32.mrf.mxu0
      %v660 = vpop.f32.mrf.mxu0
      %v661 = vadd.f32 0.0, %v660
      %v662 = vpop.f32.mrf.mxu0
      %663 = vdwg.mxu0
      %v664 = vadd.f32 %v605, %v658
      %v665 = vadd.f32 %v606, %v661
      %s666 = scalar_lea.vmem %s1, 56
      %v667 = vld [vmem:[%s666] sm:$0xf]
      %v668 = vld [vmem:[%s666 + $0x4] sm:$0xf]
      %v671 = vunpack.c.l.b16 %v667
      %v672 = vunpack.c.l.b16 %v668
      %v673 = vpack.c.b16 %v672, %v671
      %674 = vrot.lane.b32.xlu0 %v267, 113
      %v675 = vpop.permute.xlu0 %674
      %v677 = vsel %vm270, %v673, 0
      %v680 = vsel %vm274, %v675, 0
      %682 = vmatprep.subr.bf16.mxu0 0
      %683 = vmatpush1.bf16.msra.mxu0 0
      %684 = vmatprep.subr.bf16.mxu0 0
      %685 = vmatpush1.bf16.msra.mxu0 0
      %686 = vmatprep.subr.bf16.mxu0 0
      %687 = vmatpush1.bf16.msra.mxu0 0
      %688 = vmatprep.subr.bf16.mxu0 0
      %689 = vmatpush1.bf16.msra.mxu0 0
      %690 = vmatprep.subr.bf16.mxu0 0
      %691 = vmatpush1.bf16.msra.mxu0 0
      %692 = vmatprep.subr.bf16.mxu0 0
      %693 = vmatpush1.bf16.msra.mxu0 0
      %694 = vmatprep.subr.bf16.mxu0 0
      %695 = vmatpush1.bf16.msra.mxu0 0
      %696 = vmatprep.subr.bf16.mxu0 0
      %697 = vmatpush1.bf16.msra.mxu0 %v680
      %698 = vmatprep.subr.bf16.mxu0 0
      %699 = vmatpush2.bf16.msra.mxu0 0
      %700 = vmatprep.subr.bf16.mxu0 0
      %701 = vmatpush2.bf16.msra.mxu0 0
      %702 = vmatprep.subr.bf16.mxu0 0
      %703 = vmatpush2.bf16.msra.mxu0 0
      %704 = vmatprep.subr.bf16.mxu0 0
      %705 = vmatpush2.bf16.msra.mxu0 0
      %706 = vmatprep.subr.bf16.mxu0 0
      %707 = vmatpush2.bf16.msra.mxu0 0
      %708 = vmatprep.subr.bf16.mxu0 0
      %709 = vmatpush2.bf16.msra.mxu0 0
      %710 = vmatprep.subr.bf16.mxu0 0
      %711 = vmatpush2.bf16.msra.mxu0 0
      %712 = vmatprep.subr.bf16.mxu0 0
      %713 = vmatpush2.bf16.msra.mxu0 0
      %714 = vmatprep.mubr.bf16.mxu0 0
      %715 = vmatmul.mubr.bf16.gmra.mxu0 %v677
      %v716 = vpop.f32.mrf.mxu0
      %v717 = vadd.f32 0.0, %v716
      %v718 = vpop.f32.mrf.mxu0
      %v719 = vpop.f32.mrf.mxu0
      %v720 = vadd.f32 0.0, %v719
      %v721 = vpop.f32.mrf.mxu0
      %722 = vdwg.mxu0
      %v723 = vadd.f32 %v664, %v717
      %v724 = vadd.f32 %v665, %v720
      %s725 = scalar_lea.vmem %s1, 64
      %v726 = vld [vmem:[%s725] sm:$0xf]
      %v727 = vld [vmem:[%s725 + $0x4] sm:$0xf]
      %v730 = vunpack.c.l.b16 %v726
      %v731 = vunpack.c.l.b16 %v727
      %v732 = vpack.c.b16 %v731, %v730
      %733 = vrot.lane.b32.xlu0 %v267, 112
      %v734 = vpop.permute.xlu0 %733
      %v736 = vsel %vm270, %v732, 0
      %v739 = vsel %vm274, %v734, 0
      %741 = vmatprep.subr.bf16.mxu0 0
      %742 = vmatpush1.bf16.msra.mxu0 0
      %743 = vmatprep.subr.bf16.mxu0 0
      %744 = vmatpush1.bf16.msra.mxu0 0
      %745 = vmatprep.subr.bf16.mxu0 0
      %746 = vmatpush1.bf16.msra.mxu0 0
      %747 = vmatprep.subr.bf16.mxu0 0
      %748 = vmatpush1.bf16.msra.mxu0 0
      %749 = vmatprep.subr.bf16.mxu0 0
      %750 = vmatpush1.bf16.msra.mxu0 0
      %751 = vmatprep.subr.bf16.mxu0 0
      %752 = vmatpush1.bf16.msra.mxu0 0
      %753 = vmatprep.subr.bf16.mxu0 0
      %754 = vmatpush1.bf16.msra.mxu0 0
      %755 = vmatprep.subr.bf16.mxu0 0
      %756 = vmatpush1.bf16.msra.mxu0 %v739
      %757 = vmatprep.subr.bf16.mxu0 0
      %758 = vmatpush2.bf16.msra.mxu0 0
      %759 = vmatprep.subr.bf16.mxu0 0
      %760 = vmatpush2.bf16.msra.mxu0 0
      %761 = vmatprep.subr.bf16.mxu0 0
      %762 = vmatpush2.bf16.msra.mxu0 0
      %763 = vmatprep.subr.bf16.mxu0 0
      %764 = vmatpush2.bf16.msra.mxu0 0
      %765 = vmatprep.subr.bf16.mxu0 0
      %766 = vmatpush2.bf16.msra.mxu0 0
      %767 = vmatprep.subr.bf16.mxu0 0
      %768 = vmatpush2.bf16.msra.mxu0 0
      %769 = vmatprep.subr.bf16.mxu0 0
      %770 = vmatpush2.bf16.msra.mxu0 0
      %771 = vmatprep.subr.bf16.mxu0 0
      %772 = vmatpush2.bf16.msra.mxu0 0
      %773 = vmatprep.mubr.bf16.mxu0 0
      %774 = vmatmul.mubr.bf16.gmra.mxu0 %v736
      %v775 = vpop.f32.mrf.mxu0
      %v776 = vadd.f32 0.0, %v775
      %v777 = vpop.f32.mrf.mxu0
      %v778 = vpop.f32.mrf.mxu0
      %v779 = vadd.f32 0.0, %v778
      %v780 = vpop.f32.mrf.mxu0
      %781 = vdwg.mxu0
      %v782 = vadd.f32 %v723, %v776
      %v783 = vadd.f32 %v724, %v779
      %v784 = vld [vmem:[%s2] sm:$0xff]
      %v785 = vld [vmem:[%s2 + $0x8] sm:$0xff]
      %787 = vset.pattern.permute.xlu0 0
      %788 = vperm.xlu0 %787, %v784
      %v789 = vpop.permute.xlu0 %788
      %792 = vset.pattern.permute.xlu0 0
      %793 = vperm.xlu0 %792, %v785
      %v794 = vpop.permute.xlu0 %793
      %v796 = vadd.f32 %v782, %v789
      %v797 = vadd.f32 %v783, %v794
      %v798 = vmax.f32 %v796, 0.0
      %v799 = vmax.f32 %v797, 0.0
      %vm800 = vcmask 400384
      %801 = vst.msk [vmem:[%s243] sm:$0xff] %vm800, %v798
      %802 = vst.msk [vmem:[%s243 + $0x8] sm:$0xff] %vm800, %v799
      %v803 = vld [vmem:[%s3] sm:$0x1]
      %v805 = vlaneseq
      %v806 = vshrl.u32 %v805, 7
      %v807 = vsub.s32 0, %v806
      %v808 = vrot.slane %v803, %v807
      %v810 = vmul.f32 %v798, %v808
      %v811 = vmul.f32 %v799, %v808
      %v812 = vld [vmem:[%s5] sm:$0xff]
      %v813 = vld [vmem:[%s5 + $0x8] sm:$0xff]
      %v814 = vsel %vm800, %v810, 0.0
      %815 = vadd.xlane.f32.xlu0 %v814
      %v816 = vpop.xlane.xlu0 %815
      %v817 = vsel %vm800, %v811, 0.0
      %818 = vadd.xlane.f32.xlu0 %v817
      %v819 = vpop.xlane.xlu0 %818
      %v820 = vadd.f32 %v812, %v816
      %v821 = vadd.f32 %v813, %v819
      %vm822 = vcmask 7168
      %823 = vst.msk [vmem:[%s5] sm:$0xff] %vm822, %v820
      %824 = vst.msk [vmem:[%s5 + $0x8] sm:$0xff] %vm822, %v821
      %v825 = vld [vmem:[%s6] sm:$0xff]
      %v826 = vld [vmem:[%s6 + $0x8] sm:$0xff]
      %v827 = vmul.f32 %v810, %v798
      %v828 = vmul.f32 %v811, %v799
      %v829 = vsel %vm800, %v827, 0.0
      %830 = vadd.xlane.f32.xlu0 %v829
      %v831 = vpop.xlane.xlu0 %830
      %v832 = vsel %vm800, %v828, 0.0
      %833 = vadd.xlane.f32.xlu0 %v832
      %v834 = vpop.xlane.xlu0 %833
      %v835 = vadd.f32 %v825, %v831
      %v836 = vadd.f32 %v826, %v834
      %837 = vst.msk [vmem:[%s6] sm:$0xff] %vm822, %v835
      %838 = vst.msk [vmem:[%s6 + $0x8] sm:$0xff] %vm822, %v836
      %p839 = scmp.lt.s32.totalorder %s18, 1
      %s840 = scalar_select %p839, %s18, 1
      %s841 = smul.addr %s840, 2
      %s842 = smul.addr %s841, 8
      %s843 = scalar_lea.vmem %s4, %s842
      // Predicated region
      $region41: #{baseline_cnn_forward.7} parent=35 // pred_check
        %p844 = pneg %p125
      $region42: #{baseline_cnn_forward.7} parent=35 // pred_check_branch
        %846 = sbr.rel (%p844) target = $region44
      $region43: #{baseline_cnn_forward.7} parent=35 // pred_region
        _
      $region44: #{baseline_cnn_forward.7} parent=35 // pred_fallthru
        _
      // Predicated region
      $region45: #{baseline_cnn_forward.7} parent=35 // pred_check
        %p847 = pneg %p146
      $region46: #{baseline_cnn_forward.7} parent=35 // pred_check_branch
        %849 = sbr.rel (%p847) target = $region48
      $region47: #{baseline_cnn_forward.7} parent=35 // pred_region
        _
      $region48: #{baseline_cnn_forward.7} parent=35 // pred_fallthru
        _
      // Predicated region
      $region49: #{baseline_cnn_forward.7} parent=35 // pred_check
        %p850 = pneg %p167
      $region50: #{baseline_cnn_forward.7} parent=35 // pred_check_branch
        %852 = sbr.rel (%p850) target = $region52
      $region51: #{baseline_cnn_forward.7} parent=35 // pred_region
        _
      $region52: #{baseline_cnn_forward.7} parent=35 // pred_fallthru
        _
      // Predicated region
      $region53: #{baseline_cnn_forward.7} parent=35 // pred_check
        %p853 = pneg %p146
      $region54: #{baseline_cnn_forward.7} parent=35 // pred_check_branch
        %855 = sbr.rel (%p853) target = $region56
      $region55: #{baseline_cnn_forward.7} parent=35 // pred_region
        _
      $region56: #{baseline_cnn_forward.7} parent=35 // pred_fallthru
        _
      // Predicated region
      $region57: #{baseline_cnn_forward.7} parent=35 // pred_check
        %p856 = pneg %p167
      $region58: #{baseline_cnn_forward.7} parent=35 // pred_check_branch
        %858 = sbr.rel (%p856) target = $region60
      $region59: #{baseline_cnn_forward.7} parent=35 // pred_region
        _
      $region60: #{baseline_cnn_forward.7} parent=35 // pred_fallthru
        _
    $region36: #{baseline_cnn_forward.7} parent=5 // pred_fallthru
      _
    %p859 = scmp.le.s32.totalorder 2, %s13
    // Predicated region
    $region61: #{baseline_cnn_forward.7} parent=5 // pred_check
      %p860 = pneg %p859
    $region62: #{baseline_cnn_forward.7} parent=5 // pred_check_branch
      %862 = sbr.rel (%p860) target = $region64
    $region63: #{baseline_cnn_forward.7} parent=5 // pred_region
      %s863 = ssub.s32 %s13, 2
      // Predicated region
      $region65: #{baseline_cnn_forward.7} parent=63 // pred_check
        %p864 = pneg %p131
      $region66: #{baseline_cnn_forward.7} parent=63 // pred_check_branch
        %866 = sbr.rel (%p864) target = $region68
      $region67: #{baseline_cnn_forward.7} parent=63 // pred_region
        %p867 = scmp.lt.s32.totalorder %s19, 1
        %s868 = scalar_select %p867, %s19, 1
        %s869 = smul.addr %s868, 2
        %s870 = smul.addr %s869, 8
        %s871 = scalar_lea.vmem %s4, %s870
      $region68: #{baseline_cnn_forward.7} parent=63 // pred_fallthru
        _
    $region64: #{baseline_cnn_forward.7} parent=5 // pred_fallthru
      _
  $region6: #{baseline_cnn_forward.7} parent=0 // loop_footer
    %s17 = sadd.s32 1, %s13
  $region7: #{baseline_cnn_forward.7} parent=0 // loop_footer_branch
    %12 = sbr.rel target = $region3
  $region8: #{baseline_cnn_forward.7} parent=0 // loop_exit
    _

// kernel: baseline_cnn_forward.8
$region0: #{baseline_cnn_forward.8}
  #allocation0 [shape = 'u32[]', space=smem, size = 0x4, offset = 0x4, fixed_abs, tag = 'smem constant byte address 0x4 - core index']
  #allocation1 [shape = 'u32[144,128]{1,0:T(1,128)}', space=vmem, size = 0x12000, scoped, tag = 'internal scratch']
  %s0 = inlined_call_operand.vmem [shape: f32[2,16,7,7], index: 0, kind: input, shape index: {}]
  %s1 = inlined_call_operand.vmem [shape: f32[1,16,1,1], index: 1, kind: input, shape index: {}]
  %s2 = inlined_call_operand.vmem [shape: f32[1,16,1,1], index: 2, kind: input, shape index: {}]
  %s3 = inlined_call_operand.vmem [shape: f32[2,16,2,7], index: 3, kind: output, shape index: {}]
  %s4 = sld [smem:[#allocation0]]
  $region45: #{baseline_cnn_forward.8} parent=0
    _
  %s6 = ssub.s32 1, %s4
  %s7 = scalar_select 0, %s6, %s4
  loop: start=0, step=1, limit=4
  $region2: #{baseline_cnn_forward.8} parent=0 // loop_pre_header
    _
  $region3: #{baseline_cnn_forward.8} parent=0 // loop_header
    %s9 = sphi 0, %s13
    %p10 = scmp.ge.s32.totalorder %s9, 4
    %s19 = sphi 0, %s21
    %s22 = sphi 0, %s19
    %s23 = sphi 0, %s22
    %s39 = sphi 0, %s23
    %s43 = sphi 0, %s43
    %s45 = sphi 0, %s43
    %s46 = sphi 0, %s45
    %s60 = sphi 0, %s46
    %s64 = sphi 0, %s64
    %s66 = sphi 0, %s64
    %s67 = sphi 0, %s66
    %s81 = sphi 0, %s67
    %s87 = sphi 0, %s89
    %s90 = sphi 0, %s87
    %s91 = sphi 0, %s90
    %s107 = sphi 0, %s91
  $region4: #{baseline_cnn_forward.8} parent=0 // loop_header_branch
    %12 = sbr.rel (%p10) target = $region8
  $region5: #{baseline_cnn_forward.8} parent=0 // loop_body
    %s14 = ssub.s32 %s9, 1
    %s15 = ssub.s32 %s9, 2
    %s16 = sadd.s32 %s9, 1
    %s17 = ssub.s32 %s9, %s16
    %p18 = scmp.eq.s32.totalorder %s17, 0
    %s20 = sadd.s32 %s19, 1
    %s21 = scalar_select %p18, %s19, %s20
    %p24 = pneg %p18
    %p25 = scmp.eq.s32.totalorder %s9, 1
    %p26 = por %p24, %p25
    %p27 = scmp.ne.s32.totalorder %s19, %s22
    %p28 = scmp.eq.s32.totalorder %s9, 0
    %p29 = por %p27, %p28
    %p30 = scmp.ne.s32.totalorder %s19, %s22
    %p31 = scmp.eq.s32.totalorder %s14, 1
    %p32 = por %p30, %p31
    %p33 = scmp.ne.s32.totalorder %s22, %s23
    %p34 = scmp.eq.s32.totalorder %s14, 0
    %p35 = por %p33, %p34
    %p36 = scmp.ne.s32.totalorder %s22, %s23
    %p37 = scmp.eq.s32.totalorder %s15, 1
    %p38 = por %p36, %p37
    %p40 = scmp.ne.s32.totalorder %s23, %s39
    %p41 = scmp.eq.s32.totalorder %s15, 0
    %p42 = por %p40, %p41
    %s44 = sadd.s32 %s43, 1
    %p47 = scmp.eq.s32.totalorder %s9, 1
    %p48 = scmp.ne.s32.totalorder %s43, %s45
    %p49 = scmp.eq.s32.totalorder %s9, 0
    %p50 = por %p48, %p49
    %p51 = scmp.ne.s32.totalorder %s43, %s45
    %p52 = scmp.eq.s32.totalorder %s14, 1
    %p53 = por %p51, %p52
    %p54 = scmp.ne.s32.totalorder %s45, %s46
    %p55 = scmp.eq.s32.totalorder %s14, 0
    %p56 = por %p54, %p55
    %p57 = scmp.ne.s32.totalorder %s45, %s46
    %p58 = scmp.eq.s32.totalorder %s15, 1
    %p59 = por %p57, %p58
    %p61 = scmp.ne.s32.totalorder %s46, %s60
    %p62 = scmp.eq.s32.totalorder %s15, 0
    %p63 = por %p61, %p62
    %s65 = sadd.s32 %s64, 1
    %p68 = scmp.eq.s32.totalorder %s9, 1
    %p69 = scmp.ne.s32.totalorder %s64, %s66
    %p70 = scmp.eq.s32.totalorder %s9, 0
    %p71 = por %p69, %p70
    %p72 = scmp.ne.s32.totalorder %s64, %s66
    %p73 = scmp.eq.s32.totalorder %s14, 1
    %p74 = por %p72, %p73
    %p75 = scmp.ne.s32.totalorder %s66, %s67
    %p76 = scmp.eq.s32.totalorder %s14, 0
    %p77 = por %p75, %p76
    %p78 = scmp.ne.s32.totalorder %s66, %s67
    %p79 = scmp.eq.s32.totalorder %s15, 1
    %p80 = por %p78, %p79
    %p82 = scmp.ne.s32.totalorder %s67, %s81
    %p83 = scmp.eq.s32.totalorder %s15, 0
    %p84 = por %p82, %p83
    %s85 = ssub.s32 %s9, %s16
    %p86 = scmp.eq.s32.totalorder %s85, 0
    %s88 = sadd.s32 %s87, 1
    %s89 = scalar_select %p86, %s87, %s88
    %p92 = pneg %p86
    %p93 = scmp.eq.s32.totalorder %s9, 1
    %p94 = por %p92, %p93
    %p95 = scmp.ne.s32.totalorder %s87, %s90
    %p96 = scmp.eq.s32.totalorder %s9, 0
    %p97 = por %p95, %p96
    %p98 = scmp.ne.s32.totalorder %s87, %s90
    %p99 = scmp.eq.s32.totalorder %s14, 1
    %p100 = por %p98, %p99
    %p101 = scmp.ne.s32.totalorder %s90, %s91
    %p102 = scmp.eq.s32.totalorder %s14, 0
    %p103 = por %p101, %p102
    %p104 = scmp.ne.s32.totalorder %s90, %s91
    %p105 = scmp.eq.s32.totalorder %s15, 1
    %p106 = por %p104, %p105
    %p108 = scmp.ne.s32.totalorder %s91, %s107
    %p109 = scmp.eq.s32.totalorder %s15, 0
    %p110 = por %p108, %p109
    %p111 = scmp.le.s32.totalorder 1, %s9
    %p112 = scmp.lt.s32.totalorder %s9, 3
    %p113 = pnand %p111, %p112
    %p114 = pneg %p113
    // Predicated region
    $region9: #{baseline_cnn_forward.8} parent=5 // pred_check
      _
    $region10: #{baseline_cnn_forward.8} parent=5 // pred_check_branch
      %116 = sbr.rel (%p113) target = $region12
    $region11: #{baseline_cnn_forward.8} parent=5 // pred_region
      %s117 = ssub.s32 %s9, 1
      // Predicated region
      $region13: #{baseline_cnn_forward.8} parent=11 // pred_check
        %p118 = pneg %p56
      $region14: #{baseline_cnn_forward.8} parent=11 // pred_check_branch
        %120 = sbr.rel (%p118) target = $region16
      $region15: #{baseline_cnn_forward.8} parent=11 // pred_region
        _
      $region16: #{baseline_cnn_forward.8} parent=11 // pred_fallthru
        _
      // Predicated region
      $region17: #{baseline_cnn_forward.8} parent=11 // pred_check
        %p121 = pneg %p77
      $region18: #{baseline_cnn_forward.8} parent=11 // pred_check_branch
        %123 = sbr.rel (%p121) target = $region20
      $region19: #{baseline_cnn_forward.8} parent=11 // pred_region
        _
      $region20: #{baseline_cnn_forward.8} parent=11 // pred_fallthru
        _
    $region12: #{baseline_cnn_forward.8} parent=5 // pred_fallthru
      _
    %p124 = scmp.lt.s32.totalorder %s9, 2
    // Predicated region
    $region21: #{baseline_cnn_forward.8} parent=5 // pred_check
      %p125 = pneg %p124
    $region22: #{baseline_cnn_forward.8} parent=5 // pred_check_branch
      %127 = sbr.rel (%p125) target = $region24
    $region23: #{baseline_cnn_forward.8} parent=5 // pred_region
      // Predicated region
      $region25: #{baseline_cnn_forward.8} parent=23 // pred_check
        %p128 = pneg %p29
      $region26: #{baseline_cnn_forward.8} parent=23 // pred_check_branch
        %130 = sbr.rel (%p128) target = $region28
      $region27: #{baseline_cnn_forward.8} parent=23 // pred_region
        %p131 = scmp.lt.s32.totalorder %s9, 1
        %s132 = scalar_select %p131, %s9, 1
        %s133 = smul.addr %s132, 16
        %s134 = smul.addr %s133, 8
        %s135 = scalar_lea.vmem %s0, %s134
      $region28: #{baseline_cnn_forward.8} parent=23 // pred_fallthru
        _
    $region24: #{baseline_cnn_forward.8} parent=5 // pred_fallthru
      _
    %p136 = scmp.le.s32.totalorder 1, %s9
    %p137 = scmp.lt.s32.totalorder %s9, 3
    %p138 = pnand %p136, %p137
    %p139 = pneg %p138
    // Predicated region
    $region29: #{baseline_cnn_forward.8} parent=5 // pred_check
      _
    $region30: #{baseline_cnn_forward.8} parent=5 // pred_check_branch
      %141 = sbr.rel (%p138) target = $region32
    $region31: #{baseline_cnn_forward.8} parent=5 // pred_region
      %s142 = ssub.s32 %s9, 1
      %p143 = scmp.lt.s32.totalorder %s14, 1
      %s144 = scalar_select %p143, %s14, 1
      %s145 = smul.addr %s144, 16
      %s146 = smul.addr %s145, 8
      %s147 = scalar_lea.vmem %s0, %s146
      %p148 = pneg %p35
      %p149 = pneg %p32
      %p150 = pneg %p56
      %p151 = pneg %p53
      %p152 = pneg %p77
      %p153 = pneg %p74
      %p154 = pneg %p103
      %p155 = pneg %p100
      %p156 = scmp.lt.s32.totalorder %s14, 1
      %s157 = scalar_select %p156, %s14, 1
      %s158 = smul.addr %s157, 16
      %s159 = smul.addr %s158, 2
      %s160 = scalar_lea.vmem %s3, %s159
      %p161 = scmp.lt.s32.totalorder %s14, 1
      %s162 = scalar_select %p161, %s14, 1
      %s163 = smul.addr %s162, 16
      %s164 = smul.addr %s163, 8
      %s165 = scalar_lea.vmem %s0, %s164
      %p166 = scmp.lt.s32.totalorder %s14, 1
      %s167 = scalar_select %p166, %s14, 1
      %s168 = smul.addr %s167, 16
      %s169 = smul.addr %s168, 2
      %s170 = scalar_lea.vmem %s3, %s169
      %v171 = vld [vmem:[%s1] sm:$0x1]
      %v172 = vld [vmem:[%s1 + $0x1] sm:$0x1]
      %v173 = vld [vmem:[%s1 + $0x2] sm:$0x1]
      %v174 = vld [vmem:[%s1 + $0x3] sm:$0x1]
      %v175 = vld [vmem:[%s1 + $0x4] sm:$0x1]
      %v176 = vld [vmem:[%s1 + $0x5] sm:$0x1]
      %v177 = vld [vmem:[%s1 + $0x6] sm:$0x1]
      %v178 = vld [vmem:[%s1 + $0x7] sm:$0x1]
      %v179 = vld [vmem:[%s1 + $0x8] sm:$0x1]
      %v180 = vld [vmem:[%s1 + $0x9] sm:$0x1]
      %v181 = vld [vmem:[%s1 + $0xa] sm:$0x1]
      %v182 = vld [vmem:[%s1 + $0xb] sm:$0x1]
      %v183 = vld [vmem:[%s1 + $0xc] sm:$0x1]
      %v184 = vld [vmem:[%s1 + $0xd] sm:$0x1]
      %v185 = vld [vmem:[%s1 + $0xe] sm:$0x1]
      %v186 = vld [vmem:[%s1 + $0xf] sm:$0x1]
      %v187 = vld [vmem:[%s2] sm:$0x1]
      %v188 = vld [vmem:[%s2 + $0x1] sm:$0x1]
      %v189 = vld [vmem:[%s2 + $0x2] sm:$0x1]
      %v190 = vld [vmem:[%s2 + $0x3] sm:$0x1]
      %v191 = vld [vmem:[%s2 + $0x4] sm:$0x1]
      %v192 = vld [vmem:[%s2 + $0x5] sm:$0x1]
      %v193 = vld [vmem:[%s2 + $0x6] sm:$0x1]
      %v194 = vld [vmem:[%s2 + $0x7] sm:$0x1]
      %v195 = vld [vmem:[%s2 + $0x8] sm:$0x1]
      %v196 = vld [vmem:[%s2 + $0x9] sm:$0x1]
      %v197 = vld [vmem:[%s2 + $0xa] sm:$0x1]
      %v198 = vld [vmem:[%s2 + $0xb] sm:$0x1]
      %v199 = vld [vmem:[%s2 + $0xc] sm:$0x1]
      %v200 = vld [vmem:[%s2 + $0xd] sm:$0x1]
      %v201 = vld [vmem:[%s2 + $0xe] sm:$0x1]
      %v202 = vld [vmem:[%s2 + $0xf] sm:$0x1]
      %v203 = vld [vmem:[%s165] ss:$2 sm:$0x3]
      %s204 = scalar_lea.vmem %s165, 8
      %v205 = vld [vmem:[%s204] ss:$2 sm:$0x3]
      %s206 = scalar_lea.vmem %s165, 16
      %v207 = vld [vmem:[%s206] ss:$2 sm:$0x3]
      %s208 = scalar_lea.vmem %s165, 24
      %v209 = vld [vmem:[%s208] ss:$2 sm:$0x3]
      %s210 = scalar_lea.vmem %s165, 32
      %v211 = vld [vmem:[%s210] ss:$2 sm:$0x3]
      %s212 = scalar_lea.vmem %s165, 40
      %v213 = vld [vmem:[%s212] ss:$2 sm:$0x3]
      %s214 = scalar_lea.vmem %s165, 48
      %v215 = vld [vmem:[%s214] ss:$2 sm:$0x3]
      %s216 = scalar_lea.vmem %s165, 56
      %v217 = vld [vmem:[%s216] ss:$2 sm:$0x3]
      %s218 = scalar_lea.vmem %s165, 64
      %v219 = vld [vmem:[%s218] ss:$2 sm:$0x3]
      %s220 = scalar_lea.vmem %s165, 72
      %v221 = vld [vmem:[%s220] ss:$2 sm:$0x3]
      %s222 = scalar_lea.vmem %s165, 80
      %v223 = vld [vmem:[%s222] ss:$2 sm:$0x3]
      %s224 = scalar_lea.vmem %s165, 88
      %v225 = vld [vmem:[%s224] ss:$2 sm:$0x3]
      %s226 = scalar_lea.vmem %s165, 96
      %v227 = vld [vmem:[%s226] ss:$2 sm:$0x3]
      %s228 = scalar_lea.vmem %s165, 104
      %v229 = vld [vmem:[%s228] ss:$2 sm:$0x3]
      %s230 = scalar_lea.vmem %s165, 112
      %v231 = vld [vmem:[%s230] ss:$2 sm:$0x3]
      %s232 = scalar_lea.vmem %s165, 120
      %v233 = vld [vmem:[%s232] ss:$2 sm:$0x3]
      %v250 = vlaneseq
      %v251 = vshrl.u32 %v250, 7
      %v252 = vsub.s32 0, %v251
      %v253 = vrot.slane %v171, %v252
      %v254 = vlaneseq
      %v255 = vshrl.u32 %v254, 7
      %v256 = vsub.s32 0, %v255
      %v257 = vrot.slane %v172, %v256
      %v258 = vlaneseq
      %v259 = vshrl.u32 %v258, 7
      %v260 = vsub.s32 0, %v259
      %v261 = vrot.slane %v173, %v260
      %v262 = vlaneseq
      %v263 = vshrl.u32 %v262, 7
      %v264 = vsub.s32 0, %v263
      %v265 = vrot.slane %v174, %v264
      %v266 = vlaneseq
      %v267 = vshrl.u32 %v266, 7
      %v268 = vsub.s32 0, %v267
      %v269 = vrot.slane %v175, %v268
      %v270 = vlaneseq
      %v271 = vshrl.u32 %v270, 7
      %v272 = vsub.s32 0, %v271
      %v273 = vrot.slane %v176, %v272
      %v274 = vlaneseq
      %v275 = vshrl.u32 %v274, 7
      %v276 = vsub.s32 0, %v275
      %v277 = vrot.slane %v177, %v276
      %v278 = vlaneseq
      %v279 = vshrl.u32 %v278, 7
      %v280 = vsub.s32 0, %v279
      %v281 = vrot.slane %v178, %v280
      %v282 = vlaneseq
      %v283 = vshrl.u32 %v282, 7
      %v284 = vsub.s32 0, %v283
      %v285 = vrot.slane %v179, %v284
      %v286 = vlaneseq
      %v287 = vshrl.u32 %v286, 7
      %v288 = vsub.s32 0, %v287
      %v289 = vrot.slane %v180, %v288
      %v290 = vlaneseq
      %v291 = vshrl.u32 %v290, 7
      %v292 = vsub.s32 0, %v291
      %v293 = vrot.slane %v181, %v292
      %v294 = vlaneseq
      %v295 = vshrl.u32 %v294, 7
      %v296 = vsub.s32 0, %v295
      %v297 = vrot.slane %v182, %v296
      %v298 = vlaneseq
      %v299 = vshrl.u32 %v298, 7
      %v300 = vsub.s32 0, %v299
      %v301 = vrot.slane %v183, %v300
      %v302 = vlaneseq
      %v303 = vshrl.u32 %v302, 7
      %v304 = vsub.s32 0, %v303
      %v305 = vrot.slane %v184, %v304
      %v306 = vlaneseq
      %v307 = vshrl.u32 %v306, 7
      %v308 = vsub.s32 0, %v307
      %v309 = vrot.slane %v185, %v308
      %v310 = vlaneseq
      %v311 = vshrl.u32 %v310, 7
      %v312 = vsub.s32 0, %v311
      %v313 = vrot.slane %v186, %v312
      %314 = vset.pattern.permute.xlu0 0
      %315 = vperm.xlu0 %314, %v253
      %v316 = vpop.permute.xlu0 %315
      %318 = vset.pattern.permute.xlu0 0
      %319 = vperm.xlu0 %318, %v257
      %v320 = vpop.permute.xlu0 %319
      %322 = vset.pattern.permute.xlu0 0
      %323 = vperm.xlu0 %322, %v261
      %v324 = vpop.permute.xlu0 %323
      %326 = vset.pattern.permute.xlu0 0
      %327 = vperm.xlu0 %326, %v265
      %v328 = vpop.permute.xlu0 %327
      %330 = vset.pattern.permute.xlu0 0
      %331 = vperm.xlu0 %330, %v269
      %v332 = vpop.permute.xlu0 %331
      %334 = vset.pattern.permute.xlu0 0
      %335 = vperm.xlu0 %334, %v273
      %v336 = vpop.permute.xlu0 %335
      %338 = vset.pattern.permute.xlu0 0
      %339 = vperm.xlu0 %338, %v277
      %v340 = vpop.permute.xlu0 %339
      %342 = vset.pattern.permute.xlu0 0
      %343 = vperm.xlu0 %342, %v281
      %v344 = vpop.permute.xlu0 %343
      %346 = vset.pattern.permute.xlu0 0
      %347 = vperm.xlu0 %346, %v285
      %v348 = vpop.permute.xlu0 %347
      %350 = vset.pattern.permute.xlu0 0
      %351 = vperm.xlu0 %350, %v289
      %v352 = vpop.permute.xlu0 %351
      %354 = vset.pattern.permute.xlu0 0
      %355 = vperm.xlu0 %354, %v293
      %v356 = vpop.permute.xlu0 %355
      %358 = vset.pattern.permute.xlu0 0
      %359 = vperm.xlu0 %358, %v297
      %v360 = vpop.permute.xlu0 %359
      %362 = vset.pattern.permute.xlu0 0
      %363 = vperm.xlu0 %362, %v301
      %v364 = vpop.permute.xlu0 %363
      %366 = vset.pattern.permute.xlu0 0
      %367 = vperm.xlu0 %366, %v305
      %v368 = vpop.permute.xlu0 %367
      %370 = vset.pattern.permute.xlu0 0
      %371 = vperm.xlu0 %370, %v309
      %v372 = vpop.permute.xlu0 %371
      %374 = vset.pattern.permute.xlu0 0
      %375 = vperm.xlu0 %374, %v313
      %v376 = vpop.permute.xlu0 %375
      %v378 = vmul.f32 %v203, %v316
      %v379 = vmul.f32 %v205, %v320
      %v380 = vmul.f32 %v207, %v324
      %v381 = vmul.f32 %v209, %v328
      %v382 = vmul.f32 %v211, %v332
      %v383 = vmul.f32 %v213, %v336
      %v384 = vmul.f32 %v215, %v340
      %v385 = vmul.f32 %v217, %v344
      %v386 = vmul.f32 %v219, %v348
      %v387 = vmul.f32 %v221, %v352
      %v388 = vmul.f32 %v223, %v356
      %v389 = vmul.f32 %v225, %v360
      %v390 = vmul.f32 %v227, %v364
      %v391 = vmul.f32 %v229, %v368
      %v392 = vmul.f32 %v231, %v372
      %v393 = vmul.f32 %v233, %v376
      %v410 = vlaneseq
      %v411 = vshrl.u32 %v410, 7
      %v412 = vsub.s32 0, %v411
      %v413 = vrot.slane %v187, %v412
      %v414 = vlaneseq
      %v415 = vshrl.u32 %v414, 7
      %v416 = vsub.s32 0, %v415
      %v417 = vrot.slane %v188, %v416
      %v418 = vlaneseq
      %v419 = vshrl.u32 %v418, 7
      %v420 = vsub.s32 0, %v419
      %v421 = vrot.slane %v189, %v420
      %v422 = vlaneseq
      %v423 = vshrl.u32 %v422, 7
      %v424 = vsub.s32 0, %v423
      %v425 = vrot.slane %v190, %v424
      %v426 = vlaneseq
      %v427 = vshrl.u32 %v426, 7
      %v428 = vsub.s32 0, %v427
      %v429 = vrot.slane %v191, %v428
      %v430 = vlaneseq
      %v431 = vshrl.u32 %v430, 7
      %v432 = vsub.s32 0, %v431
      %v433 = vrot.slane %v192, %v432
      %v434 = vlaneseq
      %v435 = vshrl.u32 %v434, 7
      %v436 = vsub.s32 0, %v435
      %v437 = vrot.slane %v193, %v436
      %v438 = vlaneseq
      %v439 = vshrl.u32 %v438, 7
      %v440 = vsub.s32 0, %v439
      %v441 = vrot.slane %v194, %v440
      %v442 = vlaneseq
      %v443 = vshrl.u32 %v442, 7
      %v444 = vsub.s32 0, %v443
      %v445 = vrot.slane %v195, %v444
      %v446 = vlaneseq
      %v447 = vshrl.u32 %v446, 7
      %v448 = vsub.s32 0, %v447
      %v449 = vrot.slane %v196, %v448
      %v450 = vlaneseq
      %v451 = vshrl.u32 %v450, 7
      %v452 = vsub.s32 0, %v451
      %v453 = vrot.slane %v197, %v452
      %v454 = vlaneseq
      %v455 = vshrl.u32 %v454, 7
      %v456 = vsub.s32 0, %v455
      %v457 = vrot.slane %v198, %v456
      %v458 = vlaneseq
      %v459 = vshrl.u32 %v458, 7
      %v460 = vsub.s32 0, %v459
      %v461 = vrot.slane %v199, %v460
      %v462 = vlaneseq
      %v463 = vshrl.u32 %v462, 7
      %v464 = vsub.s32 0, %v463
      %v465 = vrot.slane %v200, %v464
      %v466 = vlaneseq
      %v467 = vshrl.u32 %v466, 7
      %v468 = vsub.s32 0, %v467
      %v469 = vrot.slane %v201, %v468
      %v470 = vlaneseq
      %v471 = vshrl.u32 %v470, 7
      %v472 = vsub.s32 0, %v471
      %v473 = vrot.slane %v202, %v472
      %474 = vset.pattern.permute.xlu0 0
      %475 = vperm.xlu0 %474, %v413
      %v476 = vpop.permute.xlu0 %475
      %478 = vset.pattern.permute.xlu0 0
      %479 = vperm.xlu0 %478, %v417
      %v480 = vpop.permute.xlu0 %479
      %482 = vset.pattern.permute.xlu0 0
      %483 = vperm.xlu0 %482, %v421
      %v484 = vpop.permute.xlu0 %483
      %486 = vset.pattern.permute.xlu0 0
      %487 = vperm.xlu0 %486, %v425
      %v488 = vpop.permute.xlu0 %487
      %490 = vset.pattern.permute.xlu0 0
      %491 = vperm.xlu0 %490, %v429
      %v492 = vpop.permute.xlu0 %491
      %494 = vset.pattern.permute.xlu0 0
      %495 = vperm.xlu0 %494, %v433
      %v496 = vpop.permute.xlu0 %495
      %498 = vset.pattern.permute.xlu0 0
      %499 = vperm.xlu0 %498, %v437
      %v500 = vpop.permute.xlu0 %499
      %502 = vset.pattern.permute.xlu0 0
      %503 = vperm.xlu0 %502, %v441
      %v504 = vpop.permute.xlu0 %503
      %506 = vset.pattern.permute.xlu0 0
      %507 = vperm.xlu0 %506, %v445
      %v508 = vpop.permute.xlu0 %507
      %510 = vset.pattern.permute.xlu0 0
      %511 = vperm.xlu0 %510, %v449
      %v512 = vpop.permute.xlu0 %511
      %514 = vset.pattern.permute.xlu0 0
      %515 = vperm.xlu0 %514, %v453
      %v516 = vpop.permute.xlu0 %515
      %518 = vset.pattern.permute.xlu0 0
      %519 = vperm.xlu0 %518, %v457
      %v520 = vpop.permute.xlu0 %519
      %522 = vset.pattern.permute.xlu0 0
      %523 = vperm.xlu0 %522, %v461
      %v524 = vpop.permute.xlu0 %523
      %526 = vset.pattern.permute.xlu0 0
      %527 = vperm.xlu0 %526, %v465
      %v528 = vpop.permute.xlu0 %527
      %530 = vset.pattern.permute.xlu0 0
      %531 = vperm.xlu0 %530, %v469
      %v532 = vpop.permute.xlu0 %531
      %534 = vset.pattern.permute.xlu0 0
      %535 = vperm.xlu0 %534, %v473
      %v536 = vpop.permute.xlu0 %535
      %v538 = vadd.f32 %v378, %v476
      %v539 = vadd.f32 %v379, %v480
      %v540 = vadd.f32 %v380, %v484
      %v541 = vadd.f32 %v381, %v488
      %v542 = vadd.f32 %v382, %v492
      %v543 = vadd.f32 %v383, %v496
      %v544 = vadd.f32 %v384, %v500
      %v545 = vadd.f32 %v385, %v504
      %v546 = vadd.f32 %v386, %v508
      %v547 = vadd.f32 %v387, %v512
      %v548 = vadd.f32 %v388, %v516
      %v549 = vadd.f32 %v389, %v520
      %v550 = vadd.f32 %v390, %v524
      %v551 = vadd.f32 %v391, %v528
      %v552 = vadd.f32 %v392, %v532
      %v553 = vadd.f32 %v393, %v536
      %s554 = scalar_lea.vmem %s165, 1
      %v555 = vld [vmem:[%s554] ss:$2 sm:$0x3]
      %s556 = scalar_lea.vmem %s165, 9
      %v557 = vld [vmem:[%s556] ss:$2 sm:$0x3]
      %s558 = scalar_lea.vmem %s165, 17
      %v559 = vld [vmem:[%s558] ss:$2 sm:$0x3]
      %s560 = scalar_lea.vmem %s165, 25
      %v561 = vld [vmem:[%s560] ss:$2 sm:$0x3]
      %s562 = scalar_lea.vmem %s165, 33
      %v563 = vld [vmem:[%s562] ss:$2 sm:$0x3]
      %s564 = scalar_lea.vmem %s165, 41
      %v565 = vld [vmem:[%s564] ss:$2 sm:$0x3]
      %s566 = scalar_lea.vmem %s165, 49
      %v567 = vld [vmem:[%s566] ss:$2 sm:$0x3]
      %s568 = scalar_lea.vmem %s165, 57
      %v569 = vld [vmem:[%s568] ss:$2 sm:$0x3]
      %s570 = scalar_lea.vmem %s165, 65
      %v571 = vld [vmem:[%s570] ss:$2 sm:$0x3]
      %s572 = scalar_lea.vmem %s165, 73
      %v573 = vld [vmem:[%s572] ss:$2 sm:$0x3]
      %s574 = scalar_lea.vmem %s165, 81
      %v575 = vld [vmem:[%s574] ss:$2 sm:$0x3]
      %s576 = scalar_lea.vmem %s165, 89
      %v577 = vld [vmem:[%s576] ss:$2 sm:$0x3]
      %s578 = scalar_lea.vmem %s165, 97
      %v579 = vld [vmem:[%s578] ss:$2 sm:$0x3]
      %s580 = scalar_lea.vmem %s165, 105
      %v581 = vld [vmem:[%s580] ss:$2 sm:$0x3]
      %s582 = scalar_lea.vmem %s165, 113
      %v583 = vld [vmem:[%s582] ss:$2 sm:$0x3]
      %s584 = scalar_lea.vmem %s165, 121
      %v585 = vld [vmem:[%s584] ss:$2 sm:$0x3]
      %v586 = vmul.f32 %v555, %v316
      %v587 = vmul.f32 %v557, %v320
      %v588 = vmul.f32 %v559, %v324
      %v589 = vmul.f32 %v561, %v328
      %v590 = vmul.f32 %v563, %v332
      %v591 = vmul.f32 %v565, %v336
      %v592 = vmul.f32 %v567, %v340
      %v593 = vmul.f32 %v569, %v344
      %v594 = vmul.f32 %v571, %v348
      %v595 = vmul.f32 %v573, %v352
      %v596 = vmul.f32 %v575, %v356
      %v597 = vmul.f32 %v577, %v360
      %v598 = vmul.f32 %v579, %v364
      %v599 = vmul.f32 %v581, %v368
      %v600 = vmul.f32 %v583, %v372
      %v601 = vmul.f32 %v585, %v376
      %v602 = vadd.f32 %v586, %v476
      %v603 = vadd.f32 %v587, %v480
      %v604 = vadd.f32 %v588, %v484
      %v605 = vadd.f32 %v589, %v488
      %v606 = vadd.f32 %v590, %v492
      %v607 = vadd.f32 %v591, %v496
      %v608 = vadd.f32 %v592, %v500
      %v609 = vadd.f32 %v593, %v504
      %v610 = vadd.f32 %v594, %v508
      %v611 = vadd.f32 %v595, %v512
      %v612 = vadd.f32 %v596, %v516
      %v613 = vadd.f32 %v597, %v520
      %v614 = vadd.f32 %v598, %v524
      %v615 = vadd.f32 %v599, %v528
      %v616 = vadd.f32 %v600, %v532
      %v617 = vadd.f32 %v601, %v536
      %v618 = vmax.f32 %v538, %v602
      %v619 = vmax.f32 %v539, %v603
      %v620 = vmax.f32 %v540, %v604
      %v621 = vmax.f32 %v541, %v605
      %v622 = vmax.f32 %v542, %v606
      %v623 = vmax.f32 %v543, %v607
      %v624 = vmax.f32 %v544, %v608
      %v625 = vmax.f32 %v545, %v609
      %v626 = vmax.f32 %v546, %v610
      %v627 = vmax.f32 %v547, %v611
      %v628 = vmax.f32 %v548, %v612
      %v629 = vmax.f32 %v549, %v613
      %v630 = vmax.f32 %v550, %v614
      %v631 = vmax.f32 %v551, %v615
      %v632 = vmax.f32 %v552, %v616
      %v633 = vmax.f32 %v553, %v617
      %vm634 = vcmask 50176
      %635 = vst.msk [vmem:[%s170] sm:$0x3] %vm634, %v618
      %636 = vst.msk [vmem:[%s170 + $0x2] sm:$0x3] %vm634, %v619
      %637 = vst.msk [vmem:[%s170 + $0x4] sm:$0x3] %vm634, %v620
      %638 = vst.msk [vmem:[%s170 + $0x6] sm:$0x3] %vm634, %v621
      %639 = vst.msk [vmem:[%s170 + $0x8] sm:$0x3] %vm634, %v622
      %640 = vst.msk [vmem:[%s170 + $0xa] sm:$0x3] %vm634, %v623
      %641 = vst.msk [vmem:[%s170 + $0xc] sm:$0x3] %vm634, %v624
      %642 = vst.msk [vmem:[%s170 + $0xe] sm:$0x3] %vm634, %v625
      %643 = vst.msk [vmem:[%s170 + $0x10] sm:$0x3] %vm634, %v626
      %644 = vst.msk [vmem:[%s170 + $0x12] sm:$0x3] %vm634, %v627
      %645 = vst.msk [vmem:[%s170 + $0x14] sm:$0x3] %vm634, %v628
      %646 = vst.msk [vmem:[%s170 + $0x16] sm:$0x3] %vm634, %v629
      %647 = vst.msk [vmem:[%s170 + $0x18] sm:$0x3] %vm634, %v630
      %648 = vst.msk [vmem:[%s170 + $0x1a] sm:$0x3] %vm634, %v631
      %649 = vst.msk [vmem:[%s170 + $0x1c] sm:$0x3] %vm634, %v632
      %650 = vst.msk [vmem:[%s170 + $0x1e] sm:$0x3] %vm634, %v633
      %p651 = scmp.lt.s32.totalorder %s14, 1
      %s652 = scalar_select %p651, %s14, 1
      %s653 = smul.addr %s652, 16
      %s654 = smul.addr %s653, 2
      %s655 = scalar_lea.vmem %s3, %s654
      // Predicated region
      $region33: #{baseline_cnn_forward.8} parent=31 // pred_check
        %p656 = pneg %p100
      $region34: #{baseline_cnn_forward.8} parent=31 // pred_check_branch
        %658 = sbr.rel (%p656) target = $region36
      $region35: #{baseline_cnn_forward.8} parent=31 // pred_region
        _
      $region36: #{baseline_cnn_forward.8} parent=31 // pred_fallthru
        _
    $region32: #{baseline_cnn_forward.8} parent=5 // pred_fallthru
      _
    %p659 = scmp.le.s32.totalorder 2, %s9
    // Predicated region
    $region37: #{baseline_cnn_forward.8} parent=5 // pred_check
      %p660 = pneg %p659
    $region38: #{baseline_cnn_forward.8} parent=5 // pred_check_branch
      %662 = sbr.rel (%p660) target = $region40
    $region39: #{baseline_cnn_forward.8} parent=5 // pred_region
      %s663 = ssub.s32 %s9, 2
      // Predicated region
      $region41: #{baseline_cnn_forward.8} parent=39 // pred_check
        %p664 = pneg %p106
      $region42: #{baseline_cnn_forward.8} parent=39 // pred_check_branch
        %666 = sbr.rel (%p664) target = $region44
      $region43: #{baseline_cnn_forward.8} parent=39 // pred_region
        %p667 = scmp.lt.s32.totalorder %s15, 1
        %s668 = scalar_select %p667, %s15, 1
        %s669 = smul.addr %s668, 16
        %s670 = smul.addr %s669, 2
        %s671 = scalar_lea.vmem %s3, %s670
      $region44: #{baseline_cnn_forward.8} parent=39 // pred_fallthru
        _
    $region40: #{baseline_cnn_forward.8} parent=5 // pred_fallthru
      _
  $region6: #{baseline_cnn_forward.8} parent=0 // loop_footer
    %s13 = sadd.s32 1, %s9
  $region7: #{baseline_cnn_forward.8} parent=0 // loop_footer_branch
    %8 = sbr.rel target = $region3
  $region8: #{baseline_cnn_forward.8} parent=0 // loop_exit
    _

// kernel: baseline_cnn_forward.9
$region0: #{baseline_cnn_forward.9}
  #allocation0 [shape = 'u32[]', space=smem, size = 0x4, offset = 0x4, fixed_abs, tag = 'smem constant byte address 0x4 - core index']
  #allocation1 [shape = 'u32[144,128]{1,0:T(1,128)}', space=vmem, size = 0x12000, scoped, tag = 'internal scratch']
  %s0 = inlined_call_operand.vmem [shape: bf16[2,64], index: 0, kind: input, shape index: {}]
  %s1 = inlined_call_operand.vmem [shape: bf16[64,32], index: 1, kind: input, shape index: {}]
  %s2 = inlined_call_operand.vmem [shape: f32[1,32], index: 2, kind: input, shape index: {}]
  %s3 = inlined_call_operand.vmem [shape: bf16[32,10], index: 3, kind: input, shape index: {}]
  %s4 = inlined_call_operand.vmem [shape: f32[1,10], index: 4, kind: input, shape index: {}]
  %s5 = inlined_call_operand.hbm [shape: f32[2,10], index: 5, kind: output, shape index: {}]
  %s6 = sld [smem:[#allocation0]]
  $region30: #{baseline_cnn_forward.9} parent=0
    _
  %s8 = ssub.s32 1, %s6
  %s9 = scalar_select 0, %s8, %s6
  $region1: #{baseline_cnn_forward.9} parent=0
    #allocation2 [shape = 'u8[1024]{0}', space=vmem, size = 0x400, scoped, tag = 'output window, operand 0, single buffered']
    #allocation3 [shape = 's32[1]{0}', space=sflag, size = 0x4, scoped, tag = 'scoped memory for baseline_cnn_forward.9']
    %10 = vsyncpa [#allocation3], 0
    // Predicated region
    $region2: #{baseline_cnn_forward.9} parent=1 // pred_check
      _
    $region3: #{baseline_cnn_forward.9} parent=1 // pred_check_branch
      %12 = sbr.rel (0) target = $region5
    $region4: #{baseline_cnn_forward.9} parent=1 // pred_region
      _
    $region5: #{baseline_cnn_forward.9} parent=1 // pred_fallthru
      _
    // Predicated region
    $region6: #{baseline_cnn_forward.9} parent=1 // pred_check
      _
    $region7: #{baseline_cnn_forward.9} parent=1 // pred_check_branch
      %14 = sbr.rel (0) target = $region9
    $region8: #{baseline_cnn_forward.9} parent=1 // pred_region
      _
    $region9: #{baseline_cnn_forward.9} parent=1 // pred_fallthru
      _
    // Predicated region
    $region10: #{baseline_cnn_forward.9} parent=1 // pred_check
      _
    $region11: #{baseline_cnn_forward.9} parent=1 // pred_check_branch
      %16 = sbr.rel (0) target = $region13
    $region12: #{baseline_cnn_forward.9} parent=1 // pred_region
      _
    $region13: #{baseline_cnn_forward.9} parent=1 // pred_fallthru
      _
    // Predicated region
    $region14: #{baseline_cnn_forward.9} parent=1 // pred_check
      _
    $region15: #{baseline_cnn_forward.9} parent=1 // pred_check_branch
      %18 = sbr.rel (0) target = $region17
    $region16: #{baseline_cnn_forward.9} parent=1 // pred_region
      _
    $region17: #{baseline_cnn_forward.9} parent=1 // pred_fallthru
      _
    // Predicated region
    $region18: #{baseline_cnn_forward.9} parent=1 // pred_check
      _
    $region19: #{baseline_cnn_forward.9} parent=1 // pred_check_branch
      %20 = sbr.rel (0) target = $region21
    $region20: #{baseline_cnn_forward.9} parent=1 // pred_region
      _
    $region21: #{baseline_cnn_forward.9} parent=1 // pred_fallthru
      _
    %v22 = vld [vmem:[%s0] sm:$0x1]
    %v23 = vld [vmem:[%s1] sm:$0xf]
    %v24 = vld [vmem:[%s1 + $0x4] sm:$0xf]
    %v25 = vld [vmem:[%s1 + $0x8] sm:$0xf]
    %v26 = vld [vmem:[%s1 + $0xc] sm:$0xf]
    %v27 = vld [vmem:[%s1 + $0x10] sm:$0xf]
    %v28 = vld [vmem:[%s1 + $0x14] sm:$0xf]
    %v29 = vld [vmem:[%s1 + $0x18] sm:$0xf]
    %v30 = vld [vmem:[%s1 + $0x1c] sm:$0xf]
    %v31 = vld [vmem:[%s2] sm:$0x1]
    %v33 = vlaneseq
    %v34 = vshrl.u32 %v33, 7
    %v35 = vsub.s32 0, %v34
    %v36 = vrot.slane %v31, %v35
    %v46 = vunpack.c.l.b16 %v23
    %v47 = vunpack.c.l.b16 %v24
    %v48 = vunpack.c.l.b16 %v25
    %v49 = vunpack.c.l.b16 %v26
    %v50 = vunpack.c.l.b16 %v27
    %v51 = vunpack.c.l.b16 %v28
    %v52 = vunpack.c.l.b16 %v29
    %v53 = vunpack.c.l.b16 %v30
    %v54 = vpack.c.b16 %v47, %v46
    %v55 = vpack.c.b16 %v49, %v48
    %v56 = vpack.c.b16 %v51, %v50
    %v57 = vpack.c.b16 %v53, %v52
    %vm62 = vcmask 523264
    %v64 = vsel %vm62, %v22, 0
    %66 = vmatprep.subr.bf16.mxu0 0
    %67 = vmatpush1.bf16.msra.mxu0 0
    %68 = vmatprep.subr.bf16.mxu0 0
    %69 = vmatpush1.bf16.msra.mxu0 0
    %70 = vmatprep.subr.bf16.mxu0 0
    %71 = vmatpush1.bf16.msra.mxu0 0
    %72 = vmatprep.subr.bf16.mxu0 0
    %73 = vmatpush1.bf16.msra.mxu0 0
    %74 = vmatprep.subr.bf16.mxu0 0
    %75 = vmatpush1.bf16.msra.mxu0 %v57
    %76 = vmatprep.subr.bf16.mxu0 0
    %77 = vmatpush1.bf16.msra.mxu0 %v56
    %78 = vmatprep.subr.bf16.mxu0 0
    %79 = vmatpush1.bf16.msra.mxu0 %v55
    %80 = vmatprep.subr.bf16.mxu0 0
    %81 = vmatpush1.bf16.msra.mxu0 %v54
    %82 = vmatprep.subr.bf16.mxu0 0
    %83 = vmatpush2.bf16.msra.mxu0 0
    %84 = vmatprep.subr.bf16.mxu0 0
    %85 = vmatpush2.bf16.msra.mxu0 0
    %86 = vmatprep.subr.bf16.mxu0 0
    %87 = vmatpush2.bf16.msra.mxu0 0
    %88 = vmatprep.subr.bf16.mxu0 0
    %89 = vmatpush2.bf16.msra.mxu0 0
    %90 = vmatprep.subr.bf16.mxu0 0
    %91 = vmatpush2.bf16.msra.mxu0 0
    %92 = vmatprep.subr.bf16.mxu0 0
    %93 = vmatpush2.bf16.msra.mxu0 0
    %94 = vmatprep.subr.bf16.mxu0 0
    %95 = vmatpush2.bf16.msra.mxu0 0
    %96 = vmatprep.subr.bf16.mxu0 0
    %97 = vmatpush2.bf16.msra.mxu0 0
    %98 = vmatprep.mubr.bf16.mxu0 0
    %99 = vmatmul.mubr.bf16.gmra.mxu0 %v64
    %v100 = vpop.f32.mrf.mxu0
    %v101 = vadd.f32 %v36, %v100
    %v102 = vpop.f32.mrf.mxu0
    %v103 = vpop.f32.mrf.mxu0
    %v104 = vpop.f32.mrf.mxu0
    %105 = vdwg.mxu0
    %v106 = vmax.f32 %v101, 0.0
    %v107 = vpack.c.bf16 %v106, %v106
    %v108 = vld [vmem:[%s3] sm:$0xf]
    %v109 = vld [vmem:[%s3 + $0x4] sm:$0xf]
    %v110 = vld [vmem:[%s3 + $0x8] sm:$0xf]
    %v111 = vld [vmem:[%s3 + $0xc] sm:$0xf]
    %v112 = vld [vmem:[%s4] sm:$0x1]
    %v114 = vlaneseq
    %v115 = vshrl.u32 %v114, 7
    %v116 = vsub.s32 0, %v115
    %v117 = vrot.slane %v112, %v116
    %v123 = vunpack.c.l.b16 %v108
    %v124 = vunpack.c.l.b16 %v109
    %v125 = vunpack.c.l.b16 %v110
    %v126 = vunpack.c.l.b16 %v111
    %v127 = vpack.c.b16 %v124, %v123
    %v128 = vpack.c.b16 %v126, %v125
    %vm131 = vcmask 261120
    %v133 = vsel %vm131, %v107, 0
    %135 = vmatprep.subr.bf16.mxu0 0
    %136 = vmatpush1.bf16.msra.mxu0 0
    %137 = vmatprep.subr.bf16.mxu0 0
    %138 = vmatpush1.bf16.msra.mxu0 0
    %139 = vmatprep.subr.bf16.mxu0 0
    %140 = vmatpush1.bf16.msra.mxu0 0
    %141 = vmatprep.subr.bf16.mxu0 0
    %142 = vmatpush1.bf16.msra.mxu0 0
    %143 = vmatprep.subr.bf16.mxu0 0
    %144 = vmatpush1.bf16.msra.mxu0 0
    %145 = vmatprep.subr.bf16.mxu0 0
    %146 = vmatpush1.bf16.msra.mxu0 0
    %147 = vmatprep.subr.bf16.mxu0 0
    %148 = vmatpush1.bf16.msra.mxu0 %v128
    %149 = vmatprep.subr.bf16.mxu0 0
    %150 = vmatpush1.bf16.msra.mxu0 %v127
    %151 = vmatprep.subr.bf16.mxu0 0
    %152 = vmatpush2.bf16.msra.mxu0 0
    %153 = vmatprep.subr.bf16.mxu0 0
    %154 = vmatpush2.bf16.msra.mxu0 0
    %155 = vmatprep.subr.bf16.mxu0 0
    %156 = vmatpush2.bf16.msra.mxu0 0
    %157 = vmatprep.subr.bf16.mxu0 0
    %158 = vmatpush2.bf16.msra.mxu0 0
    %159 = vmatprep.subr.bf16.mxu0 0
    %160 = vmatpush2.bf16.msra.mxu0 0
    %161 = vmatprep.subr.bf16.mxu0 0
    %162 = vmatpush2.bf16.msra.mxu0 0
    %163 = vmatprep.subr.bf16.mxu0 0
    %164 = vmatpush2.bf16.msra.mxu0 0
    %165 = vmatprep.subr.bf16.mxu0 0
    %166 = vmatpush2.bf16.msra.mxu0 0
    %167 = vmatprep.mubr.bf16.mxu0 0
    %168 = vmatmul.mubr.bf16.gmra.mxu0 %v133
    %v169 = vpop.f32.mrf.mxu0
    %v170 = vadd.f32 %v117, %v169
    %v171 = vpop.f32.mrf.mxu0
    %v172 = vpop.f32.mrf.mxu0
    %v173 = vpop.f32.mrf.mxu0
    %174 = vdwg.mxu0
    %vm175 = vcmask 74752
    %176 = vst.msk [vmem:[#allocation2] sm:$0x3] %vm175, %v170
    // Predicated region
    $region22: #{baseline_cnn_forward.9} parent=1 // pred_check
      _
    $region23: #{baseline_cnn_forward.9} parent=1 // pred_check_branch
      %178 = sbr.rel (0) target = $region25
    $region24: #{baseline_cnn_forward.9} parent=1 // pred_region
      %s180 = ssub.s32 32, 32
      %181 = vsyncadd [#allocation3], %s180
      %s183 = sshll.u32 [#allocation2], 4
      %s184 = int_to_ptr.vmem [resolvable:$true] %s183
      %186 = dma.vmem_to_hbm [thread:$0]  %s184, 32, %s5, [#allocation3]
    $region25: #{baseline_cnn_forward.9} parent=1 // pred_fallthru
      _
    // Predicated region
    $region26: #{baseline_cnn_forward.9} parent=1 // pred_check
      _
    $region27: #{baseline_cnn_forward.9} parent=1 // pred_check_branch
      %188 = sbr.rel (0) target = $region29
    $region28: #{baseline_cnn_forward.9} parent=1 // pred_region
      %189 = dma.done [#allocation3], 32
    $region29: #{baseline_cnn_forward.9} parent=1 // pred_fallthru
      _
    %190 = vsyncpa [#allocation3], 1

</llo_original>
